<compile_context>
chip_gen: v6e
topology: v6e:2x2x1
jax: 0.10.0
libtpu: 0.0.40
codegen_flags: <defaults>
</compile_context>

<pallas_src>
import functools

import jax
import jax.numpy as jnp
from jax.experimental import pallas as pl
from jax.experimental.pallas import tpu as pltpu


# Conservative resident-A budget (bytes) for the fused single-call path.
# v7x has only 64 MiB physical / 32 MiB default-scoped VMEM, so stay well below.
_FUSED_VMEM_BUDGET = 20 * 1024 * 1024


def _pick_tile(n, max_tile, quantum):
    """Largest tile <= max_tile that divides n and is a multiple of `quantum`.
    Falls back to the full extent when n is not quantum-aligned."""
    if n <= quantum or n % quantum != 0:
        return n
    t = (min(max_tile, n) // quantum) * quantum
    while n % t != 0:
        t -= quantum
    return t


def _pick_row_tile(n, max_tile, quantum=16, min_tiles=2):
    """Row (sublane) tile: bf16-friendly quantum of 16 and, when possible, at
    least `min_tiles` row tiles so the 'parallel' grid axis can shard across
    both TensorCores on v7x."""
    if n % quantum == 0 and n >= min_tiles * quantum:
        max_tile = min(max_tile, n // min_tiles)
    return _pick_tile(n, max_tile, quantum)


# ---------------------------------------------------------------------------
# Kernel 1 (layer-0 only): feature projection   hw = h @ W   (bf16 output)
# ---------------------------------------------------------------------------
def _project_kernel(h_ref, w_ref, o_ref):
    o_ref[...] = jnp.dot(h_ref[...].astype(jnp.bfloat16), w_ref[...],
                         preferred_element_type=jnp.float32).astype(o_ref.dtype)


def gcn_project(h, w_bf16, *, max_rows=512):
    N, H = h.shape
    tm = _pick_row_tile(N, max_rows)
    ce = pl.CostEstimate(
        flops=2 * N * H * H, transcendentals=0,
        bytes_accessed=N * H * 4 + (N // tm) * H * H * 2 + N * H * 2)
    return pl.pallas_call(
        _project_kernel,
        out_shape=jax.ShapeDtypeStruct((N, H), jnp.bfloat16),
        grid_spec=pltpu.PrefetchScalarGridSpec(
            num_scalar_prefetch=0,
            grid=(N // tm,),
            in_specs=[
                pl.BlockSpec((tm, H), lambda i: (i, 0)),
                pl.BlockSpec((H, H), lambda i: (0, 0)),      # W resident
            ],
            out_specs=pl.BlockSpec((tm, H), lambda i: (i, 0)),
        ),
        compiler_params=pltpu.CompilerParams(
            dimension_semantics=("parallel",),
            vmem_limit_bytes=32 * 1024 * 1024),
        cost_estimate=ce,
    )(h, w_bf16)


# ---------------------------------------------------------------------------
# Kernel 2 (tiled path): out = relu(A_hat @ hw + b) + feat_scale * features
#                        (+ optional fused next-layer projection, bf16)
# ---------------------------------------------------------------------------
def _aggregate_body(a_ref, hw_ref, b_ref, feat_ref, o_ref, feat_scale,
                    w_next_ref=None, hw_next_ref=None):
    k = pl.program_id(1)

    # o_ref's index_map ignores k -> the f32 output block stays resident in
    # VMEM across the whole reduction: accumulate directly into it (no scratch).
    @pl.when(k == 0)
    def _():
        o_ref[...] = jnp.zeros_like(o_ref)

    o_ref[...] += jnp.dot(a_ref[...], hw_ref[...],
                          preferred_element_type=jnp.float32)

    # Epilogue on the last reduction step only: bias (added after aggregation,
    # per DGL GraphConv), relu, residual (x2 on the last layer to fold in the
    # module's final "+ features"), plus the NEXT layer's projection if requested.
    @pl.when(k == pl.num_programs(1) - 1)
    def _():
        z = jnp.maximum(o_ref[...] + b_ref[...], 0.0)
        if feat_scale == 1.0:
            h = z + feat_ref[...]
        else:
            h = z + feat_scale * feat_ref[...]
        o_ref[...] = h
        if w_next_ref is not None:
            # hw_{l+1} = h @ W_{l+1}: rides on MXU slack; saves one pallas_call
            # and a full f32 HBM round trip of h per layer.
            hw_next_ref[...] = jnp.dot(
                h.astype(jnp.bfloat16), w_next_ref[...],
                preferred_element_type=jnp.float32).astype(hw_next_ref.dtype)


def _make_aggregate_kernel(emit_next, feat_scale):
    if emit_next:
        def kernel(a_ref, hw_ref, b_ref, feat_ref, w_next_ref, o_ref, hw_next_ref):
            _aggregate_body(a_ref, hw_ref, b_ref, feat_ref, o_ref, feat_scale,
                            w_next_ref=w_next_ref, hw_next_ref=hw_next_ref)
    else:
        def kernel(a_ref, hw_ref, b_ref, feat_ref, o_ref):
            _aggregate_body(a_ref, hw_ref, b_ref, feat_ref, o_ref, feat_scale)
    return kernel


def gcn_aggregate(a_bf16, hw_bf16, b, features, w_next=None, *, feat_scale=1.0,
                  max_tm=512, max_tk=1024):
    N, H = features.shape
    tm = _pick_row_tile(N, max_tm)           # row (sublane) tile, quantum 16
    tk = _pick_tile(N, max_tk, 128)          # reduction (lane) tile of A_hat
    emit_next = w_next is not None

    # Double-buffered VMEM footprint of this tiling -> explicit vmem limit.
    per_buf = tm * tk * 2 + tk * H * 2 + H * 4 + tm * H * 4 + tm * H * 4
    if emit_next:
        per_buf += H * H * 2 + tm * H * 2
    vmem_limit = int(min(max(32 << 20, 4 * per_buf), 48 << 20))

    bytes_accessed = (N * N * 2                   # A_hat, streamed once
                      + (N // tm) * N * H * 2     # hw re-streamed per row tile
                      + H * 4 + N * H * 4 + N * H * 4)
    flops = 2 * N * N * H
    if emit_next:
        bytes_accessed += N * H * 2 + (N // tm) * H * H * 2
        flops += 2 * N * H * H
    ce = pl.CostEstimate(flops=flops, transcendentals=0,
                         bytes_accessed=bytes_accessed)

    in_specs = [
        pl.BlockSpec((tm, tk), lambda i, k: (i, k)),   # A_hat tile (bf16)
        pl.BlockSpec((tk, H), lambda i, k: (k, 0)),    # hw K-panel (bf16)
        pl.BlockSpec((1, H), lambda i, k: (0, 0)),     # bias, resident
        pl.BlockSpec((tm, H), lambda i, k: (i, 0)),    # residual feature rows
    ]
    args = [a_bf16, hw_bf16, b, features]
    out_shape = jax.ShapeDtypeStruct((N, H), jnp.float32)
    out_specs = pl.BlockSpec((tm, H), lambda i, k: (i, 0))
    if emit_next:
        in_specs.append(pl.BlockSpec((H, H), lambda i, k: (0, 0)))  # W_{l+1} resident
        args.append(w_next)
        out_shape = (out_shape, jax.ShapeDtypeStruct((N, H), jnp.bfloat16))
        out_specs = (out_specs, pl.BlockSpec((tm, H), lambda i, k: (i, 0)))

    # TODO(synk): if a trace shows exposed DMA waits on the A_hat stream, add
    # pipeline_mode=pl.Buffered(3) to the A_hat BlockSpec only (skip on v7x).
    return pl.pallas_call(
        _make_aggregate_kernel(emit_next, feat_scale),
        out_shape=out_shape,
        grid_spec=pltpu.PrefetchScalarGridSpec(
            num_scalar_prefetch=0,
            grid=(N // tm, N // tk),
            in_specs=in_specs,
            out_specs=out_specs,
        ),
        compiler_params=pltpu.CompilerParams(
            dimension_semantics=("parallel", "arbitrary"),
            vmem_limit_bytes=vmem_limit),
        cost_estimate=ce,
    )(*args)


# ---------------------------------------------------------------------------
# Tiled encoder path (large graphs): 1 projection call + n_layers aggregations.
# ---------------------------------------------------------------------------
def gcn_encoder_forward_tiled(a_bf16, features, weights_bf16, biases,
                              *, max_tm=512, max_tk=1024):
    n_layers = len(weights_bf16)
    hw = gcn_project(features, weights_bf16[0], max_rows=max_tm)
    h = features
    for l in range(n_layers):
        # TODO(synk): training-mode dropout between layers not implemented
        # (eval / p=0 -> identity); with dropout it could not be fused into the
        # previous layer's projection epilogue.
        last = (l == n_layers - 1)
        if last:
            h = gcn_aggregate(a_bf16, hw, biases[l], features,
                              feat_scale=2.0,          # folds the final "+ features"
                              max_tm=max_tm, max_tk=max_tk)
        else:
            h, hw = gcn_aggregate(a_bf16, hw, biases[l], features,
                                  w_next=weights_bf16[l + 1], feat_scale=1.0,
                                  max_tm=max_tm, max_tk=max_tk)
    return h


# ---------------------------------------------------------------------------
# Fused encoder path: A_hat resident in VMEM, one pallas_call for all layers.
# ---------------------------------------------------------------------------
def _fused_encoder_kernel(a_ref, feat_ref, w_ref, b_ref, o_ref, *, n_layers):
    feat = feat_ref[...]
    a = a_ref[...]                          # bf16 (N, N), read from HBM once
    h = feat
    for l in range(n_layers):
        # TODO(synk): training-mode dropout (identity at eval / p=0).
        hw = jnp.dot(h.astype(jnp.bfloat16), w_ref[l],
                     preferred_element_type=jnp.float32).astype(jnp.bfloat16)
        z = jnp.dot(a, hw, preferred_element_type=jnp.float32) + b_ref[l]
        h = jnp.maximum(z, 0.0) + feat
    o_ref[...] = h + feat                   # module's final "+ features"


def gcn_encoder_forward_fused(a_bf16, features, w_stack_bf16, b_stack):
    N, H = features.shape
    n_layers = int(w_stack_bf16.shape[0])
    fused_bytes = N * N * 2 + n_layers * H * H * 2 + n_layers * H * 4 + 18 * N * H
    vmem_limit = int(min(max(32 << 20, 2 * fused_bytes), 48 << 20))
    ce = pl.CostEstimate(
        flops=n_layers * (2 * N * H * H + 2 * N * N * H), transcendentals=0,
        bytes_accessed=N * N * 2 + 2 * N * H * 4
        + n_layers * (H * H * 2 + H * 4))
    return pl.pallas_call(
        functools.partial(_fused_encoder_kernel, n_layers=n_layers),
        out_shape=jax.ShapeDtypeStruct((N, H), jnp.float32),
        compiler_params=pltpu.CompilerParams(vmem_limit_bytes=vmem_limit),
        cost_estimate=ce,
    )(a_bf16, features, w_stack_bf16, b_stack)


# ---------------------------------------------------------------------------
# GCN_Encoder forward (dispatcher)
# ---------------------------------------------------------------------------
def gcn_encoder_forward(a_hat, features, weights, biases, *, max_tm=512, max_tk=1024):
    N, H = features.shape
    n_layers = len(weights)
    # Cast A_hat ONCE: bf16 MXU operand, halves the dominant N^2 HBM stream.
    # TODO(synk): fp8 (v7x) / int8 (v5e,v6e) adjacency would halve it again;
    # skipped here pending per-generation accuracy validation.
    a_bf16 = a_hat.astype(jnp.bfloat16)
    w_bf16 = [w.astype(jnp.bfloat16) for w in weights]
    b_f32 = [b.reshape(1, H).astype(jnp.float32) for b in biases]

    fused_bytes = N * N * 2 + n_layers * H * H * 2 + n_layers * H * 4 + 18 * N * H
    if fused_bytes <= _FUSED_VMEM_BUDGET:
        return gcn_encoder_forward_fused(a_bf16, features,
                                         jnp.stack(w_bf16), jnp.stack(b_f32))
    return gcn_encoder_forward_tiled(a_bf16, features, w_bf16, b_f32,
                                     max_tm=max_tm, max_tk=max_tk)


def build_normalized_adjacency(key, n_nodes):
    """Random symmetric graph with self-loops, sym-normalized like DGL norm='both'."""
    a = (jax.random.uniform(key, (n_nodes, n_nodes)) < 0.3).astype(jnp.float32)
    a = jnp.maximum(a, a.T)
    a = jnp.maximum(a, jnp.eye(n_nodes))
    deg = jnp.sum(a, axis=1)
    d_inv_sqrt = 1.0 / jnp.sqrt(deg)
    return a * d_inv_sqrt[:, None] * d_inv_sqrt[None, :]


if __name__ == "__main__":
    n_nodes, n_hidden, n_layers = 512, 128, 2

    key = jax.random.PRNGKey(0)
    k_adj, k_feat, *k_lay = jax.random.split(key, 2 + 2 * n_layers)

    a_hat = build_normalized_adjacency(k_adj, n_nodes)
    features = jax.random.normal(k_feat, (n_nodes, n_hidden), dtype=jnp.float32)
    weights = [jax.random.normal(k_lay[2 * l], (n_hidden, n_hidden), dtype=jnp.float32)
               * (1.0 / jnp.sqrt(n_hidden)) for l in range(n_layers)]
    biases = [0.1 * jax.random.normal(k_lay[2 * l + 1], (1, n_hidden), dtype=jnp.float32)
              for l in range(n_layers)]

    # Pure f32 JAX reference of the same math (kernels feed the MXU bf16
    # operands with f32 accumulation -> loosened tolerance).
    h_ref = features
    for l in range(n_layers):
        z = a_hat @ h_ref @ weights[l] + biases[l]
        h_ref = jnp.maximum(z, 0.0) + features
    ref = h_ref + features

    # Dispatcher (fused resident-A path at this size).
    fwd = jax.jit(gcn_encoder_forward)
    out = jax.block_until_ready(fwd(a_hat, features, weights, biases))
    assert out.shape == (n_nodes, n_hidden)
    assert jnp.allclose(out, ref, atol=5e-2, rtol=5e-2), float(
        jnp.max(jnp.abs(out - ref)))

    # Also exercise the tiled large-graph path explicitly.
    fwd_tiled = jax.jit(functools.partial(gcn_encoder_forward_tiled,
                                          max_tm=512, max_tk=1024))
    out_t = jax.block_until_ready(
        fwd_tiled(a_hat.astype(jnp.bfloat16), features,
                  [w.astype(jnp.bfloat16) for w in weights],
                  [b.astype(jnp.float32) for b in biases]))
    assert out_t.shape == (n_nodes, n_hidden)
    assert jnp.allclose(out_t, ref, atol=5e-2, rtol=5e-2), float(
        jnp.max(jnp.abs(out_t - ref)))

    print("KERNEL_OK")
</pallas_src>

<mosaic_0001>
module attributes {stable_mosaic.version = 11 : i64} {
  func.func @_fused_encoder_kernel(%arg0: memref<512x512xbf16, #tpu.memory_space<vmem>>, %arg1: memref<512x128xf32, #tpu.memory_space<vmem>>, %arg2: memref<2x128x128xbf16, #tpu.memory_space<vmem>>, %arg3: memref<2x1x128xf32, #tpu.memory_space<vmem>>, %arg4: memref<512x128xf32, #tpu.memory_space<vmem>>) attributes {dimension_semantics = [], scalar_prefetch = 0 : i64, scratch_operands = 0 : i64, tpu.core_type = #tpu.core_type<tc>} {
    %c0 = arith.constant 0 : index
    %c0_0 = arith.constant 0 : index
    %0 = vector.load %arg1[%c0, %c0_0] : memref<512x128xf32, #tpu.memory_space<vmem>>, vector<512x128xf32>
    %c0_1 = arith.constant 0 : index
    %c0_2 = arith.constant 0 : index
    %1 = vector.load %arg0[%c0_1, %c0_2] : memref<512x512xbf16, #tpu.memory_space<vmem>>, vector<512x512xbf16>
    %2 = arith.truncf %0 : vector<512x128xf32> to vector<512x128xbf16>
    %c0_3 = arith.constant 0 : index
    %c0_4 = arith.constant 0 : index
    %c0_5 = arith.constant 0 : index
    %3 = vector.load %arg2[%c0_3, %c0_4, %c0_5] : memref<2x128x128xbf16, #tpu.memory_space<vmem>>, vector<1x128x128xbf16>
    %4 = vector.shape_cast %3 : vector<1x128x128xbf16> to vector<128x128xbf16>
    %cst = arith.constant dense<0.000000e+00> : vector<512x128xf32>
    %5 = tpu.matmul %2, %4, %cst {dimension_numbers = #tpu.dot_dimension_numbers<[1], [0], [0], [1], [0, 0, 1, 1], [], []>} : vector<512x128xbf16>, vector<128x128xbf16>, vector<512x128xf32> -> vector<512x128xf32>
    %6 = arith.truncf %5 : vector<512x128xf32> to vector<512x128xbf16>
    %cst_6 = arith.constant dense<0.000000e+00> : vector<512x128xf32>
    %7 = tpu.matmul %1, %6, %cst_6 {dimension_numbers = #tpu.dot_dimension_numbers<[1], [0], [0], [1], [0, 0, 1, 1], [], []>} : vector<512x512xbf16>, vector<512x128xbf16>, vector<512x128xf32> -> vector<512x128xf32>
    %c0_7 = arith.constant 0 : index
    %c0_8 = arith.constant 0 : index
    %c0_9 = arith.constant 0 : index
    %8 = vector.load %arg3[%c0_7, %c0_8, %c0_9] : memref<2x1x128xf32, #tpu.memory_space<vmem>>, vector<1x1x128xf32>
    %9 = vector.shape_cast %8 : vector<1x1x128xf32> to vector<1x128xf32>
    %10 = vector.broadcast %9 : vector<1x128xf32> to vector<512x128xf32>
    %11 = arith.addf %7, %10 : vector<512x128xf32>
    %cst_10 = arith.constant 0.000000e+00 : f32
    %12 = vector.broadcast %cst_10 : f32 to vector<512x128xf32>
    %13 = arith.maximumf %11, %12 : vector<512x128xf32>
    %14 = arith.addf %13, %0 : vector<512x128xf32>
    %15 = arith.truncf %14 : vector<512x128xf32> to vector<512x128xbf16>
    %c1 = arith.constant 1 : index
    %c0_11 = arith.constant 0 : index
    %c0_12 = arith.constant 0 : index
    %16 = vector.load %arg2[%c1, %c0_11, %c0_12] : memref<2x128x128xbf16, #tpu.memory_space<vmem>>, vector<1x128x128xbf16>
    %17 = vector.shape_cast %16 : vector<1x128x128xbf16> to vector<128x128xbf16>
    %cst_13 = arith.constant dense<0.000000e+00> : vector<512x128xf32>
    %18 = tpu.matmul %15, %17, %cst_13 {dimension_numbers = #tpu.dot_dimension_numbers<[1], [0], [0], [1], [0, 0, 1, 1], [], []>} : vector<512x128xbf16>, vector<128x128xbf16>, vector<512x128xf32> -> vector<512x128xf32>
    %19 = arith.truncf %18 : vector<512x128xf32> to vector<512x128xbf16>
    %cst_14 = arith.constant dense<0.000000e+00> : vector<512x128xf32>
    %20 = tpu.matmul %1, %19, %cst_14 {dimension_numbers = #tpu.dot_dimension_numbers<[1], [0], [0], [1], [0, 0, 1, 1], [], []>} : vector<512x512xbf16>, vector<512x128xbf16>, vector<512x128xf32> -> vector<512x128xf32>
    %c1_15 = arith.constant 1 : index
    %c0_16 = arith.constant 0 : index
    %c0_17 = arith.constant 0 : index
    %21 = vector.load %arg3[%c1_15, %c0_16, %c0_17] : memref<2x1x128xf32, #tpu.memory_space<vmem>>, vector<1x1x128xf32>
    %22 = vector.shape_cast %21 : vector<1x1x128xf32> to vector<1x128xf32>
    %23 = vector.broadcast %22 : vector<1x128xf32> to vector<512x128xf32>
    %24 = arith.addf %20, %23 : vector<512x128xf32>
    %cst_18 = arith.constant 0.000000e+00 : f32
    %25 = vector.broadcast %cst_18 : f32 to vector<512x128xf32>
    %26 = arith.maximumf %24, %25 : vector<512x128xf32>
    %27 = arith.addf %26, %0 : vector<512x128xf32>
    %28 = arith.addf %27, %0 : vector<512x128xf32>
    %c0_19 = arith.constant 0 : index
    %c0_20 = arith.constant 0 : index
    %29 = vector.load %arg4[%c0_19, %c0_20] : memref<512x128xf32, #tpu.memory_space<vmem>>, vector<512x128xf32>
    tpu.vector_store %arg4[%c0_19, %c0_20], %28 {strides = array<i32>} : memref<512x128xf32, #tpu.memory_space<vmem>>, vector<512x128xf32>,
    return
  }
}

</mosaic_0001>

<llo_original>
// kernel: gcn_encoder_forward.1
$region0: #{gcn_encoder_forward.1}
  #allocation0 [shape = 'u32[]', space=smem, size = 0x4, offset = 0x4, fixed_abs, tag = 'smem constant byte address 0x4 - core index']
  #allocation1 [shape = 'u32[144,128]{1,0:T(1,128)}', space=vmem, size = 0x12000, scoped, tag = 'internal scratch']
  %s0 = inlined_call_operand.vmem [shape: bf16[512,512], index: 0, kind: input, shape index: {}]
  %s1 = inlined_call_operand.vmem [shape: f32[512,128], index: 1, kind: input, shape index: {}]
  %s2 = inlined_call_operand.vmem [shape: bf16[2,128,128], index: 2, kind: input, shape index: {}]
  %s3 = inlined_call_operand.vmem [shape: f32[2,1,128], index: 3, kind: input, shape index: {}]
  %s4 = inlined_call_operand.hbm [shape: f32[512,128], index: 4, kind: output, shape index: {}]
  %s5 = sld [smem:[#allocation0]]
  $region26: #{gcn_encoder_forward.1} parent=0
    _
  %s7 = ssub.s32 1, %s5
  %s8 = scalar_select 0, %s7, %s5
  $region1: #{gcn_encoder_forward.1} parent=0
    #allocation2 [shape = 'u8[262144]{0}', space=vmem, size = 0x40000, scoped, tag = 'output window, operand 0, single buffered']
    #allocation3 [shape = 's32[1]{0}', space=sflag, size = 0x4, scoped, tag = 'scoped memory for gcn_encoder_forward.1']
    %9 = vsyncpa [#allocation3], 0
    // Predicated region
    $region2: #{gcn_encoder_forward.1} parent=1 // pred_check
      _
    $region3: #{gcn_encoder_forward.1} parent=1 // pred_check_branch
      %11 = sbr.rel (0) target = $region5
    $region4: #{gcn_encoder_forward.1} parent=1 // pred_region
      _
    $region5: #{gcn_encoder_forward.1} parent=1 // pred_fallthru
      _
    // Predicated region
    $region6: #{gcn_encoder_forward.1} parent=1 // pred_check
      _
    $region7: #{gcn_encoder_forward.1} parent=1 // pred_check_branch
      %13 = sbr.rel (0) target = $region9
    $region8: #{gcn_encoder_forward.1} parent=1 // pred_region
      _
    $region9: #{gcn_encoder_forward.1} parent=1 // pred_fallthru
      _
    // Predicated region
    $region10: #{gcn_encoder_forward.1} parent=1 // pred_check
      _
    $region11: #{gcn_encoder_forward.1} parent=1 // pred_check_branch
      %15 = sbr.rel (0) target = $region13
    $region12: #{gcn_encoder_forward.1} parent=1 // pred_region
      _
    $region13: #{gcn_encoder_forward.1} parent=1 // pred_fallthru
      _
    // Predicated region
    $region14: #{gcn_encoder_forward.1} parent=1 // pred_check
      _
    $region15: #{gcn_encoder_forward.1} parent=1 // pred_check_branch
      %17 = sbr.rel (0) target = $region17
    $region16: #{gcn_encoder_forward.1} parent=1 // pred_region
      _
    $region17: #{gcn_encoder_forward.1} parent=1 // pred_fallthru
      _
    %v19 = vld [vmem:[%s1] sm:$0xff]
    %v20 = vld [vmem:[%s1 + $0x8] sm:$0xff]
    %v21 = vld [vmem:[%s1 + $0x10] sm:$0xff]
    %v22 = vld [vmem:[%s1 + $0x18] sm:$0xff]
    %v23 = vld [vmem:[%s1 + $0x20] sm:$0xff]
    %v24 = vld [vmem:[%s1 + $0x28] sm:$0xff]
    %v25 = vld [vmem:[%s1 + $0x30] sm:$0xff]
    %v26 = vld [vmem:[%s1 + $0x38] sm:$0xff]
    %v27 = vld [vmem:[%s1 + $0x40] sm:$0xff]
    %v28 = vld [vmem:[%s1 + $0x48] sm:$0xff]
    %v29 = vld [vmem:[%s1 + $0x50] sm:$0xff]
    %v30 = vld [vmem:[%s1 + $0x58] sm:$0xff]
    %v31 = vld [vmem:[%s1 + $0x60] sm:$0xff]
    %v32 = vld [vmem:[%s1 + $0x68] sm:$0xff]
    %v33 = vld [vmem:[%s1 + $0x70] sm:$0xff]
    %v34 = vld [vmem:[%s1 + $0x78] sm:$0xff]
    %v35 = vld [vmem:[%s1 + $0x80] sm:$0xff]
    %v36 = vld [vmem:[%s1 + $0x88] sm:$0xff]
    %v37 = vld [vmem:[%s1 + $0x90] sm:$0xff]
    %v38 = vld [vmem:[%s1 + $0x98] sm:$0xff]
    %v39 = vld [vmem:[%s1 + $0xa0] sm:$0xff]
    %v40 = vld [vmem:[%s1 + $0xa8] sm:$0xff]
    %v41 = vld [vmem:[%s1 + $0xb0] sm:$0xff]
    %v42 = vld [vmem:[%s1 + $0xb8] sm:$0xff]
    %v43 = vld [vmem:[%s1 + $0xc0] sm:$0xff]
    %v44 = vld [vmem:[%s1 + $0xc8] sm:$0xff]
    %v45 = vld [vmem:[%s1 + $0xd0] sm:$0xff]
    %v46 = vld [vmem:[%s1 + $0xd8] sm:$0xff]
    %v47 = vld [vmem:[%s1 + $0xe0] sm:$0xff]
    %v48 = vld [vmem:[%s1 + $0xe8] sm:$0xff]
    %v49 = vld [vmem:[%s1 + $0xf0] sm:$0xff]
    %v50 = vld [vmem:[%s1 + $0xf8] sm:$0xff]
    %v51 = vld [vmem:[%s1 + $0x100] sm:$0xff]
    %v52 = vld [vmem:[%s1 + $0x108] sm:$0xff]
    %v53 = vld [vmem:[%s1 + $0x110] sm:$0xff]
    %v54 = vld [vmem:[%s1 + $0x118] sm:$0xff]
    %v55 = vld [vmem:[%s1 + $0x120] sm:$0xff]
    %v56 = vld [vmem:[%s1 + $0x128] sm:$0xff]
    %v57 = vld [vmem:[%s1 + $0x130] sm:$0xff]
    %v58 = vld [vmem:[%s1 + $0x138] sm:$0xff]
    %v59 = vld [vmem:[%s1 + $0x140] sm:$0xff]
    %v60 = vld [vmem:[%s1 + $0x148] sm:$0xff]
    %v61 = vld [vmem:[%s1 + $0x150] sm:$0xff]
    %v62 = vld [vmem:[%s1 + $0x158] sm:$0xff]
    %v63 = vld [vmem:[%s1 + $0x160] sm:$0xff]
    %v64 = vld [vmem:[%s1 + $0x168] sm:$0xff]
    %v65 = vld [vmem:[%s1 + $0x170] sm:$0xff]
    %v66 = vld [vmem:[%s1 + $0x178] sm:$0xff]
    %v67 = vld [vmem:[%s1 + $0x180] sm:$0xff]
    %v68 = vld [vmem:[%s1 + $0x188] sm:$0xff]
    %v69 = vld [vmem:[%s1 + $0x190] sm:$0xff]
    %v70 = vld [vmem:[%s1 + $0x198] sm:$0xff]
    %v71 = vld [vmem:[%s1 + $0x1a0] sm:$0xff]
    %v72 = vld [vmem:[%s1 + $0x1a8] sm:$0xff]
    %v73 = vld [vmem:[%s1 + $0x1b0] sm:$0xff]
    %v74 = vld [vmem:[%s1 + $0x1b8] sm:$0xff]
    %v75 = vld [vmem:[%s1 + $0x1c0] sm:$0xff]
    %v76 = vld [vmem:[%s1 + $0x1c8] sm:$0xff]
    %v77 = vld [vmem:[%s1 + $0x1d0] sm:$0xff]
    %v78 = vld [vmem:[%s1 + $0x1d8] sm:$0xff]
    %v79 = vld [vmem:[%s1 + $0x1e0] sm:$0xff]
    %v80 = vld [vmem:[%s1 + $0x1e8] sm:$0xff]
    %v81 = vld [vmem:[%s1 + $0x1f0] sm:$0xff]
    %v82 = vld [vmem:[%s1 + $0x1f8] sm:$0xff]
    %v83 = vld [vmem:[%s0] sm:$0xff]
    %v84 = vld [vmem:[%s0 + $0x8] sm:$0xff]
    %v85 = vld [vmem:[%s0 + $0x10] sm:$0xff]
    %v86 = vld [vmem:[%s0 + $0x18] sm:$0xff]
    %v87 = vld [vmem:[%s0 + $0x20] sm:$0xff]
    %v88 = vld [vmem:[%s0 + $0x28] sm:$0xff]
    %v89 = vld [vmem:[%s0 + $0x30] sm:$0xff]
    %v90 = vld [vmem:[%s0 + $0x38] sm:$0xff]
    %v91 = vld [vmem:[%s0 + $0x40] sm:$0xff]
    %v92 = vld [vmem:[%s0 + $0x48] sm:$0xff]
    %v93 = vld [vmem:[%s0 + $0x50] sm:$0xff]
    %v94 = vld [vmem:[%s0 + $0x58] sm:$0xff]
    %v95 = vld [vmem:[%s0 + $0x60] sm:$0xff]
    %v96 = vld [vmem:[%s0 + $0x68] sm:$0xff]
    %v97 = vld [vmem:[%s0 + $0x70] sm:$0xff]
    %v98 = vld [vmem:[%s0 + $0x78] sm:$0xff]
    %v99 = vld [vmem:[%s0 + $0x80] sm:$0xff]
    %v100 = vld [vmem:[%s0 + $0x88] sm:$0xff]
    %v101 = vld [vmem:[%s0 + $0x90] sm:$0xff]
    %v102 = vld [vmem:[%s0 + $0x98] sm:$0xff]
    %v103 = vld [vmem:[%s0 + $0xa0] sm:$0xff]
    %v104 = vld [vmem:[%s0 + $0xa8] sm:$0xff]
    %v105 = vld [vmem:[%s0 + $0xb0] sm:$0xff]
    %v106 = vld [vmem:[%s0 + $0xb8] sm:$0xff]
    %v107 = vld [vmem:[%s0 + $0xc0] sm:$0xff]
    %v108 = vld [vmem:[%s0 + $0xc8] sm:$0xff]
    %v109 = vld [vmem:[%s0 + $0xd0] sm:$0xff]
    %v110 = vld [vmem:[%s0 + $0xd8] sm:$0xff]
    %v111 = vld [vmem:[%s0 + $0xe0] sm:$0xff]
    %v112 = vld [vmem:[%s0 + $0xe8] sm:$0xff]
    %v113 = vld [vmem:[%s0 + $0xf0] sm:$0xff]
    %v114 = vld [vmem:[%s0 + $0xf8] sm:$0xff]
    %v115 = vld [vmem:[%s0 + $0x100] sm:$0xff]
    %v116 = vld [vmem:[%s0 + $0x108] sm:$0xff]
    %v117 = vld [vmem:[%s0 + $0x110] sm:$0xff]
    %v118 = vld [vmem:[%s0 + $0x118] sm:$0xff]
    %v119 = vld [vmem:[%s0 + $0x120] sm:$0xff]
    %v120 = vld [vmem:[%s0 + $0x128] sm:$0xff]
    %v121 = vld [vmem:[%s0 + $0x130] sm:$0xff]
    %v122 = vld [vmem:[%s0 + $0x138] sm:$0xff]
    %v123 = vld [vmem:[%s0 + $0x140] sm:$0xff]
    %v124 = vld [vmem:[%s0 + $0x148] sm:$0xff]
    %v125 = vld [vmem:[%s0 + $0x150] sm:$0xff]
    %v126 = vld [vmem:[%s0 + $0x158] sm:$0xff]
    %v127 = vld [vmem:[%s0 + $0x160] sm:$0xff]
    %v128 = vld [vmem:[%s0 + $0x168] sm:$0xff]
    %v129 = vld [vmem:[%s0 + $0x170] sm:$0xff]
    %v130 = vld [vmem:[%s0 + $0x178] sm:$0xff]
    %v131 = vld [vmem:[%s0 + $0x180] sm:$0xff]
    %v132 = vld [vmem:[%s0 + $0x188] sm:$0xff]
    %v133 = vld [vmem:[%s0 + $0x190] sm:$0xff]
    %v134 = vld [vmem:[%s0 + $0x198] sm:$0xff]
    %v135 = vld [vmem:[%s0 + $0x1a0] sm:$0xff]
    %v136 = vld [vmem:[%s0 + $0x1a8] sm:$0xff]
    %v137 = vld [vmem:[%s0 + $0x1b0] sm:$0xff]
    %v138 = vld [vmem:[%s0 + $0x1b8] sm:$0xff]
    %v139 = vld [vmem:[%s0 + $0x1c0] sm:$0xff]
    %v140 = vld [vmem:[%s0 + $0x1c8] sm:$0xff]
    %v141 = vld [vmem:[%s0 + $0x1d0] sm:$0xff]
    %v142 = vld [vmem:[%s0 + $0x1d8] sm:$0xff]
    %v143 = vld [vmem:[%s0 + $0x1e0] sm:$0xff]
    %v144 = vld [vmem:[%s0 + $0x1e8] sm:$0xff]
    %v145 = vld [vmem:[%s0 + $0x1f0] sm:$0xff]
    %v146 = vld [vmem:[%s0 + $0x1f8] sm:$0xff]
    %v147 = vld [vmem:[%s0 + $0x200] sm:$0xff]
    %v148 = vld [vmem:[%s0 + $0x208] sm:$0xff]
    %v149 = vld [vmem:[%s0 + $0x210] sm:$0xff]
    %v150 = vld [vmem:[%s0 + $0x218] sm:$0xff]
    %v151 = vld [vmem:[%s0 + $0x220] sm:$0xff]
    %v152 = vld [vmem:[%s0 + $0x228] sm:$0xff]
    %v153 = vld [vmem:[%s0 + $0x230] sm:$0xff]
    %v154 = vld [vmem:[%s0 + $0x238] sm:$0xff]
    %v155 = vld [vmem:[%s0 + $0x240] sm:$0xff]
    %v156 = vld [vmem:[%s0 + $0x248] sm:$0xff]
    %v157 = vld [vmem:[%s0 + $0x250] sm:$0xff]
    %v158 = vld [vmem:[%s0 + $0x258] sm:$0xff]
    %v159 = vld [vmem:[%s0 + $0x260] sm:$0xff]
    %v160 = vld [vmem:[%s0 + $0x268] sm:$0xff]
    %v161 = vld [vmem:[%s0 + $0x270] sm:$0xff]
    %v162 = vld [vmem:[%s0 + $0x278] sm:$0xff]
    %v163 = vld [vmem:[%s0 + $0x280] sm:$0xff]
    %v164 = vld [vmem:[%s0 + $0x288] sm:$0xff]
    %v165 = vld [vmem:[%s0 + $0x290] sm:$0xff]
    %v166 = vld [vmem:[%s0 + $0x298] sm:$0xff]
    %v167 = vld [vmem:[%s0 + $0x2a0] sm:$0xff]
    %v168 = vld [vmem:[%s0 + $0x2a8] sm:$0xff]
    %v169 = vld [vmem:[%s0 + $0x2b0] sm:$0xff]
    %v170 = vld [vmem:[%s0 + $0x2b8] sm:$0xff]
    %v171 = vld [vmem:[%s0 + $0x2c0] sm:$0xff]
    %v172 = vld [vmem:[%s0 + $0x2c8] sm:$0xff]
    %v173 = vld [vmem:[%s0 + $0x2d0] sm:$0xff]
    %v174 = vld [vmem:[%s0 + $0x2d8] sm:$0xff]
    %v175 = vld [vmem:[%s0 + $0x2e0] sm:$0xff]
    %v176 = vld [vmem:[%s0 + $0x2e8] sm:$0xff]
    %v177 = vld [vmem:[%s0 + $0x2f0] sm:$0xff]
    %v178 = vld [vmem:[%s0 + $0x2f8] sm:$0xff]
    %v179 = vld [vmem:[%s0 + $0x300] sm:$0xff]
    %v180 = vld [vmem:[%s0 + $0x308] sm:$0xff]
    %v181 = vld [vmem:[%s0 + $0x310] sm:$0xff]
    %v182 = vld [vmem:[%s0 + $0x318] sm:$0xff]
    %v183 = vld [vmem:[%s0 + $0x320] sm:$0xff]
    %v184 = vld [vmem:[%s0 + $0x328] sm:$0xff]
    %v185 = vld [vmem:[%s0 + $0x330] sm:$0xff]
    %v186 = vld [vmem:[%s0 + $0x338] sm:$0xff]
    %v187 = vld [vmem:[%s0 + $0x340] sm:$0xff]
    %v188 = vld [vmem:[%s0 + $0x348] sm:$0xff]
    %v189 = vld [vmem:[%s0 + $0x350] sm:$0xff]
    %v190 = vld [vmem:[%s0 + $0x358] sm:$0xff]
    %v191 = vld [vmem:[%s0 + $0x360] sm:$0xff]
    %v192 = vld [vmem:[%s0 + $0x368] sm:$0xff]
    %v193 = vld [vmem:[%s0 + $0x370] sm:$0xff]
    %v194 = vld [vmem:[%s0 + $0x378] sm:$0xff]
    %v195 = vld [vmem:[%s0 + $0x380] sm:$0xff]
    %v196 = vld [vmem:[%s0 + $0x388] sm:$0xff]
    %v197 = vld [vmem:[%s0 + $0x390] sm:$0xff]
    %v198 = vld [vmem:[%s0 + $0x398] sm:$0xff]
    %v199 = vld [vmem:[%s0 + $0x3a0] sm:$0xff]
    %v200 = vld [vmem:[%s0 + $0x3a8] sm:$0xff]
    %v201 = vld [vmem:[%s0 + $0x3b0] sm:$0xff]
    %v202 = vld [vmem:[%s0 + $0x3b8] sm:$0xff]
    %v203 = vld [vmem:[%s0 + $0x3c0] sm:$0xff]
    %v204 = vld [vmem:[%s0 + $0x3c8] sm:$0xff]
    %v205 = vld [vmem:[%s0 + $0x3d0] sm:$0xff]
    %v206 = vld [vmem:[%s0 + $0x3d8] sm:$0xff]
    %v207 = vld [vmem:[%s0 + $0x3e0] sm:$0xff]
    %v208 = vld [vmem:[%s0 + $0x3e8] sm:$0xff]
    %v209 = vld [vmem:[%s0 + $0x3f0] sm:$0xff]
    %v210 = vld [vmem:[%s0 + $0x3f8] sm:$0xff]
    %v211 = vpack.c.bf16 %v20, %v19
    %v212 = vpack.c.bf16 %v22, %v21
    %v213 = vpack.c.bf16 %v24, %v23
    %v214 = vpack.c.bf16 %v26, %v25
    %v215 = vpack.c.bf16 %v28, %v27
    %v216 = vpack.c.bf16 %v30, %v29
    %v217 = vpack.c.bf16 %v32, %v31
    %v218 = vpack.c.bf16 %v34, %v33
    %v219 = vpack.c.bf16 %v36, %v35
    %v220 = vpack.c.bf16 %v38, %v37
    %v221 = vpack.c.bf16 %v40, %v39
    %v222 = vpack.c.bf16 %v42, %v41
    %v223 = vpack.c.bf16 %v44, %v43
    %v224 = vpack.c.bf16 %v46, %v45
    %v225 = vpack.c.bf16 %v48, %v47
    %v226 = vpack.c.bf16 %v50, %v49
    %v227 = vpack.c.bf16 %v52, %v51
    %v228 = vpack.c.bf16 %v54, %v53
    %v229 = vpack.c.bf16 %v56, %v55
    %v230 = vpack.c.bf16 %v58, %v57
    %v231 = vpack.c.bf16 %v60, %v59
    %v232 = vpack.c.bf16 %v62, %v61
    %v233 = vpack.c.bf16 %v64, %v63
    %v234 = vpack.c.bf16 %v66, %v65
    %v235 = vpack.c.bf16 %v68, %v67
    %v236 = vpack.c.bf16 %v70, %v69
    %v237 = vpack.c.bf16 %v72, %v71
    %v238 = vpack.c.bf16 %v74, %v73
    %v239 = vpack.c.bf16 %v76, %v75
    %v240 = vpack.c.bf16 %v78, %v77
    %v241 = vpack.c.bf16 %v80, %v79
    %v242 = vpack.c.bf16 %v82, %v81
    %v243 = vld [vmem:[%s2] sm:$0xf]
    %v244 = vld [vmem:[%s2 + $0x4] sm:$0xf]
    %v245 = vld [vmem:[%s2 + $0x8] sm:$0xf]
    %v246 = vld [vmem:[%s2 + $0xc] sm:$0xf]
    %v247 = vld [vmem:[%s2 + $0x10] sm:$0xf]
    %v248 = vld [vmem:[%s2 + $0x14] sm:$0xf]
    %v249 = vld [vmem:[%s2 + $0x18] sm:$0xf]
    %v250 = vld [vmem:[%s2 + $0x1c] sm:$0xf]
    %v251 = vld [vmem:[%s2 + $0x20] sm:$0xf]
    %v252 = vld [vmem:[%s2 + $0x24] sm:$0xf]
    %v253 = vld [vmem:[%s2 + $0x28] sm:$0xf]
    %v254 = vld [vmem:[%s2 + $0x2c] sm:$0xf]
    %v255 = vld [vmem:[%s2 + $0x30] sm:$0xf]
    %v256 = vld [vmem:[%s2 + $0x34] sm:$0xf]
    %v257 = vld [vmem:[%s2 + $0x38] sm:$0xf]
    %v258 = vld [vmem:[%s2 + $0x3c] sm:$0xf]
    %v275 = vunpack.c.l.b16 %v243
    %v276 = vunpack.c.l.b16 %v244
    %v277 = vunpack.c.l.b16 %v245
    %v278 = vunpack.c.l.b16 %v246
    %v279 = vunpack.c.l.b16 %v247
    %v280 = vunpack.c.l.b16 %v248
    %v281 = vunpack.c.l.b16 %v249
    %v282 = vunpack.c.l.b16 %v250
    %v283 = vunpack.c.l.b16 %v251
    %v284 = vunpack.c.l.b16 %v252
    %v285 = vunpack.c.l.b16 %v253
    %v286 = vunpack.c.l.b16 %v254
    %v287 = vunpack.c.l.b16 %v255
    %v288 = vunpack.c.l.b16 %v256
    %v289 = vunpack.c.l.b16 %v257
    %v290 = vunpack.c.l.b16 %v258
    %v291 = vpack.c.b16 %v276, %v275
    %v292 = vpack.c.b16 %v278, %v277
    %v293 = vpack.c.b16 %v280, %v279
    %v294 = vpack.c.b16 %v282, %v281
    %v295 = vpack.c.b16 %v284, %v283
    %v296 = vpack.c.b16 %v286, %v285
    %v297 = vpack.c.b16 %v288, %v287
    %v298 = vpack.c.b16 %v290, %v289
    %307 = vmatprep.subr.bf16.mxu0 0
    %308 = vmatpush1.bf16.msra.mxu0 %v298
    %309 = vmatprep.subr.bf16.mxu0 0
    %310 = vmatpush1.bf16.msra.mxu0 %v297
    %311 = vmatprep.subr.bf16.mxu0 0
    %312 = vmatpush1.bf16.msra.mxu0 %v296
    %313 = vmatprep.subr.bf16.mxu0 0
    %314 = vmatpush1.bf16.msra.mxu0 %v295
    %315 = vmatprep.subr.bf16.mxu0 0
    %316 = vmatpush1.bf16.msra.mxu0 %v294
    %317 = vmatprep.subr.bf16.mxu0 0
    %318 = vmatpush1.bf16.msra.mxu0 %v293
    %319 = vmatprep.subr.bf16.mxu0 0
    %320 = vmatpush1.bf16.msra.mxu0 %v292
    %321 = vmatprep.subr.bf16.mxu0 0
    %322 = vmatpush1.bf16.msra.mxu0 %v291
    %323 = vmatprep.subr.bf16.mxu0 0
    %324 = vmatpush2.bf16.msra.mxu0 0
    %325 = vmatprep.subr.bf16.mxu0 0
    %326 = vmatpush2.bf16.msra.mxu0 0
    %327 = vmatprep.subr.bf16.mxu0 0
    %328 = vmatpush2.bf16.msra.mxu0 0
    %329 = vmatprep.subr.bf16.mxu0 0
    %330 = vmatpush2.bf16.msra.mxu0 0
    %331 = vmatprep.subr.bf16.mxu0 0
    %332 = vmatpush2.bf16.msra.mxu0 0
    %333 = vmatprep.subr.bf16.mxu0 0
    %334 = vmatpush2.bf16.msra.mxu0 0
    %335 = vmatprep.subr.bf16.mxu0 0
    %336 = vmatpush2.bf16.msra.mxu0 0
    %337 = vmatprep.subr.bf16.mxu0 0
    %338 = vmatpush2.bf16.msra.mxu0 0
    %339 = vmatprep.mubr.bf16.mxu0 0
    %340 = vmatmul.mubr.bf16.gmra.mxu0 %v211
    %v341 = vpop.f32.mrf.mxu0
    %v342 = vadd.f32 0.0, %v341
    %v343 = vpop.f32.mrf.mxu0
    %v344 = vpop.f32.mrf.mxu0
    %v345 = vadd.f32 0.0, %v344
    %v346 = vpop.f32.mrf.mxu0
    %347 = vmatprep.mubr.bf16.mxu0 0
    %348 = vmatmul.mubr.bf16.gmra.mxu0 %v212
    %v349 = vpop.f32.mrf.mxu0
    %v350 = vadd.f32 0.0, %v349
    %v351 = vpop.f32.mrf.mxu0
    %v352 = vpop.f32.mrf.mxu0
    %v353 = vadd.f32 0.0, %v352
    %v354 = vpop.f32.mrf.mxu0
    %355 = vmatprep.mubr.bf16.mxu0 0
    %356 = vmatmul.mubr.bf16.gmra.mxu0 %v213
    %v357 = vpop.f32.mrf.mxu0
    %v358 = vadd.f32 0.0, %v357
    %v359 = vpop.f32.mrf.mxu0
    %v360 = vpop.f32.mrf.mxu0
    %v361 = vadd.f32 0.0, %v360
    %v362 = vpop.f32.mrf.mxu0
    %363 = vmatprep.mubr.bf16.mxu0 0
    %364 = vmatmul.mubr.bf16.gmra.mxu0 %v214
    %v365 = vpop.f32.mrf.mxu0
    %v366 = vadd.f32 0.0, %v365
    %v367 = vpop.f32.mrf.mxu0
    %v368 = vpop.f32.mrf.mxu0
    %v369 = vadd.f32 0.0, %v368
    %v370 = vpop.f32.mrf.mxu0
    %371 = vmatprep.mubr.bf16.mxu0 0
    %372 = vmatmul.mubr.bf16.gmra.mxu0 %v215
    %v373 = vpop.f32.mrf.mxu0
    %v374 = vadd.f32 0.0, %v373
    %v375 = vpop.f32.mrf.mxu0
    %v376 = vpop.f32.mrf.mxu0
    %v377 = vadd.f32 0.0, %v376
    %v378 = vpop.f32.mrf.mxu0
    %379 = vmatprep.mubr.bf16.mxu0 0
    %380 = vmatmul.mubr.bf16.gmra.mxu0 %v216
    %v381 = vpop.f32.mrf.mxu0
    %v382 = vadd.f32 0.0, %v381
    %v383 = vpop.f32.mrf.mxu0
    %v384 = vpop.f32.mrf.mxu0
    %v385 = vadd.f32 0.0, %v384
    %v386 = vpop.f32.mrf.mxu0
    %387 = vmatprep.mubr.bf16.mxu0 0
    %388 = vmatmul.mubr.bf16.gmra.mxu0 %v217
    %v389 = vpop.f32.mrf.mxu0
    %v390 = vadd.f32 0.0, %v389
    %v391 = vpop.f32.mrf.mxu0
    %v392 = vpop.f32.mrf.mxu0
    %v393 = vadd.f32 0.0, %v392
    %v394 = vpop.f32.mrf.mxu0
    %395 = vmatprep.mubr.bf16.mxu0 0
    %396 = vmatmul.mubr.bf16.gmra.mxu0 %v218
    %v397 = vpop.f32.mrf.mxu0
    %v398 = vadd.f32 0.0, %v397
    %v399 = vpop.f32.mrf.mxu0
    %v400 = vpop.f32.mrf.mxu0
    %v401 = vadd.f32 0.0, %v400
    %v402 = vpop.f32.mrf.mxu0
    %403 = vmatprep.mubr.bf16.mxu0 0
    %404 = vmatmul.mubr.bf16.gmra.mxu0 %v219
    %v405 = vpop.f32.mrf.mxu0
    %v406 = vadd.f32 0.0, %v405
    %v407 = vpop.f32.mrf.mxu0
    %v408 = vpop.f32.mrf.mxu0
    %v409 = vadd.f32 0.0, %v408
    %v410 = vpop.f32.mrf.mxu0
    %411 = vmatprep.mubr.bf16.mxu0 0
    %412 = vmatmul.mubr.bf16.gmra.mxu0 %v220
    %v413 = vpop.f32.mrf.mxu0
    %v414 = vadd.f32 0.0, %v413
    %v415 = vpop.f32.mrf.mxu0
    %v416 = vpop.f32.mrf.mxu0
    %v417 = vadd.f32 0.0, %v416
    %v418 = vpop.f32.mrf.mxu0
    %419 = vmatprep.mubr.bf16.mxu0 0
    %420 = vmatmul.mubr.bf16.gmra.mxu0 %v221
    %v421 = vpop.f32.mrf.mxu0
    %v422 = vadd.f32 0.0, %v421
    %v423 = vpop.f32.mrf.mxu0
    %v424 = vpop.f32.mrf.mxu0
    %v425 = vadd.f32 0.0, %v424
    %v426 = vpop.f32.mrf.mxu0
    %427 = vmatprep.mubr.bf16.mxu0 0
    %428 = vmatmul.mubr.bf16.gmra.mxu0 %v222
    %v429 = vpop.f32.mrf.mxu0
    %v430 = vadd.f32 0.0, %v429
    %v431 = vpop.f32.mrf.mxu0
    %v432 = vpop.f32.mrf.mxu0
    %v433 = vadd.f32 0.0, %v432
    %v434 = vpop.f32.mrf.mxu0
    %435 = vmatprep.mubr.bf16.mxu0 0
    %436 = vmatmul.mubr.bf16.gmra.mxu0 %v223
    %v437 = vpop.f32.mrf.mxu0
    %v438 = vadd.f32 0.0, %v437
    %v439 = vpop.f32.mrf.mxu0
    %v440 = vpop.f32.mrf.mxu0
    %v441 = vadd.f32 0.0, %v440
    %v442 = vpop.f32.mrf.mxu0
    %443 = vmatprep.mubr.bf16.mxu0 0
    %444 = vmatmul.mubr.bf16.gmra.mxu0 %v224
    %v445 = vpop.f32.mrf.mxu0
    %v446 = vadd.f32 0.0, %v445
    %v447 = vpop.f32.mrf.mxu0
    %v448 = vpop.f32.mrf.mxu0
    %v449 = vadd.f32 0.0, %v448
    %v450 = vpop.f32.mrf.mxu0
    %451 = vmatprep.mubr.bf16.mxu0 0
    %452 = vmatmul.mubr.bf16.gmra.mxu0 %v225
    %v453 = vpop.f32.mrf.mxu0
    %v454 = vadd.f32 0.0, %v453
    %v455 = vpop.f32.mrf.mxu0
    %v456 = vpop.f32.mrf.mxu0
    %v457 = vadd.f32 0.0, %v456
    %v458 = vpop.f32.mrf.mxu0
    %459 = vmatprep.mubr.bf16.mxu0 0
    %460 = vmatmul.mubr.bf16.gmra.mxu0 %v226
    %v461 = vpop.f32.mrf.mxu0
    %v462 = vadd.f32 0.0, %v461
    %v463 = vpop.f32.mrf.mxu0
    %v464 = vpop.f32.mrf.mxu0
    %v465 = vadd.f32 0.0, %v464
    %v466 = vpop.f32.mrf.mxu0
    %467 = vmatprep.mubr.bf16.mxu0 0
    %468 = vmatmul.mubr.bf16.gmra.mxu0 %v227
    %v469 = vpop.f32.mrf.mxu0
    %v470 = vadd.f32 0.0, %v469
    %v471 = vpop.f32.mrf.mxu0
    %v472 = vpop.f32.mrf.mxu0
    %v473 = vadd.f32 0.0, %v472
    %v474 = vpop.f32.mrf.mxu0
    %475 = vmatprep.mubr.bf16.mxu0 0
    %476 = vmatmul.mubr.bf16.gmra.mxu0 %v228
    %v477 = vpop.f32.mrf.mxu0
    %v478 = vadd.f32 0.0, %v477
    %v479 = vpop.f32.mrf.mxu0
    %v480 = vpop.f32.mrf.mxu0
    %v481 = vadd.f32 0.0, %v480
    %v482 = vpop.f32.mrf.mxu0
    %483 = vmatprep.mubr.bf16.mxu0 0
    %484 = vmatmul.mubr.bf16.gmra.mxu0 %v229
    %v485 = vpop.f32.mrf.mxu0
    %v486 = vadd.f32 0.0, %v485
    %v487 = vpop.f32.mrf.mxu0
    %v488 = vpop.f32.mrf.mxu0
    %v489 = vadd.f32 0.0, %v488
    %v490 = vpop.f32.mrf.mxu0
    %491 = vmatprep.mubr.bf16.mxu0 0
    %492 = vmatmul.mubr.bf16.gmra.mxu0 %v230
    %v493 = vpop.f32.mrf.mxu0
    %v494 = vadd.f32 0.0, %v493
    %v495 = vpop.f32.mrf.mxu0
    %v496 = vpop.f32.mrf.mxu0
    %v497 = vadd.f32 0.0, %v496
    %v498 = vpop.f32.mrf.mxu0
    %499 = vmatprep.mubr.bf16.mxu0 0
    %500 = vmatmul.mubr.bf16.gmra.mxu0 %v231
    %v501 = vpop.f32.mrf.mxu0
    %v502 = vadd.f32 0.0, %v501
    %v503 = vpop.f32.mrf.mxu0
    %v504 = vpop.f32.mrf.mxu0
    %v505 = vadd.f32 0.0, %v504
    %v506 = vpop.f32.mrf.mxu0
    %507 = vmatprep.mubr.bf16.mxu0 0
    %508 = vmatmul.mubr.bf16.gmra.mxu0 %v232
    %v509 = vpop.f32.mrf.mxu0
    %v510 = vadd.f32 0.0, %v509
    %v511 = vpop.f32.mrf.mxu0
    %v512 = vpop.f32.mrf.mxu0
    %v513 = vadd.f32 0.0, %v512
    %v514 = vpop.f32.mrf.mxu0
    %515 = vmatprep.mubr.bf16.mxu0 0
    %516 = vmatmul.mubr.bf16.gmra.mxu0 %v233
    %v517 = vpop.f32.mrf.mxu0
    %v518 = vadd.f32 0.0, %v517
    %v519 = vpop.f32.mrf.mxu0
    %v520 = vpop.f32.mrf.mxu0
    %v521 = vadd.f32 0.0, %v520
    %v522 = vpop.f32.mrf.mxu0
    %523 = vmatprep.mubr.bf16.mxu0 0
    %524 = vmatmul.mubr.bf16.gmra.mxu0 %v234
    %v525 = vpop.f32.mrf.mxu0
    %v526 = vadd.f32 0.0, %v525
    %v527 = vpop.f32.mrf.mxu0
    %v528 = vpop.f32.mrf.mxu0
    %v529 = vadd.f32 0.0, %v528
    %v530 = vpop.f32.mrf.mxu0
    %531 = vmatprep.mubr.bf16.mxu0 0
    %532 = vmatmul.mubr.bf16.gmra.mxu0 %v235
    %v533 = vpop.f32.mrf.mxu0
    %v534 = vadd.f32 0.0, %v533
    %v535 = vpop.f32.mrf.mxu0
    %v536 = vpop.f32.mrf.mxu0
    %v537 = vadd.f32 0.0, %v536
    %v538 = vpop.f32.mrf.mxu0
    %539 = vmatprep.mubr.bf16.mxu0 0
    %540 = vmatmul.mubr.bf16.gmra.mxu0 %v236
    %v541 = vpop.f32.mrf.mxu0
    %v542 = vadd.f32 0.0, %v541
    %v543 = vpop.f32.mrf.mxu0
    %v544 = vpop.f32.mrf.mxu0
    %v545 = vadd.f32 0.0, %v544
    %v546 = vpop.f32.mrf.mxu0
    %547 = vmatprep.mubr.bf16.mxu0 0
    %548 = vmatmul.mubr.bf16.gmra.mxu0 %v237
    %v549 = vpop.f32.mrf.mxu0
    %v550 = vadd.f32 0.0, %v549
    %v551 = vpop.f32.mrf.mxu0
    %v552 = vpop.f32.mrf.mxu0
    %v553 = vadd.f32 0.0, %v552
    %v554 = vpop.f32.mrf.mxu0
    %555 = vmatprep.mubr.bf16.mxu0 0
    %556 = vmatmul.mubr.bf16.gmra.mxu0 %v238
    %v557 = vpop.f32.mrf.mxu0
    %v558 = vadd.f32 0.0, %v557
    %v559 = vpop.f32.mrf.mxu0
    %v560 = vpop.f32.mrf.mxu0
    %v561 = vadd.f32 0.0, %v560
    %v562 = vpop.f32.mrf.mxu0
    %563 = vmatprep.mubr.bf16.mxu0 0
    %564 = vmatmul.mubr.bf16.gmra.mxu0 %v239
    %v565 = vpop.f32.mrf.mxu0
    %v566 = vadd.f32 0.0, %v565
    %v567 = vpop.f32.mrf.mxu0
    %v568 = vpop.f32.mrf.mxu0
    %v569 = vadd.f32 0.0, %v568
    %v570 = vpop.f32.mrf.mxu0
    %571 = vmatprep.mubr.bf16.mxu0 0
    %572 = vmatmul.mubr.bf16.gmra.mxu0 %v240
    %v573 = vpop.f32.mrf.mxu0
    %v574 = vadd.f32 0.0, %v573
    %v575 = vpop.f32.mrf.mxu0
    %v576 = vpop.f32.mrf.mxu0
    %v577 = vadd.f32 0.0, %v576
    %v578 = vpop.f32.mrf.mxu0
    %579 = vmatprep.mubr.bf16.mxu0 0
    %580 = vmatmul.mubr.bf16.gmra.mxu0 %v241
    %v581 = vpop.f32.mrf.mxu0
    %v582 = vadd.f32 0.0, %v581
    %v583 = vpop.f32.mrf.mxu0
    %v584 = vpop.f32.mrf.mxu0
    %v585 = vadd.f32 0.0, %v584
    %v586 = vpop.f32.mrf.mxu0
    %587 = vmatprep.mubr.bf16.mxu0 0
    %588 = vmatmul.mubr.bf16.gmra.mxu0 %v242
    %v589 = vpop.f32.mrf.mxu0
    %v590 = vadd.f32 0.0, %v589
    %v591 = vpop.f32.mrf.mxu0
    %v592 = vpop.f32.mrf.mxu0
    %v593 = vadd.f32 0.0, %v592
    %v594 = vpop.f32.mrf.mxu0
    %595 = vdwg.mxu0
    %v596 = vpack.c.bf16 %v345, %v342
    %v597 = vpack.c.bf16 %v353, %v350
    %v598 = vpack.c.bf16 %v361, %v358
    %v599 = vpack.c.bf16 %v369, %v366
    %v600 = vpack.c.bf16 %v377, %v374
    %v601 = vpack.c.bf16 %v385, %v382
    %v602 = vpack.c.bf16 %v393, %v390
    %v603 = vpack.c.bf16 %v401, %v398
    %v604 = vpack.c.bf16 %v409, %v406
    %v605 = vpack.c.bf16 %v417, %v414
    %v606 = vpack.c.bf16 %v425, %v422
    %v607 = vpack.c.bf16 %v433, %v430
    %v608 = vpack.c.bf16 %v441, %v438
    %v609 = vpack.c.bf16 %v449, %v446
    %v610 = vpack.c.bf16 %v457, %v454
    %v611 = vpack.c.bf16 %v465, %v462
    %v612 = vpack.c.bf16 %v473, %v470
    %v613 = vpack.c.bf16 %v481, %v478
    %v614 = vpack.c.bf16 %v489, %v486
    %v615 = vpack.c.bf16 %v497, %v494
    %v616 = vpack.c.bf16 %v505, %v502
    %v617 = vpack.c.bf16 %v513, %v510
    %v618 = vpack.c.bf16 %v521, %v518
    %v619 = vpack.c.bf16 %v529, %v526
    %v620 = vpack.c.bf16 %v537, %v534
    %v621 = vpack.c.bf16 %v545, %v542
    %v622 = vpack.c.bf16 %v553, %v550
    %v623 = vpack.c.bf16 %v561, %v558
    %v624 = vpack.c.bf16 %v569, %v566
    %v625 = vpack.c.bf16 %v577, %v574
    %v626 = vpack.c.bf16 %v585, %v582
    %v627 = vpack.c.bf16 %v593, %v590
    %v628 = vld [vmem:[%s3] sm:$0x1]
    %v630 = vlaneseq
    %v631 = vshrl.u32 %v630, 7
    %v632 = vsub.s32 0, %v631
    %v633 = vrot.slane %v628, %v632
    %v763 = vunpack.c.l.b16 %v83
    %v764 = vunpack.c.h.b16 %v83
    %v765 = vunpack.c.l.b16 %v84
    %v766 = vunpack.c.h.b16 %v84
    %v767 = vunpack.c.l.b16 %v85
    %v768 = vunpack.c.h.b16 %v85
    %v769 = vunpack.c.l.b16 %v86
    %v770 = vunpack.c.h.b16 %v86
    %v771 = vunpack.c.l.b16 %v87
    %v772 = vunpack.c.h.b16 %v87
    %v773 = vunpack.c.l.b16 %v88
    %v774 = vunpack.c.h.b16 %v88
    %v775 = vunpack.c.l.b16 %v89
    %v776 = vunpack.c.h.b16 %v89
    %v777 = vunpack.c.l.b16 %v90
    %v778 = vunpack.c.h.b16 %v90
    %v779 = vunpack.c.l.b16 %v91
    %v780 = vunpack.c.h.b16 %v91
    %v781 = vunpack.c.l.b16 %v92
    %v782 = vunpack.c.h.b16 %v92
    %v783 = vunpack.c.l.b16 %v93
    %v784 = vunpack.c.h.b16 %v93
    %v785 = vunpack.c.l.b16 %v94
    %v786 = vunpack.c.h.b16 %v94
    %v787 = vunpack.c.l.b16 %v95
    %v788 = vunpack.c.h.b16 %v95
    %v789 = vunpack.c.l.b16 %v96
    %v790 = vunpack.c.h.b16 %v96
    %v791 = vunpack.c.l.b16 %v97
    %v792 = vunpack.c.h.b16 %v97
    %v793 = vunpack.c.l.b16 %v98
    %v794 = vunpack.c.h.b16 %v98
    %v795 = vunpack.c.l.b16 %v99
    %v796 = vunpack.c.h.b16 %v99
    %v797 = vunpack.c.l.b16 %v100
    %v798 = vunpack.c.h.b16 %v100
    %v799 = vunpack.c.l.b16 %v101
    %v800 = vunpack.c.h.b16 %v101
    %v801 = vunpack.c.l.b16 %v102
    %v802 = vunpack.c.h.b16 %v102
    %v803 = vunpack.c.l.b16 %v103
    %v804 = vunpack.c.h.b16 %v103
    %v805 = vunpack.c.l.b16 %v104
    %v806 = vunpack.c.h.b16 %v104
    %v807 = vunpack.c.l.b16 %v105
    %v808 = vunpack.c.h.b16 %v105
    %v809 = vunpack.c.l.b16 %v106
    %v810 = vunpack.c.h.b16 %v106
    %v811 = vunpack.c.l.b16 %v107
    %v812 = vunpack.c.h.b16 %v107
    %v813 = vunpack.c.l.b16 %v108
    %v814 = vunpack.c.h.b16 %v108
    %v815 = vunpack.c.l.b16 %v109
    %v816 = vunpack.c.h.b16 %v109
    %v817 = vunpack.c.l.b16 %v110
    %v818 = vunpack.c.h.b16 %v110
    %v819 = vunpack.c.l.b16 %v111
    %v820 = vunpack.c.h.b16 %v111
    %v821 = vunpack.c.l.b16 %v112
    %v822 = vunpack.c.h.b16 %v112
    %v823 = vunpack.c.l.b16 %v113
    %v824 = vunpack.c.h.b16 %v113
    %v825 = vunpack.c.l.b16 %v114
    %v826 = vunpack.c.h.b16 %v114
    %v827 = vunpack.c.l.b16 %v115
    %v828 = vunpack.c.h.b16 %v115
    %v829 = vunpack.c.l.b16 %v116
    %v830 = vunpack.c.h.b16 %v116
    %v831 = vunpack.c.l.b16 %v117
    %v832 = vunpack.c.h.b16 %v117
    %v833 = vunpack.c.l.b16 %v118
    %v834 = vunpack.c.h.b16 %v118
    %v835 = vunpack.c.l.b16 %v119
    %v836 = vunpack.c.h.b16 %v119
    %v837 = vunpack.c.l.b16 %v120
    %v838 = vunpack.c.h.b16 %v120
    %v839 = vunpack.c.l.b16 %v121
    %v840 = vunpack.c.h.b16 %v121
    %v841 = vunpack.c.l.b16 %v122
    %v842 = vunpack.c.h.b16 %v122
    %v843 = vunpack.c.l.b16 %v123
    %v844 = vunpack.c.h.b16 %v123
    %v845 = vunpack.c.l.b16 %v124
    %v846 = vunpack.c.h.b16 %v124
    %v847 = vunpack.c.l.b16 %v125
    %v848 = vunpack.c.h.b16 %v125
    %v849 = vunpack.c.l.b16 %v126
    %v850 = vunpack.c.h.b16 %v126
    %v851 = vunpack.c.l.b16 %v127
    %v852 = vunpack.c.h.b16 %v127
    %v853 = vunpack.c.l.b16 %v128
    %v854 = vunpack.c.h.b16 %v128
    %v855 = vunpack.c.l.b16 %v129
    %v856 = vunpack.c.h.b16 %v129
    %v857 = vunpack.c.l.b16 %v130
    %v858 = vunpack.c.h.b16 %v130
    %v859 = vunpack.c.l.b16 %v131
    %v860 = vunpack.c.h.b16 %v131
    %v861 = vunpack.c.l.b16 %v132
    %v862 = vunpack.c.h.b16 %v132
    %v863 = vunpack.c.l.b16 %v133
    %v864 = vunpack.c.h.b16 %v133
    %v865 = vunpack.c.l.b16 %v134
    %v866 = vunpack.c.h.b16 %v134
    %v867 = vunpack.c.l.b16 %v135
    %v868 = vunpack.c.h.b16 %v135
    %v869 = vunpack.c.l.b16 %v136
    %v870 = vunpack.c.h.b16 %v136
    %v871 = vunpack.c.l.b16 %v137
    %v872 = vunpack.c.h.b16 %v137
    %v873 = vunpack.c.l.b16 %v138
    %v874 = vunpack.c.h.b16 %v138
    %v875 = vunpack.c.l.b16 %v139
    %v876 = vunpack.c.h.b16 %v139
    %v877 = vunpack.c.l.b16 %v140
    %v878 = vunpack.c.h.b16 %v140
    %v879 = vunpack.c.l.b16 %v141
    %v880 = vunpack.c.h.b16 %v141
    %v881 = vunpack.c.l.b16 %v142
    %v882 = vunpack.c.h.b16 %v142
    %v883 = vunpack.c.l.b16 %v143
    %v884 = vunpack.c.h.b16 %v143
    %v885 = vunpack.c.l.b16 %v144
    %v886 = vunpack.c.h.b16 %v144
    %v887 = vunpack.c.l.b16 %v145
    %v888 = vunpack.c.h.b16 %v145
    %v889 = vunpack.c.l.b16 %v146
    %v890 = vunpack.c.h.b16 %v146
    %v891 = vunpack.c.l.b16 %v147
    %v892 = vunpack.c.h.b16 %v147
    %v893 = vunpack.c.l.b16 %v148
    %v894 = vunpack.c.h.b16 %v148
    %v895 = vunpack.c.l.b16 %v149
    %v896 = vunpack.c.h.b16 %v149
    %v897 = vunpack.c.l.b16 %v150
    %v898 = vunpack.c.h.b16 %v150
    %v899 = vunpack.c.l.b16 %v151
    %v900 = vunpack.c.h.b16 %v151
    %v901 = vunpack.c.l.b16 %v152
    %v902 = vunpack.c.h.b16 %v152
    %v903 = vunpack.c.l.b16 %v153
    %v904 = vunpack.c.h.b16 %v153
    %v905 = vunpack.c.l.b16 %v154
    %v906 = vunpack.c.h.b16 %v154
    %v907 = vunpack.c.l.b16 %v155
    %v908 = vunpack.c.h.b16 %v155
    %v909 = vunpack.c.l.b16 %v156
    %v910 = vunpack.c.h.b16 %v156
    %v911 = vunpack.c.l.b16 %v157
    %v912 = vunpack.c.h.b16 %v157
    %v913 = vunpack.c.l.b16 %v158
    %v914 = vunpack.c.h.b16 %v158
    %v915 = vunpack.c.l.b16 %v159
    %v916 = vunpack.c.h.b16 %v159
    %v917 = vunpack.c.l.b16 %v160
    %v918 = vunpack.c.h.b16 %v160
    %v919 = vunpack.c.l.b16 %v161
    %v920 = vunpack.c.h.b16 %v161
    %v921 = vunpack.c.l.b16 %v162
    %v922 = vunpack.c.h.b16 %v162
    %v923 = vunpack.c.l.b16 %v163
    %v924 = vunpack.c.h.b16 %v163
    %v925 = vunpack.c.l.b16 %v164
    %v926 = vunpack.c.h.b16 %v164
    %v927 = vunpack.c.l.b16 %v165
    %v928 = vunpack.c.h.b16 %v165
    %v929 = vunpack.c.l.b16 %v166
    %v930 = vunpack.c.h.b16 %v166
    %v931 = vunpack.c.l.b16 %v167
    %v932 = vunpack.c.h.b16 %v167
    %v933 = vunpack.c.l.b16 %v168
    %v934 = vunpack.c.h.b16 %v168
    %v935 = vunpack.c.l.b16 %v169
    %v936 = vunpack.c.h.b16 %v169
    %v937 = vunpack.c.l.b16 %v170
    %v938 = vunpack.c.h.b16 %v170
    %v939 = vunpack.c.l.b16 %v171
    %v940 = vunpack.c.h.b16 %v171
    %v941 = vunpack.c.l.b16 %v172
    %v942 = vunpack.c.h.b16 %v172
    %v943 = vunpack.c.l.b16 %v173
    %v944 = vunpack.c.h.b16 %v173
    %v945 = vunpack.c.l.b16 %v174
    %v946 = vunpack.c.h.b16 %v174
    %v947 = vunpack.c.l.b16 %v175
    %v948 = vunpack.c.h.b16 %v175
    %v949 = vunpack.c.l.b16 %v176
    %v950 = vunpack.c.h.b16 %v176
    %v951 = vunpack.c.l.b16 %v177
    %v952 = vunpack.c.h.b16 %v177
    %v953 = vunpack.c.l.b16 %v178
    %v954 = vunpack.c.h.b16 %v178
    %v955 = vunpack.c.l.b16 %v179
    %v956 = vunpack.c.h.b16 %v179
    %v957 = vunpack.c.l.b16 %v180
    %v958 = vunpack.c.h.b16 %v180
    %v959 = vunpack.c.l.b16 %v181
    %v960 = vunpack.c.h.b16 %v181
    %v961 = vunpack.c.l.b16 %v182
    %v962 = vunpack.c.h.b16 %v182
    %v963 = vunpack.c.l.b16 %v183
    %v964 = vunpack.c.h.b16 %v183
    %v965 = vunpack.c.l.b16 %v184
    %v966 = vunpack.c.h.b16 %v184
    %v967 = vunpack.c.l.b16 %v185
    %v968 = vunpack.c.h.b16 %v185
    %v969 = vunpack.c.l.b16 %v186
    %v970 = vunpack.c.h.b16 %v186
    %v971 = vunpack.c.l.b16 %v187
    %v972 = vunpack.c.h.b16 %v187
    %v973 = vunpack.c.l.b16 %v188
    %v974 = vunpack.c.h.b16 %v188
    %v975 = vunpack.c.l.b16 %v189
    %v976 = vunpack.c.h.b16 %v189
    %v977 = vunpack.c.l.b16 %v190
    %v978 = vunpack.c.h.b16 %v190
    %v979 = vunpack.c.l.b16 %v191
    %v980 = vunpack.c.h.b16 %v191
    %v981 = vunpack.c.l.b16 %v192
    %v982 = vunpack.c.h.b16 %v192
    %v983 = vunpack.c.l.b16 %v193
    %v984 = vunpack.c.h.b16 %v193
    %v985 = vunpack.c.l.b16 %v194
    %v986 = vunpack.c.h.b16 %v194
    %v987 = vunpack.c.l.b16 %v195
    %v988 = vunpack.c.h.b16 %v195
    %v989 = vunpack.c.l.b16 %v196
    %v990 = vunpack.c.h.b16 %v196
    %v991 = vunpack.c.l.b16 %v197
    %v992 = vunpack.c.h.b16 %v197
    %v993 = vunpack.c.l.b16 %v198
    %v994 = vunpack.c.h.b16 %v198
    %v995 = vunpack.c.l.b16 %v199
    %v996 = vunpack.c.h.b16 %v199
    %v997 = vunpack.c.l.b16 %v200
    %v998 = vunpack.c.h.b16 %v200
    %v999 = vunpack.c.l.b16 %v201
    %v1000 = vunpack.c.h.b16 %v201
    %v1001 = vunpack.c.l.b16 %v202
    %v1002 = vunpack.c.h.b16 %v202
    %v1003 = vunpack.c.l.b16 %v203
    %v1004 = vunpack.c.h.b16 %v203
    %v1005 = vunpack.c.l.b16 %v204
    %v1006 = vunpack.c.h.b16 %v204
    %v1007 = vunpack.c.l.b16 %v205
    %v1008 = vunpack.c.h.b16 %v205
    %v1009 = vunpack.c.l.b16 %v206
    %v1010 = vunpack.c.h.b16 %v206
    %v1011 = vunpack.c.l.b16 %v207
    %v1012 = vunpack.c.h.b16 %v207
    %v1013 = vunpack.c.l.b16 %v208
    %v1014 = vunpack.c.h.b16 %v208
    %v1015 = vunpack.c.l.b16 %v209
    %v1016 = vunpack.c.h.b16 %v209
    %v1017 = vunpack.c.l.b16 %v210
    %v1018 = vunpack.c.h.b16 %v210
    %v1019 = vpack.c.b16 %v767, %v763
    %v1020 = vpack.c.b16 %v768, %v764
    %v1021 = vpack.c.b16 %v769, %v765
    %v1022 = vpack.c.b16 %v770, %v766
    %v1023 = vpack.c.b16 %v775, %v771
    %v1024 = vpack.c.b16 %v776, %v772
    %v1025 = vpack.c.b16 %v777, %v773
    %v1026 = vpack.c.b16 %v778, %v774
    %v1027 = vpack.c.b16 %v783, %v779
    %v1028 = vpack.c.b16 %v784, %v780
    %v1029 = vpack.c.b16 %v785, %v781
    %v1030 = vpack.c.b16 %v786, %v782
    %v1031 = vpack.c.b16 %v791, %v787
    %v1032 = vpack.c.b16 %v792, %v788
    %v1033 = vpack.c.b16 %v793, %v789
    %v1034 = vpack.c.b16 %v794, %v790
    %v1035 = vpack.c.b16 %v799, %v795
    %v1036 = vpack.c.b16 %v800, %v796
    %v1037 = vpack.c.b16 %v801, %v797
    %v1038 = vpack.c.b16 %v802, %v798
    %v1039 = vpack.c.b16 %v807, %v803
    %v1040 = vpack.c.b16 %v808, %v804
    %v1041 = vpack.c.b16 %v809, %v805
    %v1042 = vpack.c.b16 %v810, %v806
    %v1043 = vpack.c.b16 %v815, %v811
    %v1044 = vpack.c.b16 %v816, %v812
    %v1045 = vpack.c.b16 %v817, %v813
    %v1046 = vpack.c.b16 %v818, %v814
    %v1047 = vpack.c.b16 %v823, %v819
    %v1048 = vpack.c.b16 %v824, %v820
    %v1049 = vpack.c.b16 %v825, %v821
    %v1050 = vpack.c.b16 %v826, %v822
    %v1051 = vpack.c.b16 %v831, %v827
    %v1052 = vpack.c.b16 %v832, %v828
    %v1053 = vpack.c.b16 %v833, %v829
    %v1054 = vpack.c.b16 %v834, %v830
    %v1055 = vpack.c.b16 %v839, %v835
    %v1056 = vpack.c.b16 %v840, %v836
    %v1057 = vpack.c.b16 %v841, %v837
    %v1058 = vpack.c.b16 %v842, %v838
    %v1059 = vpack.c.b16 %v847, %v843
    %v1060 = vpack.c.b16 %v848, %v844
    %v1061 = vpack.c.b16 %v849, %v845
    %v1062 = vpack.c.b16 %v850, %v846
    %v1063 = vpack.c.b16 %v855, %v851
    %v1064 = vpack.c.b16 %v856, %v852
    %v1065 = vpack.c.b16 %v857, %v853
    %v1066 = vpack.c.b16 %v858, %v854
    %v1067 = vpack.c.b16 %v863, %v859
    %v1068 = vpack.c.b16 %v864, %v860
    %v1069 = vpack.c.b16 %v865, %v861
    %v1070 = vpack.c.b16 %v866, %v862
    %v1071 = vpack.c.b16 %v871, %v867
    %v1072 = vpack.c.b16 %v872, %v868
    %v1073 = vpack.c.b16 %v873, %v869
    %v1074 = vpack.c.b16 %v874, %v870
    %v1075 = vpack.c.b16 %v879, %v875
    %v1076 = vpack.c.b16 %v880, %v876
    %v1077 = vpack.c.b16 %v881, %v877
    %v1078 = vpack.c.b16 %v882, %v878
    %v1079 = vpack.c.b16 %v887, %v883
    %v1080 = vpack.c.b16 %v888, %v884
    %v1081 = vpack.c.b16 %v889, %v885
    %v1082 = vpack.c.b16 %v890, %v886
    %v1083 = vpack.c.b16 %v895, %v891
    %v1084 = vpack.c.b16 %v896, %v892
    %v1085 = vpack.c.b16 %v897, %v893
    %v1086 = vpack.c.b16 %v898, %v894
    %v1087 = vpack.c.b16 %v903, %v899
    %v1088 = vpack.c.b16 %v904, %v900
    %v1089 = vpack.c.b16 %v905, %v901
    %v1090 = vpack.c.b16 %v906, %v902
    %v1091 = vpack.c.b16 %v911, %v907
    %v1092 = vpack.c.b16 %v912, %v908
    %v1093 = vpack.c.b16 %v913, %v909
    %v1094 = vpack.c.b16 %v914, %v910
    %v1095 = vpack.c.b16 %v919, %v915
    %v1096 = vpack.c.b16 %v920, %v916
    %v1097 = vpack.c.b16 %v921, %v917
    %v1098 = vpack.c.b16 %v922, %v918
    %v1099 = vpack.c.b16 %v927, %v923
    %v1100 = vpack.c.b16 %v928, %v924
    %v1101 = vpack.c.b16 %v929, %v925
    %v1102 = vpack.c.b16 %v930, %v926
    %v1103 = vpack.c.b16 %v935, %v931
    %v1104 = vpack.c.b16 %v936, %v932
    %v1105 = vpack.c.b16 %v937, %v933
    %v1106 = vpack.c.b16 %v938, %v934
    %v1107 = vpack.c.b16 %v943, %v939
    %v1108 = vpack.c.b16 %v944, %v940
    %v1109 = vpack.c.b16 %v945, %v941
    %v1110 = vpack.c.b16 %v946, %v942
    %v1111 = vpack.c.b16 %v951, %v947
    %v1112 = vpack.c.b16 %v952, %v948
    %v1113 = vpack.c.b16 %v953, %v949
    %v1114 = vpack.c.b16 %v954, %v950
    %v1115 = vpack.c.b16 %v959, %v955
    %v1116 = vpack.c.b16 %v960, %v956
    %v1117 = vpack.c.b16 %v961, %v957
    %v1118 = vpack.c.b16 %v962, %v958
    %v1119 = vpack.c.b16 %v967, %v963
    %v1120 = vpack.c.b16 %v968, %v964
    %v1121 = vpack.c.b16 %v969, %v965
    %v1122 = vpack.c.b16 %v970, %v966
    %v1123 = vpack.c.b16 %v975, %v971
    %v1124 = vpack.c.b16 %v976, %v972
    %v1125 = vpack.c.b16 %v977, %v973
    %v1126 = vpack.c.b16 %v978, %v974
    %v1127 = vpack.c.b16 %v983, %v979
    %v1128 = vpack.c.b16 %v984, %v980
    %v1129 = vpack.c.b16 %v985, %v981
    %v1130 = vpack.c.b16 %v986, %v982
    %v1131 = vpack.c.b16 %v991, %v987
    %v1132 = vpack.c.b16 %v992, %v988
    %v1133 = vpack.c.b16 %v993, %v989
    %v1134 = vpack.c.b16 %v994, %v990
    %v1135 = vpack.c.b16 %v999, %v995
    %v1136 = vpack.c.b16 %v1000, %v996
    %v1137 = vpack.c.b16 %v1001, %v997
    %v1138 = vpack.c.b16 %v1002, %v998
    %v1139 = vpack.c.b16 %v1007, %v1003
    %v1140 = vpack.c.b16 %v1008, %v1004
    %v1141 = vpack.c.b16 %v1009, %v1005
    %v1142 = vpack.c.b16 %v1010, %v1006
    %v1143 = vpack.c.b16 %v1015, %v1011
    %v1144 = vpack.c.b16 %v1016, %v1012
    %v1145 = vpack.c.b16 %v1017, %v1013
    %v1146 = vpack.c.b16 %v1018, %v1014
    %1275 = vmatprep.subr.bf16.mxu0 0
    %1276 = vmatpush1.bf16.msra.mxu0 %v603
    %1277 = vmatprep.subr.bf16.mxu0 0
    %1278 = vmatpush1.bf16.msra.mxu0 %v602
    %1279 = vmatprep.subr.bf16.mxu0 0
    %1280 = vmatpush1.bf16.msra.mxu0 %v601
    %1281 = vmatprep.subr.bf16.mxu0 0
    %1282 = vmatpush1.bf16.msra.mxu0 %v600
    %1283 = vmatprep.subr.bf16.mxu0 0
    %1284 = vmatpush1.bf16.msra.mxu0 %v599
    %1285 = vmatprep.subr.bf16.mxu0 0
    %1286 = vmatpush1.bf16.msra.mxu0 %v598
    %1287 = vmatprep.subr.bf16.mxu0 0
    %1288 = vmatpush1.bf16.msra.mxu0 %v597
    %1289 = vmatprep.subr.bf16.mxu0 0
    %1290 = vmatpush1.bf16.msra.mxu0 %v596
    %1291 = vmatprep.subr.bf16.mxu0 0
    %1292 = vmatpush2.bf16.msra.mxu0 %v611
    %1293 = vmatprep.subr.bf16.mxu0 0
    %1294 = vmatpush2.bf16.msra.mxu0 %v610
    %1295 = vmatprep.subr.bf16.mxu0 0
    %1296 = vmatpush2.bf16.msra.mxu0 %v609
    %1297 = vmatprep.subr.bf16.mxu0 0
    %1298 = vmatpush2.bf16.msra.mxu0 %v608
    %1299 = vmatprep.subr.bf16.mxu0 0
    %1300 = vmatpush2.bf16.msra.mxu0 %v607
    %1301 = vmatprep.subr.bf16.mxu0 0
    %1302 = vmatpush2.bf16.msra.mxu0 %v606
    %1303 = vmatprep.subr.bf16.mxu0 0
    %1304 = vmatpush2.bf16.msra.mxu0 %v605
    %1305 = vmatprep.subr.bf16.mxu0 0
    %1306 = vmatpush2.bf16.msra.mxu0 %v604
    %1307 = vmatprep.mubr.bf16.mxu0 %v1020
    %1308 = vmatmul.mubr.bf16.gmra.mxu0 %v1019
    %v1309 = vpop.f32.mrf.mxu0
    %v1310 = vadd.f32 %v633, %v1309
    %v1311 = vpop.f32.mrf.mxu0
    %v1312 = vpop.f32.mrf.mxu0
    %v1313 = vadd.f32 %v633, %v1312
    %v1314 = vpop.f32.mrf.mxu0
    %1315 = vmatprep.mubr.bf16.mxu0 %v1024
    %1316 = vmatmul.mubr.bf16.gmra.mxu0 %v1023
    %v1317 = vpop.f32.mrf.mxu0
    %v1318 = vadd.f32 %v633, %v1317
    %v1319 = vpop.f32.mrf.mxu0
    %v1320 = vpop.f32.mrf.mxu0
    %v1321 = vadd.f32 %v633, %v1320
    %v1322 = vpop.f32.mrf.mxu0
    %1323 = vmatprep.mubr.bf16.mxu0 %v1028
    %1324 = vmatmul.mubr.bf16.gmra.mxu0 %v1027
    %v1325 = vpop.f32.mrf.mxu0
    %v1326 = vadd.f32 %v633, %v1325
    %v1327 = vpop.f32.mrf.mxu0
    %v1328 = vpop.f32.mrf.mxu0
    %v1329 = vadd.f32 %v633, %v1328
    %v1330 = vpop.f32.mrf.mxu0
    %1331 = vmatprep.mubr.bf16.mxu0 %v1032
    %1332 = vmatmul.mubr.bf16.gmra.mxu0 %v1031
    %v1333 = vpop.f32.mrf.mxu0
    %v1334 = vadd.f32 %v633, %v1333
    %v1335 = vpop.f32.mrf.mxu0
    %v1336 = vpop.f32.mrf.mxu0
    %v1337 = vadd.f32 %v633, %v1336
    %v1338 = vpop.f32.mrf.mxu0
    %1339 = vmatprep.mubr.bf16.mxu0 %v1036
    %1340 = vmatmul.mubr.bf16.gmra.mxu0 %v1035
    %v1341 = vpop.f32.mrf.mxu0
    %v1342 = vadd.f32 %v633, %v1341
    %v1343 = vpop.f32.mrf.mxu0
    %v1344 = vpop.f32.mrf.mxu0
    %v1345 = vadd.f32 %v633, %v1344
    %v1346 = vpop.f32.mrf.mxu0
    %1347 = vmatprep.mubr.bf16.mxu0 %v1040
    %1348 = vmatmul.mubr.bf16.gmra.mxu0 %v1039
    %v1349 = vpop.f32.mrf.mxu0
    %v1350 = vadd.f32 %v633, %v1349
    %v1351 = vpop.f32.mrf.mxu0
    %v1352 = vpop.f32.mrf.mxu0
    %v1353 = vadd.f32 %v633, %v1352
    %v1354 = vpop.f32.mrf.mxu0
    %1355 = vmatprep.mubr.bf16.mxu0 %v1044
    %1356 = vmatmul.mubr.bf16.gmra.mxu0 %v1043
    %v1357 = vpop.f32.mrf.mxu0
    %v1358 = vadd.f32 %v633, %v1357
    %v1359 = vpop.f32.mrf.mxu0
    %v1360 = vpop.f32.mrf.mxu0
    %v1361 = vadd.f32 %v633, %v1360
    %v1362 = vpop.f32.mrf.mxu0
    %1363 = vmatprep.mubr.bf16.mxu0 %v1048
    %1364 = vmatmul.mubr.bf16.gmra.mxu0 %v1047
    %v1365 = vpop.f32.mrf.mxu0
    %v1366 = vadd.f32 %v633, %v1365
    %v1367 = vpop.f32.mrf.mxu0
    %v1368 = vpop.f32.mrf.mxu0
    %v1369 = vadd.f32 %v633, %v1368
    %v1370 = vpop.f32.mrf.mxu0
    %1371 = vmatprep.mubr.bf16.mxu0 %v1052
    %1372 = vmatmul.mubr.bf16.gmra.mxu0 %v1051
    %v1373 = vpop.f32.mrf.mxu0
    %v1374 = vadd.f32 %v633, %v1373
    %v1375 = vpop.f32.mrf.mxu0
    %v1376 = vpop.f32.mrf.mxu0
    %v1377 = vadd.f32 %v633, %v1376
    %v1378 = vpop.f32.mrf.mxu0
    %1379 = vmatprep.mubr.bf16.mxu0 %v1056
    %1380 = vmatmul.mubr.bf16.gmra.mxu0 %v1055
    %v1381 = vpop.f32.mrf.mxu0
    %v1382 = vadd.f32 %v633, %v1381
    %v1383 = vpop.f32.mrf.mxu0
    %v1384 = vpop.f32.mrf.mxu0
    %v1385 = vadd.f32 %v633, %v1384
    %v1386 = vpop.f32.mrf.mxu0
    %1387 = vmatprep.mubr.bf16.mxu0 %v1060
    %1388 = vmatmul.mubr.bf16.gmra.mxu0 %v1059
    %v1389 = vpop.f32.mrf.mxu0
    %v1390 = vadd.f32 %v633, %v1389
    %v1391 = vpop.f32.mrf.mxu0
    %v1392 = vpop.f32.mrf.mxu0
    %v1393 = vadd.f32 %v633, %v1392
    %v1394 = vpop.f32.mrf.mxu0
    %1395 = vmatprep.mubr.bf16.mxu0 %v1064
    %1396 = vmatmul.mubr.bf16.gmra.mxu0 %v1063
    %v1397 = vpop.f32.mrf.mxu0
    %v1398 = vadd.f32 %v633, %v1397
    %v1399 = vpop.f32.mrf.mxu0
    %v1400 = vpop.f32.mrf.mxu0
    %v1401 = vadd.f32 %v633, %v1400
    %v1402 = vpop.f32.mrf.mxu0
    %1403 = vmatprep.mubr.bf16.mxu0 %v1068
    %1404 = vmatmul.mubr.bf16.gmra.mxu0 %v1067
    %v1405 = vpop.f32.mrf.mxu0
    %v1406 = vadd.f32 %v633, %v1405
    %v1407 = vpop.f32.mrf.mxu0
    %v1408 = vpop.f32.mrf.mxu0
    %v1409 = vadd.f32 %v633, %v1408
    %v1410 = vpop.f32.mrf.mxu0
    %1411 = vmatprep.mubr.bf16.mxu0 %v1072
    %1412 = vmatmul.mubr.bf16.gmra.mxu0 %v1071
    %v1413 = vpop.f32.mrf.mxu0
    %v1414 = vadd.f32 %v633, %v1413
    %v1415 = vpop.f32.mrf.mxu0
    %v1416 = vpop.f32.mrf.mxu0
    %v1417 = vadd.f32 %v633, %v1416
    %v1418 = vpop.f32.mrf.mxu0
    %1419 = vmatprep.mubr.bf16.mxu0 %v1076
    %1420 = vmatmul.mubr.bf16.gmra.mxu0 %v1075
    %v1421 = vpop.f32.mrf.mxu0
    %v1422 = vadd.f32 %v633, %v1421
    %v1423 = vpop.f32.mrf.mxu0
    %v1424 = vpop.f32.mrf.mxu0
    %v1425 = vadd.f32 %v633, %v1424
    %v1426 = vpop.f32.mrf.mxu0
    %1427 = vmatprep.mubr.bf16.mxu0 %v1080
    %1428 = vmatmul.mubr.bf16.gmra.mxu0 %v1079
    %v1429 = vpop.f32.mrf.mxu0
    %v1430 = vadd.f32 %v633, %v1429
    %v1431 = vpop.f32.mrf.mxu0
    %v1432 = vpop.f32.mrf.mxu0
    %v1433 = vadd.f32 %v633, %v1432
    %v1434 = vpop.f32.mrf.mxu0
    %1435 = vmatprep.mubr.bf16.mxu0 %v1084
    %1436 = vmatmul.mubr.bf16.gmra.mxu0 %v1083
    %v1437 = vpop.f32.mrf.mxu0
    %v1438 = vadd.f32 %v633, %v1437
    %v1439 = vpop.f32.mrf.mxu0
    %v1440 = vpop.f32.mrf.mxu0
    %v1441 = vadd.f32 %v633, %v1440
    %v1442 = vpop.f32.mrf.mxu0
    %1443 = vmatprep.mubr.bf16.mxu0 %v1088
    %1444 = vmatmul.mubr.bf16.gmra.mxu0 %v1087
    %v1445 = vpop.f32.mrf.mxu0
    %v1446 = vadd.f32 %v633, %v1445
    %v1447 = vpop.f32.mrf.mxu0
    %v1448 = vpop.f32.mrf.mxu0
    %v1449 = vadd.f32 %v633, %v1448
    %v1450 = vpop.f32.mrf.mxu0
    %1451 = vmatprep.mubr.bf16.mxu0 %v1092
    %1452 = vmatmul.mubr.bf16.gmra.mxu0 %v1091
    %v1453 = vpop.f32.mrf.mxu0
    %v1454 = vadd.f32 %v633, %v1453
    %v1455 = vpop.f32.mrf.mxu0
    %v1456 = vpop.f32.mrf.mxu0
    %v1457 = vadd.f32 %v633, %v1456
    %v1458 = vpop.f32.mrf.mxu0
    %1459 = vmatprep.mubr.bf16.mxu0 %v1096
    %1460 = vmatmul.mubr.bf16.gmra.mxu0 %v1095
    %v1461 = vpop.f32.mrf.mxu0
    %v1462 = vadd.f32 %v633, %v1461
    %v1463 = vpop.f32.mrf.mxu0
    %v1464 = vpop.f32.mrf.mxu0
    %v1465 = vadd.f32 %v633, %v1464
    %v1466 = vpop.f32.mrf.mxu0
    %1467 = vmatprep.mubr.bf16.mxu0 %v1100
    %1468 = vmatmul.mubr.bf16.gmra.mxu0 %v1099
    %v1469 = vpop.f32.mrf.mxu0
    %v1470 = vadd.f32 %v633, %v1469
    %v1471 = vpop.f32.mrf.mxu0
    %v1472 = vpop.f32.mrf.mxu0
    %v1473 = vadd.f32 %v633, %v1472
    %v1474 = vpop.f32.mrf.mxu0
    %1475 = vmatprep.mubr.bf16.mxu0 %v1104
    %1476 = vmatmul.mubr.bf16.gmra.mxu0 %v1103
    %v1477 = vpop.f32.mrf.mxu0
    %v1478 = vadd.f32 %v633, %v1477
    %v1479 = vpop.f32.mrf.mxu0
    %v1480 = vpop.f32.mrf.mxu0
    %v1481 = vadd.f32 %v633, %v1480
    %v1482 = vpop.f32.mrf.mxu0
    %1483 = vmatprep.mubr.bf16.mxu0 %v1108
    %1484 = vmatmul.mubr.bf16.gmra.mxu0 %v1107
    %v1485 = vpop.f32.mrf.mxu0
    %v1486 = vadd.f32 %v633, %v1485
    %v1487 = vpop.f32.mrf.mxu0
    %v1488 = vpop.f32.mrf.mxu0
    %v1489 = vadd.f32 %v633, %v1488
    %v1490 = vpop.f32.mrf.mxu0
    %1491 = vmatprep.mubr.bf16.mxu0 %v1112
    %1492 = vmatmul.mubr.bf16.gmra.mxu0 %v1111
    %v1493 = vpop.f32.mrf.mxu0
    %v1494 = vadd.f32 %v633, %v1493
    %v1495 = vpop.f32.mrf.mxu0
    %v1496 = vpop.f32.mrf.mxu0
    %v1497 = vadd.f32 %v633, %v1496
    %v1498 = vpop.f32.mrf.mxu0
    %1499 = vmatprep.mubr.bf16.mxu0 %v1116
    %1500 = vmatmul.mubr.bf16.gmra.mxu0 %v1115
    %v1501 = vpop.f32.mrf.mxu0
    %v1502 = vadd.f32 %v633, %v1501
    %v1503 = vpop.f32.mrf.mxu0
    %v1504 = vpop.f32.mrf.mxu0
    %v1505 = vadd.f32 %v633, %v1504
    %v1506 = vpop.f32.mrf.mxu0
    %1507 = vmatprep.mubr.bf16.mxu0 %v1120
    %1508 = vmatmul.mubr.bf16.gmra.mxu0 %v1119
    %v1509 = vpop.f32.mrf.mxu0
    %v1510 = vadd.f32 %v633, %v1509
    %v1511 = vpop.f32.mrf.mxu0
    %v1512 = vpop.f32.mrf.mxu0
    %v1513 = vadd.f32 %v633, %v1512
    %v1514 = vpop.f32.mrf.mxu0
    %1515 = vmatprep.mubr.bf16.mxu0 %v1124
    %1516 = vmatmul.mubr.bf16.gmra.mxu0 %v1123
    %v1517 = vpop.f32.mrf.mxu0
    %v1518 = vadd.f32 %v633, %v1517
    %v1519 = vpop.f32.mrf.mxu0
    %v1520 = vpop.f32.mrf.mxu0
    %v1521 = vadd.f32 %v633, %v1520
    %v1522 = vpop.f32.mrf.mxu0
    %1523 = vmatprep.mubr.bf16.mxu0 %v1128
    %1524 = vmatmul.mubr.bf16.gmra.mxu0 %v1127
    %v1525 = vpop.f32.mrf.mxu0
    %v1526 = vadd.f32 %v633, %v1525
    %v1527 = vpop.f32.mrf.mxu0
    %v1528 = vpop.f32.mrf.mxu0
    %v1529 = vadd.f32 %v633, %v1528
    %v1530 = vpop.f32.mrf.mxu0
    %1531 = vmatprep.mubr.bf16.mxu0 %v1132
    %1532 = vmatmul.mubr.bf16.gmra.mxu0 %v1131
    %v1533 = vpop.f32.mrf.mxu0
    %v1534 = vadd.f32 %v633, %v1533
    %v1535 = vpop.f32.mrf.mxu0
    %v1536 = vpop.f32.mrf.mxu0
    %v1537 = vadd.f32 %v633, %v1536
    %v1538 = vpop.f32.mrf.mxu0
    %1539 = vmatprep.mubr.bf16.mxu0 %v1136
    %1540 = vmatmul.mubr.bf16.gmra.mxu0 %v1135
    %v1541 = vpop.f32.mrf.mxu0
    %v1542 = vadd.f32 %v633, %v1541
    %v1543 = vpop.f32.mrf.mxu0
    %v1544 = vpop.f32.mrf.mxu0
    %v1545 = vadd.f32 %v633, %v1544
    %v1546 = vpop.f32.mrf.mxu0
    %1547 = vmatprep.mubr.bf16.mxu0 %v1140
    %1548 = vmatmul.mubr.bf16.gmra.mxu0 %v1139
    %v1549 = vpop.f32.mrf.mxu0
    %v1550 = vadd.f32 %v633, %v1549
    %v1551 = vpop.f32.mrf.mxu0
    %v1552 = vpop.f32.mrf.mxu0
    %v1553 = vadd.f32 %v633, %v1552
    %v1554 = vpop.f32.mrf.mxu0
    %1555 = vmatprep.mubr.bf16.mxu0 %v1144
    %1556 = vmatmul.mubr.bf16.gmra.mxu0 %v1143
    %v1557 = vpop.f32.mrf.mxu0
    %v1558 = vadd.f32 %v633, %v1557
    %v1559 = vpop.f32.mrf.mxu0
    %v1560 = vpop.f32.mrf.mxu0
    %v1561 = vadd.f32 %v633, %v1560
    %v1562 = vpop.f32.mrf.mxu0
    %1563 = vdwg.mxu0
    %1564 = vmatprep.subr.bf16.mxu0 0
    %1565 = vmatpush1.bf16.msra.mxu0 %v619
    %1566 = vmatprep.subr.bf16.mxu0 0
    %1567 = vmatpush1.bf16.msra.mxu0 %v618
    %1568 = vmatprep.subr.bf16.mxu0 0
    %1569 = vmatpush1.bf16.msra.mxu0 %v617
    %1570 = vmatprep.subr.bf16.mxu0 0
    %1571 = vmatpush1.bf16.msra.mxu0 %v616
    %1572 = vmatprep.subr.bf16.mxu0 0
    %1573 = vmatpush1.bf16.msra.mxu0 %v615
    %1574 = vmatprep.subr.bf16.mxu0 0
    %1575 = vmatpush1.bf16.msra.mxu0 %v614
    %1576 = vmatprep.subr.bf16.mxu0 0
    %1577 = vmatpush1.bf16.msra.mxu0 %v613
    %1578 = vmatprep.subr.bf16.mxu0 0
    %1579 = vmatpush1.bf16.msra.mxu0 %v612
    %1580 = vmatprep.subr.bf16.mxu0 0
    %1581 = vmatpush2.bf16.msra.mxu0 %v627
    %1582 = vmatprep.subr.bf16.mxu0 0
    %1583 = vmatpush2.bf16.msra.mxu0 %v626
    %1584 = vmatprep.subr.bf16.mxu0 0
    %1585 = vmatpush2.bf16.msra.mxu0 %v625
    %1586 = vmatprep.subr.bf16.mxu0 0
    %1587 = vmatpush2.bf16.msra.mxu0 %v624
    %1588 = vmatprep.subr.bf16.mxu0 0
    %1589 = vmatpush2.bf16.msra.mxu0 %v623
    %1590 = vmatprep.subr.bf16.mxu0 0
    %1591 = vmatpush2.bf16.msra.mxu0 %v622
    %1592 = vmatprep.subr.bf16.mxu0 0
    %1593 = vmatpush2.bf16.msra.mxu0 %v621
    %1594 = vmatprep.subr.bf16.mxu0 0
    %1595 = vmatpush2.bf16.msra.mxu0 %v620
    %1596 = vmatprep.mubr.bf16.mxu0 %v1022
    %1597 = vmatmul.mubr.bf16.gmra.mxu0 %v1021
    %v1598 = vpop.f32.mrf.mxu0
    %v1599 = vadd.f32 %v1310, %v1598
    %v1600 = vpop.f32.mrf.mxu0
    %v1601 = vpop.f32.mrf.mxu0
    %v1602 = vadd.f32 %v1313, %v1601
    %v1603 = vpop.f32.mrf.mxu0
    %1604 = vmatprep.mubr.bf16.mxu0 %v1026
    %1605 = vmatmul.mubr.bf16.gmra.mxu0 %v1025
    %v1606 = vpop.f32.mrf.mxu0
    %v1607 = vadd.f32 %v1318, %v1606
    %v1608 = vpop.f32.mrf.mxu0
    %v1609 = vpop.f32.mrf.mxu0
    %v1610 = vadd.f32 %v1321, %v1609
    %v1611 = vpop.f32.mrf.mxu0
    %1612 = vmatprep.mubr.bf16.mxu0 %v1030
    %1613 = vmatmul.mubr.bf16.gmra.mxu0 %v1029
    %v1614 = vpop.f32.mrf.mxu0
    %v1615 = vadd.f32 %v1326, %v1614
    %v1616 = vpop.f32.mrf.mxu0
    %v1617 = vpop.f32.mrf.mxu0
    %v1618 = vadd.f32 %v1329, %v1617
    %v1619 = vpop.f32.mrf.mxu0
    %1620 = vmatprep.mubr.bf16.mxu0 %v1034
    %1621 = vmatmul.mubr.bf16.gmra.mxu0 %v1033
    %v1622 = vpop.f32.mrf.mxu0
    %v1623 = vadd.f32 %v1334, %v1622
    %v1624 = vpop.f32.mrf.mxu0
    %v1625 = vpop.f32.mrf.mxu0
    %v1626 = vadd.f32 %v1337, %v1625
    %v1627 = vpop.f32.mrf.mxu0
    %1628 = vmatprep.mubr.bf16.mxu0 %v1038
    %1629 = vmatmul.mubr.bf16.gmra.mxu0 %v1037
    %v1630 = vpop.f32.mrf.mxu0
    %v1631 = vadd.f32 %v1342, %v1630
    %v1632 = vpop.f32.mrf.mxu0
    %v1633 = vpop.f32.mrf.mxu0
    %v1634 = vadd.f32 %v1345, %v1633
    %v1635 = vpop.f32.mrf.mxu0
    %1636 = vmatprep.mubr.bf16.mxu0 %v1042
    %1637 = vmatmul.mubr.bf16.gmra.mxu0 %v1041
    %v1638 = vpop.f32.mrf.mxu0
    %v1639 = vadd.f32 %v1350, %v1638
    %v1640 = vpop.f32.mrf.mxu0
    %v1641 = vpop.f32.mrf.mxu0
    %v1642 = vadd.f32 %v1353, %v1641
    %v1643 = vpop.f32.mrf.mxu0
    %1644 = vmatprep.mubr.bf16.mxu0 %v1046
    %1645 = vmatmul.mubr.bf16.gmra.mxu0 %v1045
    %v1646 = vpop.f32.mrf.mxu0
    %v1647 = vadd.f32 %v1358, %v1646
    %v1648 = vpop.f32.mrf.mxu0
    %v1649 = vpop.f32.mrf.mxu0
    %v1650 = vadd.f32 %v1361, %v1649
    %v1651 = vpop.f32.mrf.mxu0
    %1652 = vmatprep.mubr.bf16.mxu0 %v1050
    %1653 = vmatmul.mubr.bf16.gmra.mxu0 %v1049
    %v1654 = vpop.f32.mrf.mxu0
    %v1655 = vadd.f32 %v1366, %v1654
    %v1656 = vpop.f32.mrf.mxu0
    %v1657 = vpop.f32.mrf.mxu0
    %v1658 = vadd.f32 %v1369, %v1657
    %v1659 = vpop.f32.mrf.mxu0
    %1660 = vmatprep.mubr.bf16.mxu0 %v1054
    %1661 = vmatmul.mubr.bf16.gmra.mxu0 %v1053
    %v1662 = vpop.f32.mrf.mxu0
    %v1663 = vadd.f32 %v1374, %v1662
    %v1664 = vpop.f32.mrf.mxu0
    %v1665 = vpop.f32.mrf.mxu0
    %v1666 = vadd.f32 %v1377, %v1665
    %v1667 = vpop.f32.mrf.mxu0
    %1668 = vmatprep.mubr.bf16.mxu0 %v1058
    %1669 = vmatmul.mubr.bf16.gmra.mxu0 %v1057
    %v1670 = vpop.f32.mrf.mxu0
    %v1671 = vadd.f32 %v1382, %v1670
    %v1672 = vpop.f32.mrf.mxu0
    %v1673 = vpop.f32.mrf.mxu0
    %v1674 = vadd.f32 %v1385, %v1673
    %v1675 = vpop.f32.mrf.mxu0
    %1676 = vmatprep.mubr.bf16.mxu0 %v1062
    %1677 = vmatmul.mubr.bf16.gmra.mxu0 %v1061
    %v1678 = vpop.f32.mrf.mxu0
    %v1679 = vadd.f32 %v1390, %v1678
    %v1680 = vpop.f32.mrf.mxu0
    %v1681 = vpop.f32.mrf.mxu0
    %v1682 = vadd.f32 %v1393, %v1681
    %v1683 = vpop.f32.mrf.mxu0
    %1684 = vmatprep.mubr.bf16.mxu0 %v1066
    %1685 = vmatmul.mubr.bf16.gmra.mxu0 %v1065
    %v1686 = vpop.f32.mrf.mxu0
    %v1687 = vadd.f32 %v1398, %v1686
    %v1688 = vpop.f32.mrf.mxu0
    %v1689 = vpop.f32.mrf.mxu0
    %v1690 = vadd.f32 %v1401, %v1689
    %v1691 = vpop.f32.mrf.mxu0
    %1692 = vmatprep.mubr.bf16.mxu0 %v1070
    %1693 = vmatmul.mubr.bf16.gmra.mxu0 %v1069
    %v1694 = vpop.f32.mrf.mxu0
    %v1695 = vadd.f32 %v1406, %v1694
    %v1696 = vpop.f32.mrf.mxu0
    %v1697 = vpop.f32.mrf.mxu0
    %v1698 = vadd.f32 %v1409, %v1697
    %v1699 = vpop.f32.mrf.mxu0
    %1700 = vmatprep.mubr.bf16.mxu0 %v1074
    %1701 = vmatmul.mubr.bf16.gmra.mxu0 %v1073
    %v1702 = vpop.f32.mrf.mxu0
    %v1703 = vadd.f32 %v1414, %v1702
    %v1704 = vpop.f32.mrf.mxu0
    %v1705 = vpop.f32.mrf.mxu0
    %v1706 = vadd.f32 %v1417, %v1705
    %v1707 = vpop.f32.mrf.mxu0
    %1708 = vmatprep.mubr.bf16.mxu0 %v1078
    %1709 = vmatmul.mubr.bf16.gmra.mxu0 %v1077
    %v1710 = vpop.f32.mrf.mxu0
    %v1711 = vadd.f32 %v1422, %v1710
    %v1712 = vpop.f32.mrf.mxu0
    %v1713 = vpop.f32.mrf.mxu0
    %v1714 = vadd.f32 %v1425, %v1713
    %v1715 = vpop.f32.mrf.mxu0
    %1716 = vmatprep.mubr.bf16.mxu0 %v1082
    %1717 = vmatmul.mubr.bf16.gmra.mxu0 %v1081
    %v1718 = vpop.f32.mrf.mxu0
    %v1719 = vadd.f32 %v1430, %v1718
    %v1720 = vpop.f32.mrf.mxu0
    %v1721 = vpop.f32.mrf.mxu0
    %v1722 = vadd.f32 %v1433, %v1721
    %v1723 = vpop.f32.mrf.mxu0
    %1724 = vmatprep.mubr.bf16.mxu0 %v1086
    %1725 = vmatmul.mubr.bf16.gmra.mxu0 %v1085
    %v1726 = vpop.f32.mrf.mxu0
    %v1727 = vadd.f32 %v1438, %v1726
    %v1728 = vpop.f32.mrf.mxu0
    %v1729 = vpop.f32.mrf.mxu0
    %v1730 = vadd.f32 %v1441, %v1729
    %v1731 = vpop.f32.mrf.mxu0
    %1732 = vmatprep.mubr.bf16.mxu0 %v1090
    %1733 = vmatmul.mubr.bf16.gmra.mxu0 %v1089
    %v1734 = vpop.f32.mrf.mxu0
    %v1735 = vadd.f32 %v1446, %v1734
    %v1736 = vpop.f32.mrf.mxu0
    %v1737 = vpop.f32.mrf.mxu0
    %v1738 = vadd.f32 %v1449, %v1737
    %v1739 = vpop.f32.mrf.mxu0
    %1740 = vmatprep.mubr.bf16.mxu0 %v1094
    %1741 = vmatmul.mubr.bf16.gmra.mxu0 %v1093
    %v1742 = vpop.f32.mrf.mxu0
    %v1743 = vadd.f32 %v1454, %v1742
    %v1744 = vpop.f32.mrf.mxu0
    %v1745 = vpop.f32.mrf.mxu0
    %v1746 = vadd.f32 %v1457, %v1745
    %v1747 = vpop.f32.mrf.mxu0
    %1748 = vmatprep.mubr.bf16.mxu0 %v1098
    %1749 = vmatmul.mubr.bf16.gmra.mxu0 %v1097
    %v1750 = vpop.f32.mrf.mxu0
    %v1751 = vadd.f32 %v1462, %v1750
    %v1752 = vpop.f32.mrf.mxu0
    %v1753 = vpop.f32.mrf.mxu0
    %v1754 = vadd.f32 %v1465, %v1753
    %v1755 = vpop.f32.mrf.mxu0
    %1756 = vmatprep.mubr.bf16.mxu0 %v1102
    %1757 = vmatmul.mubr.bf16.gmra.mxu0 %v1101
    %v1758 = vpop.f32.mrf.mxu0
    %v1759 = vadd.f32 %v1470, %v1758
    %v1760 = vpop.f32.mrf.mxu0
    %v1761 = vpop.f32.mrf.mxu0
    %v1762 = vadd.f32 %v1473, %v1761
    %v1763 = vpop.f32.mrf.mxu0
    %1764 = vmatprep.mubr.bf16.mxu0 %v1106
    %1765 = vmatmul.mubr.bf16.gmra.mxu0 %v1105
    %v1766 = vpop.f32.mrf.mxu0
    %v1767 = vadd.f32 %v1478, %v1766
    %v1768 = vpop.f32.mrf.mxu0
    %v1769 = vpop.f32.mrf.mxu0
    %v1770 = vadd.f32 %v1481, %v1769
    %v1771 = vpop.f32.mrf.mxu0
    %1772 = vmatprep.mubr.bf16.mxu0 %v1110
    %1773 = vmatmul.mubr.bf16.gmra.mxu0 %v1109
    %v1774 = vpop.f32.mrf.mxu0
    %v1775 = vadd.f32 %v1486, %v1774
    %v1776 = vpop.f32.mrf.mxu0
    %v1777 = vpop.f32.mrf.mxu0
    %v1778 = vadd.f32 %v1489, %v1777
    %v1779 = vpop.f32.mrf.mxu0
    %1780 = vmatprep.mubr.bf16.mxu0 %v1114
    %1781 = vmatmul.mubr.bf16.gmra.mxu0 %v1113
    %v1782 = vpop.f32.mrf.mxu0
    %v1783 = vadd.f32 %v1494, %v1782
    %v1784 = vpop.f32.mrf.mxu0
    %v1785 = vpop.f32.mrf.mxu0
    %v1786 = vadd.f32 %v1497, %v1785
    %v1787 = vpop.f32.mrf.mxu0
    %1788 = vmatprep.mubr.bf16.mxu0 %v1118
    %1789 = vmatmul.mubr.bf16.gmra.mxu0 %v1117
    %v1790 = vpop.f32.mrf.mxu0
    %v1791 = vadd.f32 %v1502, %v1790
    %v1792 = vpop.f32.mrf.mxu0
    %v1793 = vpop.f32.mrf.mxu0
    %v1794 = vadd.f32 %v1505, %v1793
    %v1795 = vpop.f32.mrf.mxu0
    %1796 = vmatprep.mubr.bf16.mxu0 %v1122
    %1797 = vmatmul.mubr.bf16.gmra.mxu0 %v1121
    %v1798 = vpop.f32.mrf.mxu0
    %v1799 = vadd.f32 %v1510, %v1798
    %v1800 = vpop.f32.mrf.mxu0
    %v1801 = vpop.f32.mrf.mxu0
    %v1802 = vadd.f32 %v1513, %v1801
    %v1803 = vpop.f32.mrf.mxu0
    %1804 = vmatprep.mubr.bf16.mxu0 %v1126
    %1805 = vmatmul.mubr.bf16.gmra.mxu0 %v1125
    %v1806 = vpop.f32.mrf.mxu0
    %v1807 = vadd.f32 %v1518, %v1806
    %v1808 = vpop.f32.mrf.mxu0
    %v1809 = vpop.f32.mrf.mxu0
    %v1810 = vadd.f32 %v1521, %v1809
    %v1811 = vpop.f32.mrf.mxu0
    %1812 = vmatprep.mubr.bf16.mxu0 %v1130
    %1813 = vmatmul.mubr.bf16.gmra.mxu0 %v1129
    %v1814 = vpop.f32.mrf.mxu0
    %v1815 = vadd.f32 %v1526, %v1814
    %v1816 = vpop.f32.mrf.mxu0
    %v1817 = vpop.f32.mrf.mxu0
    %v1818 = vadd.f32 %v1529, %v1817
    %v1819 = vpop.f32.mrf.mxu0
    %1820 = vmatprep.mubr.bf16.mxu0 %v1134
    %1821 = vmatmul.mubr.bf16.gmra.mxu0 %v1133
    %v1822 = vpop.f32.mrf.mxu0
    %v1823 = vadd.f32 %v1534, %v1822
    %v1824 = vpop.f32.mrf.mxu0
    %v1825 = vpop.f32.mrf.mxu0
    %v1826 = vadd.f32 %v1537, %v1825
    %v1827 = vpop.f32.mrf.mxu0
    %1828 = vmatprep.mubr.bf16.mxu0 %v1138
    %1829 = vmatmul.mubr.bf16.gmra.mxu0 %v1137
    %v1830 = vpop.f32.mrf.mxu0
    %v1831 = vadd.f32 %v1542, %v1830
    %v1832 = vpop.f32.mrf.mxu0
    %v1833 = vpop.f32.mrf.mxu0
    %v1834 = vadd.f32 %v1545, %v1833
    %v1835 = vpop.f32.mrf.mxu0
    %1836 = vmatprep.mubr.bf16.mxu0 %v1142
    %1837 = vmatmul.mubr.bf16.gmra.mxu0 %v1141
    %v1838 = vpop.f32.mrf.mxu0
    %v1839 = vadd.f32 %v1550, %v1838
    %v1840 = vpop.f32.mrf.mxu0
    %v1841 = vpop.f32.mrf.mxu0
    %v1842 = vadd.f32 %v1553, %v1841
    %v1843 = vpop.f32.mrf.mxu0
    %1844 = vmatprep.mubr.bf16.mxu0 %v1146
    %1845 = vmatmul.mubr.bf16.gmra.mxu0 %v1145
    %v1846 = vpop.f32.mrf.mxu0
    %v1847 = vadd.f32 %v1558, %v1846
    %v1848 = vpop.f32.mrf.mxu0
    %v1849 = vpop.f32.mrf.mxu0
    %v1850 = vadd.f32 %v1561, %v1849
    %v1851 = vpop.f32.mrf.mxu0
    %1852 = vdwg.mxu0
    %v1853 = vmax.f32 %v1599, 0.0
    %v1854 = vmax.f32 %v1602, 0.0
    %v1855 = vmax.f32 %v1607, 0.0
    %v1856 = vmax.f32 %v1610, 0.0
    %v1857 = vmax.f32 %v1615, 0.0
    %v1858 = vmax.f32 %v1618, 0.0
    %v1859 = vmax.f32 %v1623, 0.0
    %v1860 = vmax.f32 %v1626, 0.0
    %v1861 = vmax.f32 %v1631, 0.0
    %v1862 = vmax.f32 %v1634, 0.0
    %v1863 = vmax.f32 %v1639, 0.0
    %v1864 = vmax.f32 %v1642, 0.0
    %v1865 = vmax.f32 %v1647, 0.0
    %v1866 = vmax.f32 %v1650, 0.0
    %v1867 = vmax.f32 %v1655, 0.0
    %v1868 = vmax.f32 %v1658, 0.0
    %v1869 = vmax.f32 %v1663, 0.0
    %v1870 = vmax.f32 %v1666, 0.0
    %v1871 = vmax.f32 %v1671, 0.0
    %v1872 = vmax.f32 %v1674, 0.0
    %v1873 = vmax.f32 %v1679, 0.0
    %v1874 = vmax.f32 %v1682, 0.0
    %v1875 = vmax.f32 %v1687, 0.0
    %v1876 = vmax.f32 %v1690, 0.0
    %v1877 = vmax.f32 %v1695, 0.0
    %v1878 = vmax.f32 %v1698, 0.0
    %v1879 = vmax.f32 %v1703, 0.0
    %v1880 = vmax.f32 %v1706, 0.0
    %v1881 = vmax.f32 %v1711, 0.0
    %v1882 = vmax.f32 %v1714, 0.0
    %v1883 = vmax.f32 %v1719, 0.0
    %v1884 = vmax.f32 %v1722, 0.0
    %v1885 = vmax.f32 %v1727, 0.0
    %v1886 = vmax.f32 %v1730, 0.0
    %v1887 = vmax.f32 %v1735, 0.0
    %v1888 = vmax.f32 %v1738, 0.0
    %v1889 = vmax.f32 %v1743, 0.0
    %v1890 = vmax.f32 %v1746, 0.0
    %v1891 = vmax.f32 %v1751, 0.0
    %v1892 = vmax.f32 %v1754, 0.0
    %v1893 = vmax.f32 %v1759, 0.0
    %v1894 = vmax.f32 %v1762, 0.0
    %v1895 = vmax.f32 %v1767, 0.0
    %v1896 = vmax.f32 %v1770, 0.0
    %v1897 = vmax.f32 %v1775, 0.0
    %v1898 = vmax.f32 %v1778, 0.0
    %v1899 = vmax.f32 %v1783, 0.0
    %v1900 = vmax.f32 %v1786, 0.0
    %v1901 = vmax.f32 %v1791, 0.0
    %v1902 = vmax.f32 %v1794, 0.0
    %v1903 = vmax.f32 %v1799, 0.0
    %v1904 = vmax.f32 %v1802, 0.0
    %v1905 = vmax.f32 %v1807, 0.0
    %v1906 = vmax.f32 %v1810, 0.0
    %v1907 = vmax.f32 %v1815, 0.0
    %v1908 = vmax.f32 %v1818, 0.0
    %v1909 = vmax.f32 %v1823, 0.0
    %v1910 = vmax.f32 %v1826, 0.0
    %v1911 = vmax.f32 %v1831, 0.0
    %v1912 = vmax.f32 %v1834, 0.0
    %v1913 = vmax.f32 %v1839, 0.0
    %v1914 = vmax.f32 %v1842, 0.0
    %v1915 = vmax.f32 %v1847, 0.0
    %v1916 = vmax.f32 %v1850, 0.0
    %v1917 = vadd.f32 %v1853, %v19
    %v1918 = vadd.f32 %v1854, %v20
    %v1919 = vadd.f32 %v1855, %v21
    %v1920 = vadd.f32 %v1856, %v22
    %v1921 = vadd.f32 %v1857, %v23
    %v1922 = vadd.f32 %v1858, %v24
    %v1923 = vadd.f32 %v1859, %v25
    %v1924 = vadd.f32 %v1860, %v26
    %v1925 = vadd.f32 %v1861, %v27
    %v1926 = vadd.f32 %v1862, %v28
    %v1927 = vadd.f32 %v1863, %v29
    %v1928 = vadd.f32 %v1864, %v30
    %v1929 = vadd.f32 %v1865, %v31
    %v1930 = vadd.f32 %v1866, %v32
    %v1931 = vadd.f32 %v1867, %v33
    %v1932 = vadd.f32 %v1868, %v34
    %v1933 = vadd.f32 %v1869, %v35
    %v1934 = vadd.f32 %v1870, %v36
    %v1935 = vadd.f32 %v1871, %v37
    %v1936 = vadd.f32 %v1872, %v38
    %v1937 = vadd.f32 %v1873, %v39
    %v1938 = vadd.f32 %v1874, %v40
    %v1939 = vadd.f32 %v1875, %v41
    %v1940 = vadd.f32 %v1876, %v42
    %v1941 = vadd.f32 %v1877, %v43
    %v1942 = vadd.f32 %v1878, %v44
    %v1943 = vadd.f32 %v1879, %v45
    %v1944 = vadd.f32 %v1880, %v46
    %v1945 = vadd.f32 %v1881, %v47
    %v1946 = vadd.f32 %v1882, %v48
    %v1947 = vadd.f32 %v1883, %v49
    %v1948 = vadd.f32 %v1884, %v50
    %v1949 = vadd.f32 %v1885, %v51
    %v1950 = vadd.f32 %v1886, %v52
    %v1951 = vadd.f32 %v1887, %v53
    %v1952 = vadd.f32 %v1888, %v54
    %v1953 = vadd.f32 %v1889, %v55
    %v1954 = vadd.f32 %v1890, %v56
    %v1955 = vadd.f32 %v1891, %v57
    %v1956 = vadd.f32 %v1892, %v58
    %v1957 = vadd.f32 %v1893, %v59
    %v1958 = vadd.f32 %v1894, %v60
    %v1959 = vadd.f32 %v1895, %v61
    %v1960 = vadd.f32 %v1896, %v62
    %v1961 = vadd.f32 %v1897, %v63
    %v1962 = vadd.f32 %v1898, %v64
    %v1963 = vadd.f32 %v1899, %v65
    %v1964 = vadd.f32 %v1900, %v66
    %v1965 = vadd.f32 %v1901, %v67
    %v1966 = vadd.f32 %v1902, %v68
    %v1967 = vadd.f32 %v1903, %v69
    %v1968 = vadd.f32 %v1904, %v70
    %v1969 = vadd.f32 %v1905, %v71
    %v1970 = vadd.f32 %v1906, %v72
    %v1971 = vadd.f32 %v1907, %v73
    %v1972 = vadd.f32 %v1908, %v74
    %v1973 = vadd.f32 %v1909, %v75
    %v1974 = vadd.f32 %v1910, %v76
    %v1975 = vadd.f32 %v1911, %v77
    %v1976 = vadd.f32 %v1912, %v78
    %v1977 = vadd.f32 %v1913, %v79
    %v1978 = vadd.f32 %v1914, %v80
    %v1979 = vadd.f32 %v1915, %v81
    %v1980 = vadd.f32 %v1916, %v82
    %v1981 = vpack.c.bf16 %v1918, %v1917
    %v1982 = vpack.c.bf16 %v1920, %v1919
    %v1983 = vpack.c.bf16 %v1922, %v1921
    %v1984 = vpack.c.bf16 %v1924, %v1923
    %v1985 = vpack.c.bf16 %v1926, %v1925
    %v1986 = vpack.c.bf16 %v1928, %v1927
    %v1987 = vpack.c.bf16 %v1930, %v1929
    %v1988 = vpack.c.bf16 %v1932, %v1931
    %v1989 = vpack.c.bf16 %v1934, %v1933
    %v1990 = vpack.c.bf16 %v1936, %v1935
    %v1991 = vpack.c.bf16 %v1938, %v1937
    %v1992 = vpack.c.bf16 %v1940, %v1939
    %v1993 = vpack.c.bf16 %v1942, %v1941
    %v1994 = vpack.c.bf16 %v1944, %v1943
    %v1995 = vpack.c.bf16 %v1946, %v1945
    %v1996 = vpack.c.bf16 %v1948, %v1947
    %v1997 = vpack.c.bf16 %v1950, %v1949
    %v1998 = vpack.c.bf16 %v1952, %v1951
    %v1999 = vpack.c.bf16 %v1954, %v1953
    %v2000 = vpack.c.bf16 %v1956, %v1955
    %v2001 = vpack.c.bf16 %v1958, %v1957
    %v2002 = vpack.c.bf16 %v1960, %v1959
    %v2003 = vpack.c.bf16 %v1962, %v1961
    %v2004 = vpack.c.bf16 %v1964, %v1963
    %v2005 = vpack.c.bf16 %v1966, %v1965
    %v2006 = vpack.c.bf16 %v1968, %v1967
    %v2007 = vpack.c.bf16 %v1970, %v1969
    %v2008 = vpack.c.bf16 %v1972, %v1971
    %v2009 = vpack.c.bf16 %v1974, %v1973
    %v2010 = vpack.c.bf16 %v1976, %v1975
    %v2011 = vpack.c.bf16 %v1978, %v1977
    %v2012 = vpack.c.bf16 %v1980, %v1979
    %s2013 = scalar_lea.vmem %s2, 64
    %v2014 = vld [vmem:[%s2013] sm:$0xf]
    %v2015 = vld [vmem:[%s2013 + $0x4] sm:$0xf]
    %v2016 = vld [vmem:[%s2013 + $0x8] sm:$0xf]
    %v2017 = vld [vmem:[%s2013 + $0xc] sm:$0xf]
    %v2018 = vld [vmem:[%s2013 + $0x10] sm:$0xf]
    %v2019 = vld [vmem:[%s2013 + $0x14] sm:$0xf]
    %v2020 = vld [vmem:[%s2013 + $0x18] sm:$0xf]
    %v2021 = vld [vmem:[%s2013 + $0x1c] sm:$0xf]
    %v2022 = vld [vmem:[%s2013 + $0x20] sm:$0xf]
    %v2023 = vld [vmem:[%s2013 + $0x24] sm:$0xf]
    %v2024 = vld [vmem:[%s2013 + $0x28] sm:$0xf]
    %v2025 = vld [vmem:[%s2013 + $0x2c] sm:$0xf]
    %v2026 = vld [vmem:[%s2013 + $0x30] sm:$0xf]
    %v2027 = vld [vmem:[%s2013 + $0x34] sm:$0xf]
    %v2028 = vld [vmem:[%s2013 + $0x38] sm:$0xf]
    %v2029 = vld [vmem:[%s2013 + $0x3c] sm:$0xf]
    %v2046 = vunpack.c.l.b16 %v2014
    %v2047 = vunpack.c.l.b16 %v2015
    %v2048 = vunpack.c.l.b16 %v2016
    %v2049 = vunpack.c.l.b16 %v2017
    %v2050 = vunpack.c.l.b16 %v2018
    %v2051 = vunpack.c.l.b16 %v2019
    %v2052 = vunpack.c.l.b16 %v2020
    %v2053 = vunpack.c.l.b16 %v2021
    %v2054 = vunpack.c.l.b16 %v2022
    %v2055 = vunpack.c.l.b16 %v2023
    %v2056 = vunpack.c.l.b16 %v2024
    %v2057 = vunpack.c.l.b16 %v2025
    %v2058 = vunpack.c.l.b16 %v2026
    %v2059 = vunpack.c.l.b16 %v2027
    %v2060 = vunpack.c.l.b16 %v2028
    %v2061 = vunpack.c.l.b16 %v2029
    %v2062 = vpack.c.b16 %v2047, %v2046
    %v2063 = vpack.c.b16 %v2049, %v2048
    %v2064 = vpack.c.b16 %v2051, %v2050
    %v2065 = vpack.c.b16 %v2053, %v2052
    %v2066 = vpack.c.b16 %v2055, %v2054
    %v2067 = vpack.c.b16 %v2057, %v2056
    %v2068 = vpack.c.b16 %v2059, %v2058
    %v2069 = vpack.c.b16 %v2061, %v2060
    %2078 = vmatprep.subr.bf16.mxu0 0
    %2079 = vmatpush1.bf16.msra.mxu0 %v2069
    %2080 = vmatprep.subr.bf16.mxu0 0
    %2081 = vmatpush1.bf16.msra.mxu0 %v2068
    %2082 = vmatprep.subr.bf16.mxu0 0
    %2083 = vmatpush1.bf16.msra.mxu0 %v2067
    %2084 = vmatprep.subr.bf16.mxu0 0
    %2085 = vmatpush1.bf16.msra.mxu0 %v2066
    %2086 = vmatprep.subr.bf16.mxu0 0
    %2087 = vmatpush1.bf16.msra.mxu0 %v2065
    %2088 = vmatprep.subr.bf16.mxu0 0
    %2089 = vmatpush1.bf16.msra.mxu0 %v2064
    %2090 = vmatprep.subr.bf16.mxu0 0
    %2091 = vmatpush1.bf16.msra.mxu0 %v2063
    %2092 = vmatprep.subr.bf16.mxu0 0
    %2093 = vmatpush1.bf16.msra.mxu0 %v2062
    %2094 = vmatprep.subr.bf16.mxu0 0
    %2095 = vmatpush2.bf16.msra.mxu0 0
    %2096 = vmatprep.subr.bf16.mxu0 0
    %2097 = vmatpush2.bf16.msra.mxu0 0
    %2098 = vmatprep.subr.bf16.mxu0 0
    %2099 = vmatpush2.bf16.msra.mxu0 0
    %2100 = vmatprep.subr.bf16.mxu0 0
    %2101 = vmatpush2.bf16.msra.mxu0 0
    %2102 = vmatprep.subr.bf16.mxu0 0
    %2103 = vmatpush2.bf16.msra.mxu0 0
    %2104 = vmatprep.subr.bf16.mxu0 0
    %2105 = vmatpush2.bf16.msra.mxu0 0
    %2106 = vmatprep.subr.bf16.mxu0 0
    %2107 = vmatpush2.bf16.msra.mxu0 0
    %2108 = vmatprep.subr.bf16.mxu0 0
    %2109 = vmatpush2.bf16.msra.mxu0 0
    %2110 = vmatprep.mubr.bf16.mxu0 0
    %2111 = vmatmul.mubr.bf16.gmra.mxu0 %v1981
    %v2112 = vpop.f32.mrf.mxu0
    %v2113 = vadd.f32 0.0, %v2112
    %v2114 = vpop.f32.mrf.mxu0
    %v2115 = vpop.f32.mrf.mxu0
    %v2116 = vadd.f32 0.0, %v2115
    %v2117 = vpop.f32.mrf.mxu0
    %2118 = vmatprep.mubr.bf16.mxu0 0
    %2119 = vmatmul.mubr.bf16.gmra.mxu0 %v1982
    %v2120 = vpop.f32.mrf.mxu0
    %v2121 = vadd.f32 0.0, %v2120
    %v2122 = vpop.f32.mrf.mxu0
    %v2123 = vpop.f32.mrf.mxu0
    %v2124 = vadd.f32 0.0, %v2123
    %v2125 = vpop.f32.mrf.mxu0
    %2126 = vmatprep.mubr.bf16.mxu0 0
    %2127 = vmatmul.mubr.bf16.gmra.mxu0 %v1983
    %v2128 = vpop.f32.mrf.mxu0
    %v2129 = vadd.f32 0.0, %v2128
    %v2130 = vpop.f32.mrf.mxu0
    %v2131 = vpop.f32.mrf.mxu0
    %v2132 = vadd.f32 0.0, %v2131
    %v2133 = vpop.f32.mrf.mxu0
    %2134 = vmatprep.mubr.bf16.mxu0 0
    %2135 = vmatmul.mubr.bf16.gmra.mxu0 %v1984
    %v2136 = vpop.f32.mrf.mxu0
    %v2137 = vadd.f32 0.0, %v2136
    %v2138 = vpop.f32.mrf.mxu0
    %v2139 = vpop.f32.mrf.mxu0
    %v2140 = vadd.f32 0.0, %v2139
    %v2141 = vpop.f32.mrf.mxu0
    %2142 = vmatprep.mubr.bf16.mxu0 0
    %2143 = vmatmul.mubr.bf16.gmra.mxu0 %v1985
    %v2144 = vpop.f32.mrf.mxu0
    %v2145 = vadd.f32 0.0, %v2144
    %v2146 = vpop.f32.mrf.mxu0
    %v2147 = vpop.f32.mrf.mxu0
    %v2148 = vadd.f32 0.0, %v2147
    %v2149 = vpop.f32.mrf.mxu0
    %2150 = vmatprep.mubr.bf16.mxu0 0
    %2151 = vmatmul.mubr.bf16.gmra.mxu0 %v1986
    %v2152 = vpop.f32.mrf.mxu0
    %v2153 = vadd.f32 0.0, %v2152
    %v2154 = vpop.f32.mrf.mxu0
    %v2155 = vpop.f32.mrf.mxu0
    %v2156 = vadd.f32 0.0, %v2155
    %v2157 = vpop.f32.mrf.mxu0
    %2158 = vmatprep.mubr.bf16.mxu0 0
    %2159 = vmatmul.mubr.bf16.gmra.mxu0 %v1987
    %v2160 = vpop.f32.mrf.mxu0
    %v2161 = vadd.f32 0.0, %v2160
    %v2162 = vpop.f32.mrf.mxu0
    %v2163 = vpop.f32.mrf.mxu0
    %v2164 = vadd.f32 0.0, %v2163
    %v2165 = vpop.f32.mrf.mxu0
    %2166 = vmatprep.mubr.bf16.mxu0 0
    %2167 = vmatmul.mubr.bf16.gmra.mxu0 %v1988
    %v2168 = vpop.f32.mrf.mxu0
    %v2169 = vadd.f32 0.0, %v2168
    %v2170 = vpop.f32.mrf.mxu0
    %v2171 = vpop.f32.mrf.mxu0
    %v2172 = vadd.f32 0.0, %v2171
    %v2173 = vpop.f32.mrf.mxu0
    %2174 = vmatprep.mubr.bf16.mxu0 0
    %2175 = vmatmul.mubr.bf16.gmra.mxu0 %v1989
    %v2176 = vpop.f32.mrf.mxu0
    %v2177 = vadd.f32 0.0, %v2176
    %v2178 = vpop.f32.mrf.mxu0
    %v2179 = vpop.f32.mrf.mxu0
    %v2180 = vadd.f32 0.0, %v2179
    %v2181 = vpop.f32.mrf.mxu0
    %2182 = vmatprep.mubr.bf16.mxu0 0
    %2183 = vmatmul.mubr.bf16.gmra.mxu0 %v1990
    %v2184 = vpop.f32.mrf.mxu0
    %v2185 = vadd.f32 0.0, %v2184
    %v2186 = vpop.f32.mrf.mxu0
    %v2187 = vpop.f32.mrf.mxu0
    %v2188 = vadd.f32 0.0, %v2187
    %v2189 = vpop.f32.mrf.mxu0
    %2190 = vmatprep.mubr.bf16.mxu0 0
    %2191 = vmatmul.mubr.bf16.gmra.mxu0 %v1991
    %v2192 = vpop.f32.mrf.mxu0
    %v2193 = vadd.f32 0.0, %v2192
    %v2194 = vpop.f32.mrf.mxu0
    %v2195 = vpop.f32.mrf.mxu0
    %v2196 = vadd.f32 0.0, %v2195
    %v2197 = vpop.f32.mrf.mxu0
    %2198 = vmatprep.mubr.bf16.mxu0 0
    %2199 = vmatmul.mubr.bf16.gmra.mxu0 %v1992
    %v2200 = vpop.f32.mrf.mxu0
    %v2201 = vadd.f32 0.0, %v2200
    %v2202 = vpop.f32.mrf.mxu0
    %v2203 = vpop.f32.mrf.mxu0
    %v2204 = vadd.f32 0.0, %v2203
    %v2205 = vpop.f32.mrf.mxu0
    %2206 = vmatprep.mubr.bf16.mxu0 0
    %2207 = vmatmul.mubr.bf16.gmra.mxu0 %v1993
    %v2208 = vpop.f32.mrf.mxu0
    %v2209 = vadd.f32 0.0, %v2208
    %v2210 = vpop.f32.mrf.mxu0
    %v2211 = vpop.f32.mrf.mxu0
    %v2212 = vadd.f32 0.0, %v2211
    %v2213 = vpop.f32.mrf.mxu0
    %2214 = vmatprep.mubr.bf16.mxu0 0
    %2215 = vmatmul.mubr.bf16.gmra.mxu0 %v1994
    %v2216 = vpop.f32.mrf.mxu0
    %v2217 = vadd.f32 0.0, %v2216
    %v2218 = vpop.f32.mrf.mxu0
    %v2219 = vpop.f32.mrf.mxu0
    %v2220 = vadd.f32 0.0, %v2219
    %v2221 = vpop.f32.mrf.mxu0
    %2222 = vmatprep.mubr.bf16.mxu0 0
    %2223 = vmatmul.mubr.bf16.gmra.mxu0 %v1995
    %v2224 = vpop.f32.mrf.mxu0
    %v2225 = vadd.f32 0.0, %v2224
    %v2226 = vpop.f32.mrf.mxu0
    %v2227 = vpop.f32.mrf.mxu0
    %v2228 = vadd.f32 0.0, %v2227
    %v2229 = vpop.f32.mrf.mxu0
    %2230 = vmatprep.mubr.bf16.mxu0 0
    %2231 = vmatmul.mubr.bf16.gmra.mxu0 %v1996
    %v2232 = vpop.f32.mrf.mxu0
    %v2233 = vadd.f32 0.0, %v2232
    %v2234 = vpop.f32.mrf.mxu0
    %v2235 = vpop.f32.mrf.mxu0
    %v2236 = vadd.f32 0.0, %v2235
    %v2237 = vpop.f32.mrf.mxu0
    %2238 = vmatprep.mubr.bf16.mxu0 0
    %2239 = vmatmul.mubr.bf16.gmra.mxu0 %v1997
    %v2240 = vpop.f32.mrf.mxu0
    %v2241 = vadd.f32 0.0, %v2240
    %v2242 = vpop.f32.mrf.mxu0
    %v2243 = vpop.f32.mrf.mxu0
    %v2244 = vadd.f32 0.0, %v2243
    %v2245 = vpop.f32.mrf.mxu0
    %2246 = vmatprep.mubr.bf16.mxu0 0
    %2247 = vmatmul.mubr.bf16.gmra.mxu0 %v1998
    %v2248 = vpop.f32.mrf.mxu0
    %v2249 = vadd.f32 0.0, %v2248
    %v2250 = vpop.f32.mrf.mxu0
    %v2251 = vpop.f32.mrf.mxu0
    %v2252 = vadd.f32 0.0, %v2251
    %v2253 = vpop.f32.mrf.mxu0
    %2254 = vmatprep.mubr.bf16.mxu0 0
    %2255 = vmatmul.mubr.bf16.gmra.mxu0 %v1999
    %v2256 = vpop.f32.mrf.mxu0
    %v2257 = vadd.f32 0.0, %v2256
    %v2258 = vpop.f32.mrf.mxu0
    %v2259 = vpop.f32.mrf.mxu0
    %v2260 = vadd.f32 0.0, %v2259
    %v2261 = vpop.f32.mrf.mxu0
    %2262 = vmatprep.mubr.bf16.mxu0 0
    %2263 = vmatmul.mubr.bf16.gmra.mxu0 %v2000
    %v2264 = vpop.f32.mrf.mxu0
    %v2265 = vadd.f32 0.0, %v2264
    %v2266 = vpop.f32.mrf.mxu0
    %v2267 = vpop.f32.mrf.mxu0
    %v2268 = vadd.f32 0.0, %v2267
    %v2269 = vpop.f32.mrf.mxu0
    %2270 = vmatprep.mubr.bf16.mxu0 0
    %2271 = vmatmul.mubr.bf16.gmra.mxu0 %v2001
    %v2272 = vpop.f32.mrf.mxu0
    %v2273 = vadd.f32 0.0, %v2272
    %v2274 = vpop.f32.mrf.mxu0
    %v2275 = vpop.f32.mrf.mxu0
    %v2276 = vadd.f32 0.0, %v2275
    %v2277 = vpop.f32.mrf.mxu0
    %2278 = vmatprep.mubr.bf16.mxu0 0
    %2279 = vmatmul.mubr.bf16.gmra.mxu0 %v2002
    %v2280 = vpop.f32.mrf.mxu0
    %v2281 = vadd.f32 0.0, %v2280
    %v2282 = vpop.f32.mrf.mxu0
    %v2283 = vpop.f32.mrf.mxu0
    %v2284 = vadd.f32 0.0, %v2283
    %v2285 = vpop.f32.mrf.mxu0
    %2286 = vmatprep.mubr.bf16.mxu0 0
    %2287 = vmatmul.mubr.bf16.gmra.mxu0 %v2003
    %v2288 = vpop.f32.mrf.mxu0
    %v2289 = vadd.f32 0.0, %v2288
    %v2290 = vpop.f32.mrf.mxu0
    %v2291 = vpop.f32.mrf.mxu0
    %v2292 = vadd.f32 0.0, %v2291
    %v2293 = vpop.f32.mrf.mxu0
    %2294 = vmatprep.mubr.bf16.mxu0 0
    %2295 = vmatmul.mubr.bf16.gmra.mxu0 %v2004
    %v2296 = vpop.f32.mrf.mxu0
    %v2297 = vadd.f32 0.0, %v2296
    %v2298 = vpop.f32.mrf.mxu0
    %v2299 = vpop.f32.mrf.mxu0
    %v2300 = vadd.f32 0.0, %v2299
    %v2301 = vpop.f32.mrf.mxu0
    %2302 = vmatprep.mubr.bf16.mxu0 0
    %2303 = vmatmul.mubr.bf16.gmra.mxu0 %v2005
    %v2304 = vpop.f32.mrf.mxu0
    %v2305 = vadd.f32 0.0, %v2304
    %v2306 = vpop.f32.mrf.mxu0
    %v2307 = vpop.f32.mrf.mxu0
    %v2308 = vadd.f32 0.0, %v2307
    %v2309 = vpop.f32.mrf.mxu0
    %2310 = vmatprep.mubr.bf16.mxu0 0
    %2311 = vmatmul.mubr.bf16.gmra.mxu0 %v2006
    %v2312 = vpop.f32.mrf.mxu0
    %v2313 = vadd.f32 0.0, %v2312
    %v2314 = vpop.f32.mrf.mxu0
    %v2315 = vpop.f32.mrf.mxu0
    %v2316 = vadd.f32 0.0, %v2315
    %v2317 = vpop.f32.mrf.mxu0
    %2318 = vmatprep.mubr.bf16.mxu0 0
    %2319 = vmatmul.mubr.bf16.gmra.mxu0 %v2007
    %v2320 = vpop.f32.mrf.mxu0
    %v2321 = vadd.f32 0.0, %v2320
    %v2322 = vpop.f32.mrf.mxu0
    %v2323 = vpop.f32.mrf.mxu0
    %v2324 = vadd.f32 0.0, %v2323
    %v2325 = vpop.f32.mrf.mxu0
    %2326 = vmatprep.mubr.bf16.mxu0 0
    %2327 = vmatmul.mubr.bf16.gmra.mxu0 %v2008
    %v2328 = vpop.f32.mrf.mxu0
    %v2329 = vadd.f32 0.0, %v2328
    %v2330 = vpop.f32.mrf.mxu0
    %v2331 = vpop.f32.mrf.mxu0
    %v2332 = vadd.f32 0.0, %v2331
    %v2333 = vpop.f32.mrf.mxu0
    %2334 = vmatprep.mubr.bf16.mxu0 0
    %2335 = vmatmul.mubr.bf16.gmra.mxu0 %v2009
    %v2336 = vpop.f32.mrf.mxu0
    %v2337 = vadd.f32 0.0, %v2336
    %v2338 = vpop.f32.mrf.mxu0
    %v2339 = vpop.f32.mrf.mxu0
    %v2340 = vadd.f32 0.0, %v2339
    %v2341 = vpop.f32.mrf.mxu0
    %2342 = vmatprep.mubr.bf16.mxu0 0
    %2343 = vmatmul.mubr.bf16.gmra.mxu0 %v2010
    %v2344 = vpop.f32.mrf.mxu0
    %v2345 = vadd.f32 0.0, %v2344
    %v2346 = vpop.f32.mrf.mxu0
    %v2347 = vpop.f32.mrf.mxu0
    %v2348 = vadd.f32 0.0, %v2347
    %v2349 = vpop.f32.mrf.mxu0
    %2350 = vmatprep.mubr.bf16.mxu0 0
    %2351 = vmatmul.mubr.bf16.gmra.mxu0 %v2011
    %v2352 = vpop.f32.mrf.mxu0
    %v2353 = vadd.f32 0.0, %v2352
    %v2354 = vpop.f32.mrf.mxu0
    %v2355 = vpop.f32.mrf.mxu0
    %v2356 = vadd.f32 0.0, %v2355
    %v2357 = vpop.f32.mrf.mxu0
    %2358 = vmatprep.mubr.bf16.mxu0 0
    %2359 = vmatmul.mubr.bf16.gmra.mxu0 %v2012
    %v2360 = vpop.f32.mrf.mxu0
    %v2361 = vadd.f32 0.0, %v2360
    %v2362 = vpop.f32.mrf.mxu0
    %v2363 = vpop.f32.mrf.mxu0
    %v2364 = vadd.f32 0.0, %v2363
    %v2365 = vpop.f32.mrf.mxu0
    %2366 = vdwg.mxu0
    %v2367 = vpack.c.bf16 %v2116, %v2113
    %v2368 = vpack.c.bf16 %v2124, %v2121
    %v2369 = vpack.c.bf16 %v2132, %v2129
    %v2370 = vpack.c.bf16 %v2140, %v2137
    %v2371 = vpack.c.bf16 %v2148, %v2145
    %v2372 = vpack.c.bf16 %v2156, %v2153
    %v2373 = vpack.c.bf16 %v2164, %v2161
    %v2374 = vpack.c.bf16 %v2172, %v2169
    %v2375 = vpack.c.bf16 %v2180, %v2177
    %v2376 = vpack.c.bf16 %v2188, %v2185
    %v2377 = vpack.c.bf16 %v2196, %v2193
    %v2378 = vpack.c.bf16 %v2204, %v2201
    %v2379 = vpack.c.bf16 %v2212, %v2209
    %v2380 = vpack.c.bf16 %v2220, %v2217
    %v2381 = vpack.c.bf16 %v2228, %v2225
    %v2382 = vpack.c.bf16 %v2236, %v2233
    %v2383 = vpack.c.bf16 %v2244, %v2241
    %v2384 = vpack.c.bf16 %v2252, %v2249
    %v2385 = vpack.c.bf16 %v2260, %v2257
    %v2386 = vpack.c.bf16 %v2268, %v2265
    %v2387 = vpack.c.bf16 %v2276, %v2273
    %v2388 = vpack.c.bf16 %v2284, %v2281
    %v2389 = vpack.c.bf16 %v2292, %v2289
    %v2390 = vpack.c.bf16 %v2300, %v2297
    %v2391 = vpack.c.bf16 %v2308, %v2305
    %v2392 = vpack.c.bf16 %v2316, %v2313
    %v2393 = vpack.c.bf16 %v2324, %v2321
    %v2394 = vpack.c.bf16 %v2332, %v2329
    %v2395 = vpack.c.bf16 %v2340, %v2337
    %v2396 = vpack.c.bf16 %v2348, %v2345
    %v2397 = vpack.c.bf16 %v2356, %v2353
    %v2398 = vpack.c.bf16 %v2364, %v2361
    %s2399 = scalar_lea.vmem %s3, 1
    %v2400 = vld [vmem:[%s2399] sm:$0x1]
    %v2402 = vlaneseq
    %v2403 = vshrl.u32 %v2402, 7
    %v2404 = vsub.s32 0, %v2403
    %v2405 = vrot.slane %v2400, %v2404
    %2407 = vmatprep.subr.bf16.mxu0 0
    %2408 = vmatpush1.bf16.msra.mxu0 %v2374
    %2409 = vmatprep.subr.bf16.mxu0 0
    %2410 = vmatpush1.bf16.msra.mxu0 %v2373
    %2411 = vmatprep.subr.bf16.mxu0 0
    %2412 = vmatpush1.bf16.msra.mxu0 %v2372
    %2413 = vmatprep.subr.bf16.mxu0 0
    %2414 = vmatpush1.bf16.msra.mxu0 %v2371
    %2415 = vmatprep.subr.bf16.mxu0 0
    %2416 = vmatpush1.bf16.msra.mxu0 %v2370
    %2417 = vmatprep.subr.bf16.mxu0 0
    %2418 = vmatpush1.bf16.msra.mxu0 %v2369
    %2419 = vmatprep.subr.bf16.mxu0 0
    %2420 = vmatpush1.bf16.msra.mxu0 %v2368
    %2421 = vmatprep.subr.bf16.mxu0 0
    %2422 = vmatpush1.bf16.msra.mxu0 %v2367
    %2423 = vmatprep.subr.bf16.mxu0 0
    %2424 = vmatpush2.bf16.msra.mxu0 %v2382
    %2425 = vmatprep.subr.bf16.mxu0 0
    %2426 = vmatpush2.bf16.msra.mxu0 %v2381
    %2427 = vmatprep.subr.bf16.mxu0 0
    %2428 = vmatpush2.bf16.msra.mxu0 %v2380
    %2429 = vmatprep.subr.bf16.mxu0 0
    %2430 = vmatpush2.bf16.msra.mxu0 %v2379
    %2431 = vmatprep.subr.bf16.mxu0 0
    %2432 = vmatpush2.bf16.msra.mxu0 %v2378
    %2433 = vmatprep.subr.bf16.mxu0 0
    %2434 = vmatpush2.bf16.msra.mxu0 %v2377
    %2435 = vmatprep.subr.bf16.mxu0 0
    %2436 = vmatpush2.bf16.msra.mxu0 %v2376
    %2437 = vmatprep.subr.bf16.mxu0 0
    %2438 = vmatpush2.bf16.msra.mxu0 %v2375
    %2439 = vmatprep.mubr.bf16.mxu0 %v1020
    %2440 = vmatmul.mubr.bf16.gmra.mxu0 %v1019
    %v2441 = vpop.f32.mrf.mxu0
    %v2442 = vadd.f32 %v2405, %v2441
    %v2443 = vpop.f32.mrf.mxu0
    %v2444 = vpop.f32.mrf.mxu0
    %v2445 = vadd.f32 %v2405, %v2444
    %v2446 = vpop.f32.mrf.mxu0
    %2447 = vmatprep.mubr.bf16.mxu0 %v1024
    %2448 = vmatmul.mubr.bf16.gmra.mxu0 %v1023
    %v2449 = vpop.f32.mrf.mxu0
    %v2450 = vadd.f32 %v2405, %v2449
    %v2451 = vpop.f32.mrf.mxu0
    %v2452 = vpop.f32.mrf.mxu0
    %v2453 = vadd.f32 %v2405, %v2452
    %v2454 = vpop.f32.mrf.mxu0
    %2455 = vmatprep.mubr.bf16.mxu0 %v1028
    %2456 = vmatmul.mubr.bf16.gmra.mxu0 %v1027
    %v2457 = vpop.f32.mrf.mxu0
    %v2458 = vadd.f32 %v2405, %v2457
    %v2459 = vpop.f32.mrf.mxu0
    %v2460 = vpop.f32.mrf.mxu0
    %v2461 = vadd.f32 %v2405, %v2460
    %v2462 = vpop.f32.mrf.mxu0
    %2463 = vmatprep.mubr.bf16.mxu0 %v1032
    %2464 = vmatmul.mubr.bf16.gmra.mxu0 %v1031
    %v2465 = vpop.f32.mrf.mxu0
    %v2466 = vadd.f32 %v2405, %v2465
    %v2467 = vpop.f32.mrf.mxu0
    %v2468 = vpop.f32.mrf.mxu0
    %v2469 = vadd.f32 %v2405, %v2468
    %v2470 = vpop.f32.mrf.mxu0
    %2471 = vmatprep.mubr.bf16.mxu0 %v1036
    %2472 = vmatmul.mubr.bf16.gmra.mxu0 %v1035
    %v2473 = vpop.f32.mrf.mxu0
    %v2474 = vadd.f32 %v2405, %v2473
    %v2475 = vpop.f32.mrf.mxu0
    %v2476 = vpop.f32.mrf.mxu0
    %v2477 = vadd.f32 %v2405, %v2476
    %v2478 = vpop.f32.mrf.mxu0
    %2479 = vmatprep.mubr.bf16.mxu0 %v1040
    %2480 = vmatmul.mubr.bf16.gmra.mxu0 %v1039
    %v2481 = vpop.f32.mrf.mxu0
    %v2482 = vadd.f32 %v2405, %v2481
    %v2483 = vpop.f32.mrf.mxu0
    %v2484 = vpop.f32.mrf.mxu0
    %v2485 = vadd.f32 %v2405, %v2484
    %v2486 = vpop.f32.mrf.mxu0
    %2487 = vmatprep.mubr.bf16.mxu0 %v1044
    %2488 = vmatmul.mubr.bf16.gmra.mxu0 %v1043
    %v2489 = vpop.f32.mrf.mxu0
    %v2490 = vadd.f32 %v2405, %v2489
    %v2491 = vpop.f32.mrf.mxu0
    %v2492 = vpop.f32.mrf.mxu0
    %v2493 = vadd.f32 %v2405, %v2492
    %v2494 = vpop.f32.mrf.mxu0
    %2495 = vmatprep.mubr.bf16.mxu0 %v1048
    %2496 = vmatmul.mubr.bf16.gmra.mxu0 %v1047
    %v2497 = vpop.f32.mrf.mxu0
    %v2498 = vadd.f32 %v2405, %v2497
    %v2499 = vpop.f32.mrf.mxu0
    %v2500 = vpop.f32.mrf.mxu0
    %v2501 = vadd.f32 %v2405, %v2500
    %v2502 = vpop.f32.mrf.mxu0
    %2503 = vmatprep.mubr.bf16.mxu0 %v1052
    %2504 = vmatmul.mubr.bf16.gmra.mxu0 %v1051
    %v2505 = vpop.f32.mrf.mxu0
    %v2506 = vadd.f32 %v2405, %v2505
    %v2507 = vpop.f32.mrf.mxu0
    %v2508 = vpop.f32.mrf.mxu0
    %v2509 = vadd.f32 %v2405, %v2508
    %v2510 = vpop.f32.mrf.mxu0
    %2511 = vmatprep.mubr.bf16.mxu0 %v1056
    %2512 = vmatmul.mubr.bf16.gmra.mxu0 %v1055
    %v2513 = vpop.f32.mrf.mxu0
    %v2514 = vadd.f32 %v2405, %v2513
    %v2515 = vpop.f32.mrf.mxu0
    %v2516 = vpop.f32.mrf.mxu0
    %v2517 = vadd.f32 %v2405, %v2516
    %v2518 = vpop.f32.mrf.mxu0
    %2519 = vmatprep.mubr.bf16.mxu0 %v1060
    %2520 = vmatmul.mubr.bf16.gmra.mxu0 %v1059
    %v2521 = vpop.f32.mrf.mxu0
    %v2522 = vadd.f32 %v2405, %v2521
    %v2523 = vpop.f32.mrf.mxu0
    %v2524 = vpop.f32.mrf.mxu0
    %v2525 = vadd.f32 %v2405, %v2524
    %v2526 = vpop.f32.mrf.mxu0
    %2527 = vmatprep.mubr.bf16.mxu0 %v1064
    %2528 = vmatmul.mubr.bf16.gmra.mxu0 %v1063
    %v2529 = vpop.f32.mrf.mxu0
    %v2530 = vadd.f32 %v2405, %v2529
    %v2531 = vpop.f32.mrf.mxu0
    %v2532 = vpop.f32.mrf.mxu0
    %v2533 = vadd.f32 %v2405, %v2532
    %v2534 = vpop.f32.mrf.mxu0
    %2535 = vmatprep.mubr.bf16.mxu0 %v1068
    %2536 = vmatmul.mubr.bf16.gmra.mxu0 %v1067
    %v2537 = vpop.f32.mrf.mxu0
    %v2538 = vadd.f32 %v2405, %v2537
    %v2539 = vpop.f32.mrf.mxu0
    %v2540 = vpop.f32.mrf.mxu0
    %v2541 = vadd.f32 %v2405, %v2540
    %v2542 = vpop.f32.mrf.mxu0
    %2543 = vmatprep.mubr.bf16.mxu0 %v1072
    %2544 = vmatmul.mubr.bf16.gmra.mxu0 %v1071
    %v2545 = vpop.f32.mrf.mxu0
    %v2546 = vadd.f32 %v2405, %v2545
    %v2547 = vpop.f32.mrf.mxu0
    %v2548 = vpop.f32.mrf.mxu0
    %v2549 = vadd.f32 %v2405, %v2548
    %v2550 = vpop.f32.mrf.mxu0
    %2551 = vmatprep.mubr.bf16.mxu0 %v1076
    %2552 = vmatmul.mubr.bf16.gmra.mxu0 %v1075
    %v2553 = vpop.f32.mrf.mxu0
    %v2554 = vadd.f32 %v2405, %v2553
    %v2555 = vpop.f32.mrf.mxu0
    %v2556 = vpop.f32.mrf.mxu0
    %v2557 = vadd.f32 %v2405, %v2556
    %v2558 = vpop.f32.mrf.mxu0
    %2559 = vmatprep.mubr.bf16.mxu0 %v1080
    %2560 = vmatmul.mubr.bf16.gmra.mxu0 %v1079
    %v2561 = vpop.f32.mrf.mxu0
    %v2562 = vadd.f32 %v2405, %v2561
    %v2563 = vpop.f32.mrf.mxu0
    %v2564 = vpop.f32.mrf.mxu0
    %v2565 = vadd.f32 %v2405, %v2564
    %v2566 = vpop.f32.mrf.mxu0
    %2567 = vmatprep.mubr.bf16.mxu0 %v1084
    %2568 = vmatmul.mubr.bf16.gmra.mxu0 %v1083
    %v2569 = vpop.f32.mrf.mxu0
    %v2570 = vadd.f32 %v2405, %v2569
    %v2571 = vpop.f32.mrf.mxu0
    %v2572 = vpop.f32.mrf.mxu0
    %v2573 = vadd.f32 %v2405, %v2572
    %v2574 = vpop.f32.mrf.mxu0
    %2575 = vmatprep.mubr.bf16.mxu0 %v1088
    %2576 = vmatmul.mubr.bf16.gmra.mxu0 %v1087
    %v2577 = vpop.f32.mrf.mxu0
    %v2578 = vadd.f32 %v2405, %v2577
    %v2579 = vpop.f32.mrf.mxu0
    %v2580 = vpop.f32.mrf.mxu0
    %v2581 = vadd.f32 %v2405, %v2580
    %v2582 = vpop.f32.mrf.mxu0
    %2583 = vmatprep.mubr.bf16.mxu0 %v1092
    %2584 = vmatmul.mubr.bf16.gmra.mxu0 %v1091
    %v2585 = vpop.f32.mrf.mxu0
    %v2586 = vadd.f32 %v2405, %v2585
    %v2587 = vpop.f32.mrf.mxu0
    %v2588 = vpop.f32.mrf.mxu0
    %v2589 = vadd.f32 %v2405, %v2588
    %v2590 = vpop.f32.mrf.mxu0
    %2591 = vmatprep.mubr.bf16.mxu0 %v1096
    %2592 = vmatmul.mubr.bf16.gmra.mxu0 %v1095
    %v2593 = vpop.f32.mrf.mxu0
    %v2594 = vadd.f32 %v2405, %v2593
    %v2595 = vpop.f32.mrf.mxu0
    %v2596 = vpop.f32.mrf.mxu0
    %v2597 = vadd.f32 %v2405, %v2596
    %v2598 = vpop.f32.mrf.mxu0
    %2599 = vmatprep.mubr.bf16.mxu0 %v1100
    %2600 = vmatmul.mubr.bf16.gmra.mxu0 %v1099
    %v2601 = vpop.f32.mrf.mxu0
    %v2602 = vadd.f32 %v2405, %v2601
    %v2603 = vpop.f32.mrf.mxu0
    %v2604 = vpop.f32.mrf.mxu0
    %v2605 = vadd.f32 %v2405, %v2604
    %v2606 = vpop.f32.mrf.mxu0
    %2607 = vmatprep.mubr.bf16.mxu0 %v1104
    %2608 = vmatmul.mubr.bf16.gmra.mxu0 %v1103
    %v2609 = vpop.f32.mrf.mxu0
    %v2610 = vadd.f32 %v2405, %v2609
    %v2611 = vpop.f32.mrf.mxu0
    %v2612 = vpop.f32.mrf.mxu0
    %v2613 = vadd.f32 %v2405, %v2612
    %v2614 = vpop.f32.mrf.mxu0
    %2615 = vmatprep.mubr.bf16.mxu0 %v1108
    %2616 = vmatmul.mubr.bf16.gmra.mxu0 %v1107
    %v2617 = vpop.f32.mrf.mxu0
    %v2618 = vadd.f32 %v2405, %v2617
    %v2619 = vpop.f32.mrf.mxu0
    %v2620 = vpop.f32.mrf.mxu0
    %v2621 = vadd.f32 %v2405, %v2620
    %v2622 = vpop.f32.mrf.mxu0
    %2623 = vmatprep.mubr.bf16.mxu0 %v1112
    %2624 = vmatmul.mubr.bf16.gmra.mxu0 %v1111
    %v2625 = vpop.f32.mrf.mxu0
    %v2626 = vadd.f32 %v2405, %v2625
    %v2627 = vpop.f32.mrf.mxu0
    %v2628 = vpop.f32.mrf.mxu0
    %v2629 = vadd.f32 %v2405, %v2628
    %v2630 = vpop.f32.mrf.mxu0
    %2631 = vmatprep.mubr.bf16.mxu0 %v1116
    %2632 = vmatmul.mubr.bf16.gmra.mxu0 %v1115
    %v2633 = vpop.f32.mrf.mxu0
    %v2634 = vadd.f32 %v2405, %v2633
    %v2635 = vpop.f32.mrf.mxu0
    %v2636 = vpop.f32.mrf.mxu0
    %v2637 = vadd.f32 %v2405, %v2636
    %v2638 = vpop.f32.mrf.mxu0
    %2639 = vmatprep.mubr.bf16.mxu0 %v1120
    %2640 = vmatmul.mubr.bf16.gmra.mxu0 %v1119
    %v2641 = vpop.f32.mrf.mxu0
    %v2642 = vadd.f32 %v2405, %v2641
    %v2643 = vpop.f32.mrf.mxu0
    %v2644 = vpop.f32.mrf.mxu0
    %v2645 = vadd.f32 %v2405, %v2644
    %v2646 = vpop.f32.mrf.mxu0
    %2647 = vmatprep.mubr.bf16.mxu0 %v1124
    %2648 = vmatmul.mubr.bf16.gmra.mxu0 %v1123
    %v2649 = vpop.f32.mrf.mxu0
    %v2650 = vadd.f32 %v2405, %v2649
    %v2651 = vpop.f32.mrf.mxu0
    %v2652 = vpop.f32.mrf.mxu0
    %v2653 = vadd.f32 %v2405, %v2652
    %v2654 = vpop.f32.mrf.mxu0
    %2655 = vmatprep.mubr.bf16.mxu0 %v1128
    %2656 = vmatmul.mubr.bf16.gmra.mxu0 %v1127
    %v2657 = vpop.f32.mrf.mxu0
    %v2658 = vadd.f32 %v2405, %v2657
    %v2659 = vpop.f32.mrf.mxu0
    %v2660 = vpop.f32.mrf.mxu0
    %v2661 = vadd.f32 %v2405, %v2660
    %v2662 = vpop.f32.mrf.mxu0
    %2663 = vmatprep.mubr.bf16.mxu0 %v1132
    %2664 = vmatmul.mubr.bf16.gmra.mxu0 %v1131
    %v2665 = vpop.f32.mrf.mxu0
    %v2666 = vadd.f32 %v2405, %v2665
    %v2667 = vpop.f32.mrf.mxu0
    %v2668 = vpop.f32.mrf.mxu0
    %v2669 = vadd.f32 %v2405, %v2668
    %v2670 = vpop.f32.mrf.mxu0
    %2671 = vmatprep.mubr.bf16.mxu0 %v1136
    %2672 = vmatmul.mubr.bf16.gmra.mxu0 %v1135
    %v2673 = vpop.f32.mrf.mxu0
    %v2674 = vadd.f32 %v2405, %v2673
    %v2675 = vpop.f32.mrf.mxu0
    %v2676 = vpop.f32.mrf.mxu0
    %v2677 = vadd.f32 %v2405, %v2676
    %v2678 = vpop.f32.mrf.mxu0
    %2679 = vmatprep.mubr.bf16.mxu0 %v1140
    %2680 = vmatmul.mubr.bf16.gmra.mxu0 %v1139
    %v2681 = vpop.f32.mrf.mxu0
    %v2682 = vadd.f32 %v2405, %v2681
    %v2683 = vpop.f32.mrf.mxu0
    %v2684 = vpop.f32.mrf.mxu0
    %v2685 = vadd.f32 %v2405, %v2684
    %v2686 = vpop.f32.mrf.mxu0
    %2687 = vmatprep.mubr.bf16.mxu0 %v1144
    %2688 = vmatmul.mubr.bf16.gmra.mxu0 %v1143
    %v2689 = vpop.f32.mrf.mxu0
    %v2690 = vadd.f32 %v2405, %v2689
    %v2691 = vpop.f32.mrf.mxu0
    %v2692 = vpop.f32.mrf.mxu0
    %v2693 = vadd.f32 %v2405, %v2692
    %v2694 = vpop.f32.mrf.mxu0
    %2695 = vdwg.mxu0
    %2696 = vmatprep.subr.bf16.mxu0 0
    %2697 = vmatpush1.bf16.msra.mxu0 %v2390
    %2698 = vmatprep.subr.bf16.mxu0 0
    %2699 = vmatpush1.bf16.msra.mxu0 %v2389
    %2700 = vmatprep.subr.bf16.mxu0 0
    %2701 = vmatpush1.bf16.msra.mxu0 %v2388
    %2702 = vmatprep.subr.bf16.mxu0 0
    %2703 = vmatpush1.bf16.msra.mxu0 %v2387
    %2704 = vmatprep.subr.bf16.mxu0 0
    %2705 = vmatpush1.bf16.msra.mxu0 %v2386
    %2706 = vmatprep.subr.bf16.mxu0 0
    %2707 = vmatpush1.bf16.msra.mxu0 %v2385
    %2708 = vmatprep.subr.bf16.mxu0 0
    %2709 = vmatpush1.bf16.msra.mxu0 %v2384
    %2710 = vmatprep.subr.bf16.mxu0 0
    %2711 = vmatpush1.bf16.msra.mxu0 %v2383
    %2712 = vmatprep.subr.bf16.mxu0 0
    %2713 = vmatpush2.bf16.msra.mxu0 %v2398
    %2714 = vmatprep.subr.bf16.mxu0 0
    %2715 = vmatpush2.bf16.msra.mxu0 %v2397
    %2716 = vmatprep.subr.bf16.mxu0 0
    %2717 = vmatpush2.bf16.msra.mxu0 %v2396
    %2718 = vmatprep.subr.bf16.mxu0 0
    %2719 = vmatpush2.bf16.msra.mxu0 %v2395
    %2720 = vmatprep.subr.bf16.mxu0 0
    %2721 = vmatpush2.bf16.msra.mxu0 %v2394
    %2722 = vmatprep.subr.bf16.mxu0 0
    %2723 = vmatpush2.bf16.msra.mxu0 %v2393
    %2724 = vmatprep.subr.bf16.mxu0 0
    %2725 = vmatpush2.bf16.msra.mxu0 %v2392
    %2726 = vmatprep.subr.bf16.mxu0 0
    %2727 = vmatpush2.bf16.msra.mxu0 %v2391
    %2728 = vmatprep.mubr.bf16.mxu0 %v1022
    %2729 = vmatmul.mubr.bf16.gmra.mxu0 %v1021
    %v2730 = vpop.f32.mrf.mxu0
    %v2731 = vadd.f32 %v2442, %v2730
    %v2732 = vpop.f32.mrf.mxu0
    %v2733 = vpop.f32.mrf.mxu0
    %v2734 = vadd.f32 %v2445, %v2733
    %v2735 = vpop.f32.mrf.mxu0
    %2736 = vmatprep.mubr.bf16.mxu0 %v1026
    %2737 = vmatmul.mubr.bf16.gmra.mxu0 %v1025
    %v2738 = vpop.f32.mrf.mxu0
    %v2739 = vadd.f32 %v2450, %v2738
    %v2740 = vpop.f32.mrf.mxu0
    %v2741 = vpop.f32.mrf.mxu0
    %v2742 = vadd.f32 %v2453, %v2741
    %v2743 = vpop.f32.mrf.mxu0
    %2744 = vmatprep.mubr.bf16.mxu0 %v1030
    %2745 = vmatmul.mubr.bf16.gmra.mxu0 %v1029
    %v2746 = vpop.f32.mrf.mxu0
    %v2747 = vadd.f32 %v2458, %v2746
    %v2748 = vpop.f32.mrf.mxu0
    %v2749 = vpop.f32.mrf.mxu0
    %v2750 = vadd.f32 %v2461, %v2749
    %v2751 = vpop.f32.mrf.mxu0
    %2752 = vmatprep.mubr.bf16.mxu0 %v1034
    %2753 = vmatmul.mubr.bf16.gmra.mxu0 %v1033
    %v2754 = vpop.f32.mrf.mxu0
    %v2755 = vadd.f32 %v2466, %v2754
    %v2756 = vpop.f32.mrf.mxu0
    %v2757 = vpop.f32.mrf.mxu0
    %v2758 = vadd.f32 %v2469, %v2757
    %v2759 = vpop.f32.mrf.mxu0
    %2760 = vmatprep.mubr.bf16.mxu0 %v1038
    %2761 = vmatmul.mubr.bf16.gmra.mxu0 %v1037
    %v2762 = vpop.f32.mrf.mxu0
    %v2763 = vadd.f32 %v2474, %v2762
    %v2764 = vpop.f32.mrf.mxu0
    %v2765 = vpop.f32.mrf.mxu0
    %v2766 = vadd.f32 %v2477, %v2765
    %v2767 = vpop.f32.mrf.mxu0
    %2768 = vmatprep.mubr.bf16.mxu0 %v1042
    %2769 = vmatmul.mubr.bf16.gmra.mxu0 %v1041
    %v2770 = vpop.f32.mrf.mxu0
    %v2771 = vadd.f32 %v2482, %v2770
    %v2772 = vpop.f32.mrf.mxu0
    %v2773 = vpop.f32.mrf.mxu0
    %v2774 = vadd.f32 %v2485, %v2773
    %v2775 = vpop.f32.mrf.mxu0
    %2776 = vmatprep.mubr.bf16.mxu0 %v1046
    %2777 = vmatmul.mubr.bf16.gmra.mxu0 %v1045
    %v2778 = vpop.f32.mrf.mxu0
    %v2779 = vadd.f32 %v2490, %v2778
    %v2780 = vpop.f32.mrf.mxu0
    %v2781 = vpop.f32.mrf.mxu0
    %v2782 = vadd.f32 %v2493, %v2781
    %v2783 = vpop.f32.mrf.mxu0
    %2784 = vmatprep.mubr.bf16.mxu0 %v1050
    %2785 = vmatmul.mubr.bf16.gmra.mxu0 %v1049
    %v2786 = vpop.f32.mrf.mxu0
    %v2787 = vadd.f32 %v2498, %v2786
    %v2788 = vpop.f32.mrf.mxu0
    %v2789 = vpop.f32.mrf.mxu0
    %v2790 = vadd.f32 %v2501, %v2789
    %v2791 = vpop.f32.mrf.mxu0
    %2792 = vmatprep.mubr.bf16.mxu0 %v1054
    %2793 = vmatmul.mubr.bf16.gmra.mxu0 %v1053
    %v2794 = vpop.f32.mrf.mxu0
    %v2795 = vadd.f32 %v2506, %v2794
    %v2796 = vpop.f32.mrf.mxu0
    %v2797 = vpop.f32.mrf.mxu0
    %v2798 = vadd.f32 %v2509, %v2797
    %v2799 = vpop.f32.mrf.mxu0
    %2800 = vmatprep.mubr.bf16.mxu0 %v1058
    %2801 = vmatmul.mubr.bf16.gmra.mxu0 %v1057
    %v2802 = vpop.f32.mrf.mxu0
    %v2803 = vadd.f32 %v2514, %v2802
    %v2804 = vpop.f32.mrf.mxu0
    %v2805 = vpop.f32.mrf.mxu0
    %v2806 = vadd.f32 %v2517, %v2805
    %v2807 = vpop.f32.mrf.mxu0
    %2808 = vmatprep.mubr.bf16.mxu0 %v1062
    %2809 = vmatmul.mubr.bf16.gmra.mxu0 %v1061
    %v2810 = vpop.f32.mrf.mxu0
    %v2811 = vadd.f32 %v2522, %v2810
    %v2812 = vpop.f32.mrf.mxu0
    %v2813 = vpop.f32.mrf.mxu0
    %v2814 = vadd.f32 %v2525, %v2813
    %v2815 = vpop.f32.mrf.mxu0
    %2816 = vmatprep.mubr.bf16.mxu0 %v1066
    %2817 = vmatmul.mubr.bf16.gmra.mxu0 %v1065
    %v2818 = vpop.f32.mrf.mxu0
    %v2819 = vadd.f32 %v2530, %v2818
    %v2820 = vpop.f32.mrf.mxu0
    %v2821 = vpop.f32.mrf.mxu0
    %v2822 = vadd.f32 %v2533, %v2821
    %v2823 = vpop.f32.mrf.mxu0
    %2824 = vmatprep.mubr.bf16.mxu0 %v1070
    %2825 = vmatmul.mubr.bf16.gmra.mxu0 %v1069
    %v2826 = vpop.f32.mrf.mxu0
    %v2827 = vadd.f32 %v2538, %v2826
    %v2828 = vpop.f32.mrf.mxu0
    %v2829 = vpop.f32.mrf.mxu0
    %v2830 = vadd.f32 %v2541, %v2829
    %v2831 = vpop.f32.mrf.mxu0
    %2832 = vmatprep.mubr.bf16.mxu0 %v1074
    %2833 = vmatmul.mubr.bf16.gmra.mxu0 %v1073
    %v2834 = vpop.f32.mrf.mxu0
    %v2835 = vadd.f32 %v2546, %v2834
    %v2836 = vpop.f32.mrf.mxu0
    %v2837 = vpop.f32.mrf.mxu0
    %v2838 = vadd.f32 %v2549, %v2837
    %v2839 = vpop.f32.mrf.mxu0
    %2840 = vmatprep.mubr.bf16.mxu0 %v1078
    %2841 = vmatmul.mubr.bf16.gmra.mxu0 %v1077
    %v2842 = vpop.f32.mrf.mxu0
    %v2843 = vadd.f32 %v2554, %v2842
    %v2844 = vpop.f32.mrf.mxu0
    %v2845 = vpop.f32.mrf.mxu0
    %v2846 = vadd.f32 %v2557, %v2845
    %v2847 = vpop.f32.mrf.mxu0
    %2848 = vmatprep.mubr.bf16.mxu0 %v1082
    %2849 = vmatmul.mubr.bf16.gmra.mxu0 %v1081
    %v2850 = vpop.f32.mrf.mxu0
    %v2851 = vadd.f32 %v2562, %v2850
    %v2852 = vpop.f32.mrf.mxu0
    %v2853 = vpop.f32.mrf.mxu0
    %v2854 = vadd.f32 %v2565, %v2853
    %v2855 = vpop.f32.mrf.mxu0
    %2856 = vmatprep.mubr.bf16.mxu0 %v1086
    %2857 = vmatmul.mubr.bf16.gmra.mxu0 %v1085
    %v2858 = vpop.f32.mrf.mxu0
    %v2859 = vadd.f32 %v2570, %v2858
    %v2860 = vpop.f32.mrf.mxu0
    %v2861 = vpop.f32.mrf.mxu0
    %v2862 = vadd.f32 %v2573, %v2861
    %v2863 = vpop.f32.mrf.mxu0
    %2864 = vmatprep.mubr.bf16.mxu0 %v1090
    %2865 = vmatmul.mubr.bf16.gmra.mxu0 %v1089
    %v2866 = vpop.f32.mrf.mxu0
    %v2867 = vadd.f32 %v2578, %v2866
    %v2868 = vpop.f32.mrf.mxu0
    %v2869 = vpop.f32.mrf.mxu0
    %v2870 = vadd.f32 %v2581, %v2869
    %v2871 = vpop.f32.mrf.mxu0
    %2872 = vmatprep.mubr.bf16.mxu0 %v1094
    %2873 = vmatmul.mubr.bf16.gmra.mxu0 %v1093
    %v2874 = vpop.f32.mrf.mxu0
    %v2875 = vadd.f32 %v2586, %v2874
    %v2876 = vpop.f32.mrf.mxu0
    %v2877 = vpop.f32.mrf.mxu0
    %v2878 = vadd.f32 %v2589, %v2877
    %v2879 = vpop.f32.mrf.mxu0
    %2880 = vmatprep.mubr.bf16.mxu0 %v1098
    %2881 = vmatmul.mubr.bf16.gmra.mxu0 %v1097
    %v2882 = vpop.f32.mrf.mxu0
    %v2883 = vadd.f32 %v2594, %v2882
    %v2884 = vpop.f32.mrf.mxu0
    %v2885 = vpop.f32.mrf.mxu0
    %v2886 = vadd.f32 %v2597, %v2885
    %v2887 = vpop.f32.mrf.mxu0
    %2888 = vmatprep.mubr.bf16.mxu0 %v1102
    %2889 = vmatmul.mubr.bf16.gmra.mxu0 %v1101
    %v2890 = vpop.f32.mrf.mxu0
    %v2891 = vadd.f32 %v2602, %v2890
    %v2892 = vpop.f32.mrf.mxu0
    %v2893 = vpop.f32.mrf.mxu0
    %v2894 = vadd.f32 %v2605, %v2893
    %v2895 = vpop.f32.mrf.mxu0
    %2896 = vmatprep.mubr.bf16.mxu0 %v1106
    %2897 = vmatmul.mubr.bf16.gmra.mxu0 %v1105
    %v2898 = vpop.f32.mrf.mxu0
    %v2899 = vadd.f32 %v2610, %v2898
    %v2900 = vpop.f32.mrf.mxu0
    %v2901 = vpop.f32.mrf.mxu0
    %v2902 = vadd.f32 %v2613, %v2901
    %v2903 = vpop.f32.mrf.mxu0
    %2904 = vmatprep.mubr.bf16.mxu0 %v1110
    %2905 = vmatmul.mubr.bf16.gmra.mxu0 %v1109
    %v2906 = vpop.f32.mrf.mxu0
    %v2907 = vadd.f32 %v2618, %v2906
    %v2908 = vpop.f32.mrf.mxu0
    %v2909 = vpop.f32.mrf.mxu0
    %v2910 = vadd.f32 %v2621, %v2909
    %v2911 = vpop.f32.mrf.mxu0
    %2912 = vmatprep.mubr.bf16.mxu0 %v1114
    %2913 = vmatmul.mubr.bf16.gmra.mxu0 %v1113
    %v2914 = vpop.f32.mrf.mxu0
    %v2915 = vadd.f32 %v2626, %v2914
    %v2916 = vpop.f32.mrf.mxu0
    %v2917 = vpop.f32.mrf.mxu0
    %v2918 = vadd.f32 %v2629, %v2917
    %v2919 = vpop.f32.mrf.mxu0
    %2920 = vmatprep.mubr.bf16.mxu0 %v1118
    %2921 = vmatmul.mubr.bf16.gmra.mxu0 %v1117
    %v2922 = vpop.f32.mrf.mxu0
    %v2923 = vadd.f32 %v2634, %v2922
    %v2924 = vpop.f32.mrf.mxu0
    %v2925 = vpop.f32.mrf.mxu0
    %v2926 = vadd.f32 %v2637, %v2925
    %v2927 = vpop.f32.mrf.mxu0
    %2928 = vmatprep.mubr.bf16.mxu0 %v1122
    %2929 = vmatmul.mubr.bf16.gmra.mxu0 %v1121
    %v2930 = vpop.f32.mrf.mxu0
    %v2931 = vadd.f32 %v2642, %v2930
    %v2932 = vpop.f32.mrf.mxu0
    %v2933 = vpop.f32.mrf.mxu0
    %v2934 = vadd.f32 %v2645, %v2933
    %v2935 = vpop.f32.mrf.mxu0
    %2936 = vmatprep.mubr.bf16.mxu0 %v1126
    %2937 = vmatmul.mubr.bf16.gmra.mxu0 %v1125
    %v2938 = vpop.f32.mrf.mxu0
    %v2939 = vadd.f32 %v2650, %v2938
    %v2940 = vpop.f32.mrf.mxu0
    %v2941 = vpop.f32.mrf.mxu0
    %v2942 = vadd.f32 %v2653, %v2941
    %v2943 = vpop.f32.mrf.mxu0
    %2944 = vmatprep.mubr.bf16.mxu0 %v1130
    %2945 = vmatmul.mubr.bf16.gmra.mxu0 %v1129
    %v2946 = vpop.f32.mrf.mxu0
    %v2947 = vadd.f32 %v2658, %v2946
    %v2948 = vpop.f32.mrf.mxu0
    %v2949 = vpop.f32.mrf.mxu0
    %v2950 = vadd.f32 %v2661, %v2949
    %v2951 = vpop.f32.mrf.mxu0
    %2952 = vmatprep.mubr.bf16.mxu0 %v1134
    %2953 = vmatmul.mubr.bf16.gmra.mxu0 %v1133
    %v2954 = vpop.f32.mrf.mxu0
    %v2955 = vadd.f32 %v2666, %v2954
    %v2956 = vpop.f32.mrf.mxu0
    %v2957 = vpop.f32.mrf.mxu0
    %v2958 = vadd.f32 %v2669, %v2957
    %v2959 = vpop.f32.mrf.mxu0
    %2960 = vmatprep.mubr.bf16.mxu0 %v1138
    %2961 = vmatmul.mubr.bf16.gmra.mxu0 %v1137
    %v2962 = vpop.f32.mrf.mxu0
    %v2963 = vadd.f32 %v2674, %v2962
    %v2964 = vpop.f32.mrf.mxu0
    %v2965 = vpop.f32.mrf.mxu0
    %v2966 = vadd.f32 %v2677, %v2965
    %v2967 = vpop.f32.mrf.mxu0
    %2968 = vmatprep.mubr.bf16.mxu0 %v1142
    %2969 = vmatmul.mubr.bf16.gmra.mxu0 %v1141
    %v2970 = vpop.f32.mrf.mxu0
    %v2971 = vadd.f32 %v2682, %v2970
    %v2972 = vpop.f32.mrf.mxu0
    %v2973 = vpop.f32.mrf.mxu0
    %v2974 = vadd.f32 %v2685, %v2973
    %v2975 = vpop.f32.mrf.mxu0
    %2976 = vmatprep.mubr.bf16.mxu0 %v1146
    %2977 = vmatmul.mubr.bf16.gmra.mxu0 %v1145
    %v2978 = vpop.f32.mrf.mxu0
    %v2979 = vadd.f32 %v2690, %v2978
    %v2980 = vpop.f32.mrf.mxu0
    %v2981 = vpop.f32.mrf.mxu0
    %v2982 = vadd.f32 %v2693, %v2981
    %v2983 = vpop.f32.mrf.mxu0
    %2984 = vdwg.mxu0
    %v2985 = vmax.f32 %v2731, 0.0
    %v2986 = vmax.f32 %v2734, 0.0
    %v2987 = vmax.f32 %v2739, 0.0
    %v2988 = vmax.f32 %v2742, 0.0
    %v2989 = vmax.f32 %v2747, 0.0
    %v2990 = vmax.f32 %v2750, 0.0
    %v2991 = vmax.f32 %v2755, 0.0
    %v2992 = vmax.f32 %v2758, 0.0
    %v2993 = vmax.f32 %v2763, 0.0
    %v2994 = vmax.f32 %v2766, 0.0
    %v2995 = vmax.f32 %v2771, 0.0
    %v2996 = vmax.f32 %v2774, 0.0
    %v2997 = vmax.f32 %v2779, 0.0
    %v2998 = vmax.f32 %v2782, 0.0
    %v2999 = vmax.f32 %v2787, 0.0
    %v3000 = vmax.f32 %v2790, 0.0
    %v3001 = vmax.f32 %v2795, 0.0
    %v3002 = vmax.f32 %v2798, 0.0
    %v3003 = vmax.f32 %v2803, 0.0
    %v3004 = vmax.f32 %v2806, 0.0
    %v3005 = vmax.f32 %v2811, 0.0
    %v3006 = vmax.f32 %v2814, 0.0
    %v3007 = vmax.f32 %v2819, 0.0
    %v3008 = vmax.f32 %v2822, 0.0
    %v3009 = vmax.f32 %v2827, 0.0
    %v3010 = vmax.f32 %v2830, 0.0
    %v3011 = vmax.f32 %v2835, 0.0
    %v3012 = vmax.f32 %v2838, 0.0
    %v3013 = vmax.f32 %v2843, 0.0
    %v3014 = vmax.f32 %v2846, 0.0
    %v3015 = vmax.f32 %v2851, 0.0
    %v3016 = vmax.f32 %v2854, 0.0
    %v3017 = vmax.f32 %v2859, 0.0
    %v3018 = vmax.f32 %v2862, 0.0
    %v3019 = vmax.f32 %v2867, 0.0
    %v3020 = vmax.f32 %v2870, 0.0
    %v3021 = vmax.f32 %v2875, 0.0
    %v3022 = vmax.f32 %v2878, 0.0
    %v3023 = vmax.f32 %v2883, 0.0
    %v3024 = vmax.f32 %v2886, 0.0
    %v3025 = vmax.f32 %v2891, 0.0
    %v3026 = vmax.f32 %v2894, 0.0
    %v3027 = vmax.f32 %v2899, 0.0
    %v3028 = vmax.f32 %v2902, 0.0
    %v3029 = vmax.f32 %v2907, 0.0
    %v3030 = vmax.f32 %v2910, 0.0
    %v3031 = vmax.f32 %v2915, 0.0
    %v3032 = vmax.f32 %v2918, 0.0
    %v3033 = vmax.f32 %v2923, 0.0
    %v3034 = vmax.f32 %v2926, 0.0
    %v3035 = vmax.f32 %v2931, 0.0
    %v3036 = vmax.f32 %v2934, 0.0
    %v3037 = vmax.f32 %v2939, 0.0
    %v3038 = vmax.f32 %v2942, 0.0
    %v3039 = vmax.f32 %v2947, 0.0
    %v3040 = vmax.f32 %v2950, 0.0
    %v3041 = vmax.f32 %v2955, 0.0
    %v3042 = vmax.f32 %v2958, 0.0
    %v3043 = vmax.f32 %v2963, 0.0
    %v3044 = vmax.f32 %v2966, 0.0
    %v3045 = vmax.f32 %v2971, 0.0
    %v3046 = vmax.f32 %v2974, 0.0
    %v3047 = vmax.f32 %v2979, 0.0
    %v3048 = vmax.f32 %v2982, 0.0
    %v3049 = vadd.f32 %v2985, %v19
    %v3050 = vadd.f32 %v2986, %v20
    %v3051 = vadd.f32 %v2987, %v21
    %v3052 = vadd.f32 %v2988, %v22
    %v3053 = vadd.f32 %v2989, %v23
    %v3054 = vadd.f32 %v2990, %v24
    %v3055 = vadd.f32 %v2991, %v25
    %v3056 = vadd.f32 %v2992, %v26
    %v3057 = vadd.f32 %v2993, %v27
    %v3058 = vadd.f32 %v2994, %v28
    %v3059 = vadd.f32 %v2995, %v29
    %v3060 = vadd.f32 %v2996, %v30
    %v3061 = vadd.f32 %v2997, %v31
    %v3062 = vadd.f32 %v2998, %v32
    %v3063 = vadd.f32 %v2999, %v33
    %v3064 = vadd.f32 %v3000, %v34
    %v3065 = vadd.f32 %v3001, %v35
    %v3066 = vadd.f32 %v3002, %v36
    %v3067 = vadd.f32 %v3003, %v37
    %v3068 = vadd.f32 %v3004, %v38
    %v3069 = vadd.f32 %v3005, %v39
    %v3070 = vadd.f32 %v3006, %v40
    %v3071 = vadd.f32 %v3007, %v41
    %v3072 = vadd.f32 %v3008, %v42
    %v3073 = vadd.f32 %v3009, %v43
    %v3074 = vadd.f32 %v3010, %v44
    %v3075 = vadd.f32 %v3011, %v45
    %v3076 = vadd.f32 %v3012, %v46
    %v3077 = vadd.f32 %v3013, %v47
    %v3078 = vadd.f32 %v3014, %v48
    %v3079 = vadd.f32 %v3015, %v49
    %v3080 = vadd.f32 %v3016, %v50
    %v3081 = vadd.f32 %v3017, %v51
    %v3082 = vadd.f32 %v3018, %v52
    %v3083 = vadd.f32 %v3019, %v53
    %v3084 = vadd.f32 %v3020, %v54
    %v3085 = vadd.f32 %v3021, %v55
    %v3086 = vadd.f32 %v3022, %v56
    %v3087 = vadd.f32 %v3023, %v57
    %v3088 = vadd.f32 %v3024, %v58
    %v3089 = vadd.f32 %v3025, %v59
    %v3090 = vadd.f32 %v3026, %v60
    %v3091 = vadd.f32 %v3027, %v61
    %v3092 = vadd.f32 %v3028, %v62
    %v3093 = vadd.f32 %v3029, %v63
    %v3094 = vadd.f32 %v3030, %v64
    %v3095 = vadd.f32 %v3031, %v65
    %v3096 = vadd.f32 %v3032, %v66
    %v3097 = vadd.f32 %v3033, %v67
    %v3098 = vadd.f32 %v3034, %v68
    %v3099 = vadd.f32 %v3035, %v69
    %v3100 = vadd.f32 %v3036, %v70
    %v3101 = vadd.f32 %v3037, %v71
    %v3102 = vadd.f32 %v3038, %v72
    %v3103 = vadd.f32 %v3039, %v73
    %v3104 = vadd.f32 %v3040, %v74
    %v3105 = vadd.f32 %v3041, %v75
    %v3106 = vadd.f32 %v3042, %v76
    %v3107 = vadd.f32 %v3043, %v77
    %v3108 = vadd.f32 %v3044, %v78
    %v3109 = vadd.f32 %v3045, %v79
    %v3110 = vadd.f32 %v3046, %v80
    %v3111 = vadd.f32 %v3047, %v81
    %v3112 = vadd.f32 %v3048, %v82
    %v3113 = vadd.f32 %v3049, %v19
    %v3114 = vadd.f32 %v3050, %v20
    %v3115 = vadd.f32 %v3051, %v21
    %v3116 = vadd.f32 %v3052, %v22
    %v3117 = vadd.f32 %v3053, %v23
    %v3118 = vadd.f32 %v3054, %v24
    %v3119 = vadd.f32 %v3055, %v25
    %v3120 = vadd.f32 %v3056, %v26
    %v3121 = vadd.f32 %v3057, %v27
    %v3122 = vadd.f32 %v3058, %v28
    %v3123 = vadd.f32 %v3059, %v29
    %v3124 = vadd.f32 %v3060, %v30
    %v3125 = vadd.f32 %v3061, %v31
    %v3126 = vadd.f32 %v3062, %v32
    %v3127 = vadd.f32 %v3063, %v33
    %v3128 = vadd.f32 %v3064, %v34
    %v3129 = vadd.f32 %v3065, %v35
    %v3130 = vadd.f32 %v3066, %v36
    %v3131 = vadd.f32 %v3067, %v37
    %v3132 = vadd.f32 %v3068, %v38
    %v3133 = vadd.f32 %v3069, %v39
    %v3134 = vadd.f32 %v3070, %v40
    %v3135 = vadd.f32 %v3071, %v41
    %v3136 = vadd.f32 %v3072, %v42
    %v3137 = vadd.f32 %v3073, %v43
    %v3138 = vadd.f32 %v3074, %v44
    %v3139 = vadd.f32 %v3075, %v45
    %v3140 = vadd.f32 %v3076, %v46
    %v3141 = vadd.f32 %v3077, %v47
    %v3142 = vadd.f32 %v3078, %v48
    %v3143 = vadd.f32 %v3079, %v49
    %v3144 = vadd.f32 %v3080, %v50
    %v3145 = vadd.f32 %v3081, %v51
    %v3146 = vadd.f32 %v3082, %v52
    %v3147 = vadd.f32 %v3083, %v53
    %v3148 = vadd.f32 %v3084, %v54
    %v3149 = vadd.f32 %v3085, %v55
    %v3150 = vadd.f32 %v3086, %v56
    %v3151 = vadd.f32 %v3087, %v57
    %v3152 = vadd.f32 %v3088, %v58
    %v3153 = vadd.f32 %v3089, %v59
    %v3154 = vadd.f32 %v3090, %v60
    %v3155 = vadd.f32 %v3091, %v61
    %v3156 = vadd.f32 %v3092, %v62
    %v3157 = vadd.f32 %v3093, %v63
    %v3158 = vadd.f32 %v3094, %v64
    %v3159 = vadd.f32 %v3095, %v65
    %v3160 = vadd.f32 %v3096, %v66
    %v3161 = vadd.f32 %v3097, %v67
    %v3162 = vadd.f32 %v3098, %v68
    %v3163 = vadd.f32 %v3099, %v69
    %v3164 = vadd.f32 %v3100, %v70
    %v3165 = vadd.f32 %v3101, %v71
    %v3166 = vadd.f32 %v3102, %v72
    %v3167 = vadd.f32 %v3103, %v73
    %v3168 = vadd.f32 %v3104, %v74
    %v3169 = vadd.f32 %v3105, %v75
    %v3170 = vadd.f32 %v3106, %v76
    %v3171 = vadd.f32 %v3107, %v77
    %v3172 = vadd.f32 %v3108, %v78
    %v3173 = vadd.f32 %v3109, %v79
    %v3174 = vadd.f32 %v3110, %v80
    %v3175 = vadd.f32 %v3111, %v81
    %v3176 = vadd.f32 %v3112, %v82
    %3177 = vst [vmem:[#allocation2] sm:$0xff] %v3113
    %3178 = vst [vmem:[#allocation2 + $0x8] sm:$0xff] %v3114
    %3179 = vst [vmem:[#allocation2 + $0x10] sm:$0xff] %v3115
    %3180 = vst [vmem:[#allocation2 + $0x18] sm:$0xff] %v3116
    %3181 = vst [vmem:[#allocation2 + $0x20] sm:$0xff] %v3117
    %3182 = vst [vmem:[#allocation2 + $0x28] sm:$0xff] %v3118
    %3183 = vst [vmem:[#allocation2 + $0x30] sm:$0xff] %v3119
    %3184 = vst [vmem:[#allocation2 + $0x38] sm:$0xff] %v3120
    %3185 = vst [vmem:[#allocation2 + $0x40] sm:$0xff] %v3121
    %3186 = vst [vmem:[#allocation2 + $0x48] sm:$0xff] %v3122
    %3187 = vst [vmem:[#allocation2 + $0x50] sm:$0xff] %v3123
    %3188 = vst [vmem:[#allocation2 + $0x58] sm:$0xff] %v3124
    %3189 = vst [vmem:[#allocation2 + $0x60] sm:$0xff] %v3125
    %3190 = vst [vmem:[#allocation2 + $0x68] sm:$0xff] %v3126
    %3191 = vst [vmem:[#allocation2 + $0x70] sm:$0xff] %v3127
    %3192 = vst [vmem:[#allocation2 + $0x78] sm:$0xff] %v3128
    %3193 = vst [vmem:[#allocation2 + $0x80] sm:$0xff] %v3129
    %3194 = vst [vmem:[#allocation2 + $0x88] sm:$0xff] %v3130
    %3195 = vst [vmem:[#allocation2 + $0x90] sm:$0xff] %v3131
    %3196 = vst [vmem:[#allocation2 + $0x98] sm:$0xff] %v3132
    %3197 = vst [vmem:[#allocation2 + $0xa0] sm:$0xff] %v3133
    %3198 = vst [vmem:[#allocation2 + $0xa8] sm:$0xff] %v3134
    %3199 = vst [vmem:[#allocation2 + $0xb0] sm:$0xff] %v3135
    %3200 = vst [vmem:[#allocation2 + $0xb8] sm:$0xff] %v3136
    %3201 = vst [vmem:[#allocation2 + $0xc0] sm:$0xff] %v3137
    %3202 = vst [vmem:[#allocation2 + $0xc8] sm:$0xff] %v3138
    %3203 = vst [vmem:[#allocation2 + $0xd0] sm:$0xff] %v3139
    %3204 = vst [vmem:[#allocation2 + $0xd8] sm:$0xff] %v3140
    %3205 = vst [vmem:[#allocation2 + $0xe0] sm:$0xff] %v3141
    %3206 = vst [vmem:[#allocation2 + $0xe8] sm:$0xff] %v3142
    %3207 = vst [vmem:[#allocation2 + $0xf0] sm:$0xff] %v3143
    %3208 = vst [vmem:[#allocation2 + $0xf8] sm:$0xff] %v3144
    %3209 = vst [vmem:[#allocation2 + $0x100] sm:$0xff] %v3145
    %3210 = vst [vmem:[#allocation2 + $0x108] sm:$0xff] %v3146
    %3211 = vst [vmem:[#allocation2 + $0x110] sm:$0xff] %v3147
    %3212 = vst [vmem:[#allocation2 + $0x118] sm:$0xff] %v3148
    %3213 = vst [vmem:[#allocation2 + $0x120] sm:$0xff] %v3149
    %3214 = vst [vmem:[#allocation2 + $0x128] sm:$0xff] %v3150
    %3215 = vst [vmem:[#allocation2 + $0x130] sm:$0xff] %v3151
    %3216 = vst [vmem:[#allocation2 + $0x138] sm:$0xff] %v3152
    %3217 = vst [vmem:[#allocation2 + $0x140] sm:$0xff] %v3153
    %3218 = vst [vmem:[#allocation2 + $0x148] sm:$0xff] %v3154
    %3219 = vst [vmem:[#allocation2 + $0x150] sm:$0xff] %v3155
    %3220 = vst [vmem:[#allocation2 + $0x158] sm:$0xff] %v3156
    %3221 = vst [vmem:[#allocation2 + $0x160] sm:$0xff] %v3157
    %3222 = vst [vmem:[#allocation2 + $0x168] sm:$0xff] %v3158
    %3223 = vst [vmem:[#allocation2 + $0x170] sm:$0xff] %v3159
    %3224 = vst [vmem:[#allocation2 + $0x178] sm:$0xff] %v3160
    %3225 = vst [vmem:[#allocation2 + $0x180] sm:$0xff] %v3161
    %3226 = vst [vmem:[#allocation2 + $0x188] sm:$0xff] %v3162
    %3227 = vst [vmem:[#allocation2 + $0x190] sm:$0xff] %v3163
    %3228 = vst [vmem:[#allocation2 + $0x198] sm:$0xff] %v3164
    %3229 = vst [vmem:[#allocation2 + $0x1a0] sm:$0xff] %v3165
    %3230 = vst [vmem:[#allocation2 + $0x1a8] sm:$0xff] %v3166
    %3231 = vst [vmem:[#allocation2 + $0x1b0] sm:$0xff] %v3167
    %3232 = vst [vmem:[#allocation2 + $0x1b8] sm:$0xff] %v3168
    %3233 = vst [vmem:[#allocation2 + $0x1c0] sm:$0xff] %v3169
    %3234 = vst [vmem:[#allocation2 + $0x1c8] sm:$0xff] %v3170
    %3235 = vst [vmem:[#allocation2 + $0x1d0] sm:$0xff] %v3171
    %3236 = vst [vmem:[#allocation2 + $0x1d8] sm:$0xff] %v3172
    %3237 = vst [vmem:[#allocation2 + $0x1e0] sm:$0xff] %v3173
    %3238 = vst [vmem:[#allocation2 + $0x1e8] sm:$0xff] %v3174
    %3239 = vst [vmem:[#allocation2 + $0x1f0] sm:$0xff] %v3175
    %3240 = vst [vmem:[#allocation2 + $0x1f8] sm:$0xff] %v3176
    // Predicated region
    $region18: #{gcn_encoder_forward.1} parent=1 // pred_check
      _
    $region19: #{gcn_encoder_forward.1} parent=1 // pred_check_branch
      %3242 = sbr.rel (0) target = $region21
    $region20: #{gcn_encoder_forward.1} parent=1 // pred_region
      %s3244 = ssub.s32 8192, 8192
      %3245 = vsyncadd [#allocation3], %s3244
      %s3246 = sshll.u32 [#allocation2], 4
      %s3247 = int_to_ptr.vmem [resolvable:$true] %s3246
      %3252 = dma.vmem_to_hbm [thread:$0]  %s3247, 8192, %s4, [#allocation3], 128, 128, 8
    $region21: #{gcn_encoder_forward.1} parent=1 // pred_fallthru
      _
    // Predicated region
    $region22: #{gcn_encoder_forward.1} parent=1 // pred_check
      _
    $region23: #{gcn_encoder_forward.1} parent=1 // pred_check_branch
      %3254 = sbr.rel (0) target = $region25
    $region24: #{gcn_encoder_forward.1} parent=1 // pred_region
      %3255 = dma.done [#allocation3], 8192
    $region25: #{gcn_encoder_forward.1} parent=1 // pred_fallthru
      _
    %3256 = vsyncpa [#allocation3], 1

</llo_original>
